<compile_context>
chip_gen: v7x
topology: tpu7x:2x2x1
jax: 0.10.0
libtpu: 0.0.40
codegen_flags: <defaults>
</compile_context>

<pallas_src>
import numpy as np
import jax
import jax.numpy as jnp
from jax import lax
from jax.experimental import pallas as pl
from jax.experimental.pallas import tpu as pltpu


# --------------------------------------------------------------------------
# matmul helpers
# --------------------------------------------------------------------------

def _dot_exact(a, b):
    # HIGHEST only on the forward DFT: it feeds arctan2, where cancellation in
    # small-magnitude bins makes the phase sensitive to bf16 rounding.
    return jnp.dot(a, b, preferred_element_type=jnp.float32,
                   precision=lax.Precision.HIGHEST)


def _dot_def(a, b):
    # DEFAULT (single bf16 pass) for the MLPs and the flop-dominant inverse DFT.
    return jnp.dot(a, b, preferred_element_type=jnp.float32)


# --------------------------------------------------------------------------
# Kernel bodies (closure over the static tile dims)
# --------------------------------------------------------------------------

def _make_kernels(NBH, GCW, NB2H):
    """NBH = NB*H sublanes in, GCW = G*C*W lanes in, NB2H = NB*2H sublanes out."""

    def fwd_dft(x, er_ref, ec_ref):
        erre = er_ref[0:NBH, :]
        erim = er_ref[NBH:2 * NBH, :]
        ecre = ec_ref[0:GCW, :]
        ecim = ec_ref[GCW:2 * GCW, :]
        tre = _dot_exact(erre, x)
        tim = _dot_exact(erim, x)
        xre = _dot_exact(tre, ecre) - _dot_exact(tim, ecim)
        xim = _dot_exact(tre, ecim) + _dot_exact(tim, ecre)
        return xre, xim

    def postprocess(mag, pha, w_ref, b_ref, mask_ref, fh_ref, fw_ref):
        def mlp(t, w1, b1, w2, b2):
            h = _dot_def(t, w1) + b1
            h = jnp.where(h >= 0.0, h, 0.1 * h)      # LeakyReLU(0.1)
            return _dot_def(h, w2) + b2

        Mag = mlp(mag,
                  w_ref[0 * GCW:1 * GCW, :], b_ref[0 * NBH:1 * NBH, :],
                  w_ref[1 * GCW:2 * GCW, :], b_ref[1 * NBH:2 * NBH, :])
        Pha = mlp(pha,
                  w_ref[2 * GCW:3 * GCW, :], b_ref[2 * NBH:3 * NBH, :],
                  w_ref[3 * GCW:4 * GCW, :], b_ref[3 * NBH:4 * NBH, :])

        # Nyquist boundary 0.5 scaling (applied to BOTH mag and pha before
        # cos/sin, matching the reference corner placement).
        m = mask_ref[...]
        Mag = Mag * m
        Pha = Pha * m

        zre = Mag * jnp.cos(Pha)
        zim = Mag * jnp.sin(Pha)

        fhre = fh_ref[0:NB2H, :]
        fhim = fh_ref[NB2H:2 * NB2H, :]
        fwre = fw_ref[0:GCW, :]
        fwim = fw_ref[GCW:2 * GCW, :]

        # Inverse 2-D DFT with the corner placement folded into FH / FW.
        tre = _dot_def(fhre, zre) - _dot_def(fhim, zim)     # (NB2H, GCW)
        tim = _dot_def(fhre, zim) + _dot_def(fhim, zre)
        ore = _dot_def(tre, fwre) - _dot_def(tim, fwim)     # (NB2H, 2*GCW)
        oim = _dot_def(tre, fwim) + _dot_def(tim, fwre)
        return jnp.sqrt(ore * ore + oim * oim)

    def fused_kernel(x_ref, er_ref, ec_ref, w_ref, b_ref, mask_ref,
                     fh_ref, fw_ref, o_ref):
        xre, xim = fwd_dft(x_ref[...], er_ref, ec_ref)
        mag = jnp.sqrt(xre * xre + xim * xim)
        pha = jnp.arctan2(xim, xre)
        o_ref[...] = postprocess(mag, pha, w_ref, b_ref, mask_ref, fh_ref, fw_ref)

    def dft_kernel(x_ref, er_ref, ec_ref, re_ref, im_ref):
        xre, xim = fwd_dft(x_ref[...], er_ref, ec_ref)
        re_ref[...] = xre
        im_ref[...] = xim

    def post_kernel(mag_ref, pha_ref, w_ref, b_ref, mask_ref,
                    fh_ref, fw_ref, o_ref):
        o_ref[...] = postprocess(mag_ref[...], pha_ref[...],
                                 w_ref, b_ref, mask_ref, fh_ref, fw_ref)

    return fused_kernel, dft_kernel, post_kernel


# --------------------------------------------------------------------------
# One-time probe: does this toolchain lower arctan2 inside Mosaic?
# --------------------------------------------------------------------------

_HAS_ATAN2 = None


def _has_atan2():
    global _HAS_ATAN2
    if _HAS_ATAN2 is None:
        def _probe(x_ref, o_ref):
            o_ref[...] = jnp.arctan2(x_ref[...], x_ref[...] + 1.0)
        try:
            fn = pl.pallas_call(
                _probe, out_shape=jax.ShapeDtypeStruct((8, 128), jnp.float32))
            jax.block_until_ready(fn(jnp.ones((8, 128), jnp.float32)))
            _HAS_ATAN2 = True
        except Exception:
            _HAS_ATAN2 = False
    return _HAS_ATAN2


# --------------------------------------------------------------------------
# Host-side constant construction
# --------------------------------------------------------------------------

def _dft_mats(n, sign, scale):
    k = np.arange(n, dtype=np.float64)
    ang = sign * 2.0 * np.pi * np.outer(k, k) / n
    return np.cos(ang) * scale, np.sin(ang) * scale


def _corner_index_pairs(r):
    """(source row, corner output row) pairs of the reference corner placement."""
    if r % 2 == 1:
        i1, i2 = r // 2 + 1, r // 2 + 1
    else:
        i1, i2 = r // 2 + 1, r // 2
    src = list(range(i1)) + list(range(i2, r))
    out = list(range(i1)) + list(range(i2 + r, 2 * r))
    return src, out


def _fold_left(F, r):
    """(2r,2r) inverse-DFT (left multiply) -> (2r,r) with corner placement folded."""
    out = np.zeros((2 * r, r), np.float64)
    for s, o in zip(*_corner_index_pairs(r)):
        out[:, s] += F[:, o]
    return out


def _fold_right(F, c):
    """(2c,2c) inverse-DFT (right multiply) -> (c,2c) with corner placement folded."""
    out = np.zeros((c, 2 * c), np.float64)
    for s, o in zip(*_corner_index_pairs(c)):
        out[s, :] += F[o, :]
    return out


def _choose_packing(N, C, H, W):
    """G = images packed along lanes, NB = slabs stacked along sublanes / step."""
    CW = C * W
    G = 1
    g_start = min(N, max(1, 128 // CW)) if CW <= 128 else 1
    for g in range(g_start, 0, -1):
        if N % g == 0:
            G = g
            break
    S = N // G
    NB = 1
    nb_cap = min(S, max(1, 256 // max(2 * H, 1)))     # target ~256 MXU rows
    for nb in range(nb_cap, 0, -1):
        if S % nb == 0:
            NB = nb
            break
    # Keep >= 2 grid steps when there is more than one slab (v7x dual TC).
    if S >= 2 and S // NB < 2:
        for nb in range(NB - 1, 0, -1):
            if S % nb == 0 and S // nb >= 2:
                NB = nb
                break
    # Partial-array blocks need sublane-multiple-of-8 tiles.
    if NB != S and (NB * H) % 8 != 0:
        NB = S
    return G, NB


def _build_consts(params, C, H, W, G, NB):
    GC = G * C
    NBH = NB * H
    eye_nb = np.eye(NB)
    eye_gc = np.eye(GC)
    eye_g = np.eye(G)
    eye_w = np.eye(W)

    # Forward DFT (row side (NBH,NBH); per-channel column side block-diagonal).
    erre, erim = _dft_mats(H, -1.0, 1.0)
    ewre, ewim = _dft_mats(W, -1.0, 1.0)
    ER = np.concatenate([np.kron(eye_nb, erre), np.kron(eye_nb, erim)], axis=0)
    EC = np.concatenate([np.kron(eye_gc, ewre), np.kron(eye_gc, ewim)], axis=0)

    # 1x1-conv channel mixing, lane packed (column index = g*C*W + c*W + w).
    w1a, b1a, w2a, b2a, w1p, b1p, w2p, b2p = [
        np.asarray(p, np.float64) for p in params]

    def kr(w):
        return np.kron(eye_g, np.kron(w.T, eye_w))          # (GCW, GCW)

    def br(b):
        row = np.tile(np.repeat(b, W), G)[None, :]           # (1, GCW)
        return np.tile(row, (NBH, 1))                        # full-height bias

    W4 = np.concatenate([kr(w1a), kr(w2a), kr(w1p), kr(w2p)], axis=0)
    B4 = np.concatenate([br(b1a), br(b2a), br(b1p), br(b2p)], axis=0)

    # 0.5 Nyquist boundary scaling as an elementwise mask (even sizes only).
    mh = np.ones(H)
    mw = np.ones(W)
    if H % 2 == 0:
        mh[H // 2] = 0.5
    if W % 2 == 0:
        mw[W // 2] = 0.5
    mask = np.tile(mh, NB)[:, None] * np.tile(mw, GC)[None, :]   # (NBH, GCW)

    # Inverse DFT with corner selection + Nyquist-row duplication folded in.
    fhre, fhim = _dft_mats(2 * H, +1.0, 1.0 / (2 * H))
    fwre, fwim = _dft_mats(2 * W, +1.0, 1.0 / (2 * W))
    FH = np.concatenate([np.kron(eye_nb, _fold_left(fhre, H)),
                         np.kron(eye_nb, _fold_left(fhim, H))], axis=0)
    FW = np.concatenate([np.kron(eye_gc, _fold_right(fwre, W)),
                         np.kron(eye_gc, _fold_right(fwim, W))], axis=0)

    consts = (ER, EC, W4, B4, mask, FH, FW)
    return tuple(jnp.asarray(c, jnp.float32) for c in consts)


# --------------------------------------------------------------------------
# Builder: returns a jitted forward fn (matches freup_Cornerdinterpolation.forward)
# --------------------------------------------------------------------------

def make_freup_corner_interpolation(params, N, C, H, W):
    G, NB = _choose_packing(N, C, H, W)
    S = N // G                      # number of lane-packed slabs
    steps = S // NB                 # grid steps
    NBH, NB2H = NB * H, NB * 2 * H
    GCW, GC2W = G * C * W, 2 * G * C * W

    consts = _build_consts([np.asarray(p) for p in params], C, H, W, G, NB)
    fused_kernel, dft_kernel, post_kernel = _make_kernels(NBH, GCW, NB2H)

    const_specs = [pl.BlockSpec(c.shape, lambda i: (0, 0)) for c in consts]
    x_spec = pl.BlockSpec((NBH, GCW), lambda i: (i, 0))
    o_spec = pl.BlockSpec((NB2H, GC2W), lambda i: (i, 0))
    cparams = pltpu.CompilerParams(dimension_semantics=("parallel",))

    fused_call = pl.pallas_call(
        fused_kernel,
        out_shape=jax.ShapeDtypeStruct((S * 2 * H, GC2W), jnp.float32),
        grid_spec=pltpu.PrefetchScalarGridSpec(
            num_scalar_prefetch=0, grid=(steps,),
            in_specs=[x_spec] + const_specs,
            out_specs=o_spec),
        compiler_params=cparams)

    dft_call = pl.pallas_call(
        dft_kernel,
        out_shape=(jax.ShapeDtypeStruct((S * H, GCW), jnp.float32),
                   jax.ShapeDtypeStruct((S * H, GCW), jnp.float32)),
        grid_spec=pltpu.PrefetchScalarGridSpec(
            num_scalar_prefetch=0, grid=(steps,),
            in_specs=[x_spec] + const_specs[:2],
            out_specs=(x_spec, x_spec)),
        compiler_params=cparams)

    post_call = pl.pallas_call(
        post_kernel,
        out_shape=jax.ShapeDtypeStruct((S * 2 * H, GC2W), jnp.float32),
        grid_spec=pltpu.PrefetchScalarGridSpec(
            num_scalar_prefetch=0, grid=(steps,),
            in_specs=[x_spec, x_spec] + const_specs[2:],
            out_specs=o_spec),
        compiler_params=cparams)

    use_fused = _has_atan2()

    def fwd(x):
        # Layout plumbing only (KB-sized): (N,C,H,W) -> (S*H, G*C*W),
        # column index = g*C*W + c*W + w, row index = s*H + h.
        xr = (x.astype(jnp.float32)
              .reshape(S, G, C, H, W)
              .transpose(0, 3, 1, 2, 4)
              .reshape(S * H, GCW))
        if use_fused:
            out = fused_call(xr, *consts)
        else:
            # TODO(synk): toolchains without an in-kernel arctan2 lowering use a
            # two-kernel split with mag/angle computed in XLA glue.
            xre, xim = dft_call(xr, *consts[:2])
            mag = jnp.sqrt(xre * xre + xim * xim)
            pha = jnp.arctan2(xim, xre)
            out = post_call(mag, pha, *consts[2:])
        # (S*2H, G*C*2W) -> (N, C, 2H, 2W)
        return (out.reshape(S, 2 * H, G, C, 2 * W)
                .transpose(0, 2, 3, 1, 4)
                .reshape(N, C, 2 * H, 2 * W))

    return jax.jit(fwd)


# --------------------------------------------------------------------------
# Pure-JAX reference (direct translation of the PyTorch forward)
# --------------------------------------------------------------------------

def reference(x, params):
    w1a, b1a, w2a, b2a, w1p, b1p, w2p, b2p = params
    N, C, H, W = x.shape
    fx = jnp.fft.fft2(x)
    mag = jnp.abs(fx)
    pha = jnp.angle(fx)

    def fuse(t, w1, b1, w2, b2):
        h = jnp.einsum('oi,nihw->nohw', w1, t,
                       precision=lax.Precision.HIGHEST) + b1[None, :, None, None]
        h = jnp.where(h >= 0.0, h, 0.1 * h)
        return jnp.einsum('oi,nihw->nohw', w2, h,
                          precision=lax.Precision.HIGHEST) + b2[None, :, None, None]

    Mag = fuse(mag, w1a, b1a, w2a, b2a)
    Pha = fuse(pha, w1p, b1p, w2p, b2p)

    r, c = H, W
    ir1, ir2 = ((r // 2 + 1, r // 2 + 1) if r % 2 == 1 else (r // 2 + 1, r // 2))
    ic1, ic2 = ((c // 2 + 1, c // 2 + 1) if c % 2 == 1 else (c // 2 + 1, c // 2))

    def place(T):
        I = jnp.zeros((N, C, 2 * H, 2 * W), jnp.float32)
        I = I.at[:, :, :ir1, :ic1].set(T[:, :, :ir1, :ic1])
        I = I.at[:, :, :ir1, ic2 + c:].set(T[:, :, :ir1, ic2:])
        I = I.at[:, :, ir2 + r:, :ic1].set(T[:, :, ir2:, :ic1])
        I = I.at[:, :, ir2 + r:, ic2 + c:].set(T[:, :, ir2:, ic2:])
        if r % 2 == 0:
            I = I.at[:, :, ir2, :].multiply(0.5)
            I = I.at[:, :, ir2 + r, :].multiply(0.5)
        if c % 2 == 0:
            I = I.at[:, :, :, ic2].multiply(0.5)
            I = I.at[:, :, :, ic2 + c].multiply(0.5)
        return I

    I_M = place(Mag)
    I_P = place(Pha)
    z = I_M * jnp.cos(I_P) + 1j * (I_M * jnp.sin(I_P))
    return jnp.abs(jnp.fft.ifft2(z))


# --------------------------------------------------------------------------

if __name__ == "__main__":
    N, C, H, W = 2, 4, 16, 16
    keys = jax.random.split(jax.random.PRNGKey(0), 9)
    x = jax.random.normal(keys[0], (N, C, H, W), dtype=jnp.float32)

    s = 1.0 / np.sqrt(C)
    params = (
        jax.random.normal(keys[1], (C, C), jnp.float32) * s,      # amp conv1 w
        jax.random.normal(keys[2], (C,), jnp.float32) * 0.05,     # amp conv1 b
        jax.random.normal(keys[3], (C, C), jnp.float32) * s,      # amp conv2 w
        jax.random.normal(keys[4], (C,), jnp.float32) * 0.05,     # amp conv2 b
        jax.random.normal(keys[5], (C, C), jnp.float32) * s,      # pha conv1 w
        jax.random.normal(keys[6], (C,), jnp.float32) * 0.05,     # pha conv1 b
        jax.random.normal(keys[7], (C, C), jnp.float32) * s,      # pha conv2 w
        jax.random.normal(keys[8], (C,), jnp.float32) * 0.05,     # pha conv2 b
    )

    fwd = make_freup_corner_interpolation(params, N, C, H, W)
    out = jax.block_until_ready(fwd(x))
    assert out.shape == (N, C, 2 * H, 2 * W)
    assert bool(jnp.all(jnp.isfinite(out)))

    ref = jax.block_until_ready(reference(x, params))
    err = float(jnp.max(jnp.abs(out - ref)))
    scale = float(jnp.max(jnp.abs(ref))) + 1e-6
    assert err <= 5e-2 * scale, f"mismatch: max abs err {err}, ref scale {scale}"

    print("KERNEL_OK")
</pallas_src>

<mosaic_0001>
module attributes {stable_mosaic.version = 11 : i64} {
  func.func @_probe(%arg0: memref<8x128xf32, #tpu.memory_space<vmem>>, %arg1: memref<8x128xf32, #tpu.memory_space<vmem>>) attributes {dimension_semantics = [], scalar_prefetch = 0 : i64, scratch_operands = 0 : i64, tpu.core_type = #tpu.core_type<tc>} {
    %c0 = arith.constant 0 : index
    %c0_0 = arith.constant 0 : index
    %0 = vector.load %arg0[%c0, %c0_0] : memref<8x128xf32, #tpu.memory_space<vmem>>, vector<8x128xf32>
    %c0_1 = arith.constant 0 : index
    %c0_2 = arith.constant 0 : index
    %1 = vector.load %arg0[%c0_1, %c0_2] : memref<8x128xf32, #tpu.memory_space<vmem>>, vector<8x128xf32>
    %cst = arith.constant 1.000000e+00 : f32
    %2 = vector.broadcast %cst : f32 to vector<8x128xf32>
    %3 = arith.addf %1, %2 : vector<8x128xf32>
    %4 = math.atan2 %0, %3 : vector<8x128xf32>
    %c0_3 = arith.constant 0 : index
    %c0_4 = arith.constant 0 : index
    %5 = vector.load %arg1[%c0_3, %c0_4] : memref<8x128xf32, #tpu.memory_space<vmem>>, vector<8x128xf32>
    tpu.vector_store %arg1[%c0_3, %c0_4], %4 {strides = array<i32>} : memref<8x128xf32, #tpu.memory_space<vmem>>, vector<8x128xf32>,
    return
  }
}

module attributes {stable_mosaic.version = 11 : i64} {
  func.func @dft_kernel(%arg0: i32, %arg1: memref<16x128xf32, #tpu.memory_space<vmem>>, %arg2: memref<32x16xf32, #tpu.memory_space<vmem>>, %arg3: memref<256x128xf32, #tpu.memory_space<vmem>>, %arg4: memref<16x128xf32, #tpu.memory_space<vmem>>, %arg5: memref<16x128xf32, #tpu.memory_space<vmem>>) attributes {dimension_semantics = [#tpu.dimension_semantics<parallel>], iteration_bounds = array<i64: 1>, scalar_prefetch = 0 : i64, scratch_operands = 0 : i64, tpu.core_type = #tpu.core_type<tc>, window_params = [{transform_indices = @transform_0, window_bounds = array<i64: 16, 128>}, {pipeline_mode = #tpu.pipeline_mode<synchronous>, transform_indices = @transform_1, window_bounds = array<i64: 32, 16>}, {pipeline_mode = #tpu.pipeline_mode<synchronous>, transform_indices = @transform_2, window_bounds = array<i64: 256, 128>}, {transform_indices = @transform_3, window_bounds = array<i64: 16, 128>}, {transform_indices = @transform_4, window_bounds = array<i64: 16, 128>}]} {
    %c0 = arith.constant 0 : index
    %c0_0 = arith.constant 0 : index
    %0 = vector.load %arg1[%c0, %c0_0] : memref<16x128xf32, #tpu.memory_space<vmem>>, vector<16x128xf32>
    %c0_1 = arith.constant 0 : index
    %c0_2 = arith.constant 0 : index
    %1 = vector.load %arg2[%c0_1, %c0_2] : memref<32x16xf32, #tpu.memory_space<vmem>>, vector<16x16xf32>
    %c16 = arith.constant 16 : index
    %c0_3 = arith.constant 0 : index
    %2 = vector.load %arg2[%c16, %c0_3] : memref<32x16xf32, #tpu.memory_space<vmem>>, vector<16x16xf32>
    %c0_4 = arith.constant 0 : index
    %c0_5 = arith.constant 0 : index
    %3 = vector.load %arg3[%c0_4, %c0_5] : memref<256x128xf32, #tpu.memory_space<vmem>>, vector<128x128xf32>
    %c128 = arith.constant 128 : index
    %c0_6 = arith.constant 0 : index
    %4 = vector.load %arg3[%c128, %c0_6] : memref<256x128xf32, #tpu.memory_space<vmem>>, vector<128x128xf32>
    %cst = arith.constant dense<0.000000e+00> : vector<16x128xf32>
    %5 = tpu.matmul %1, %0, %cst {dimension_numbers = #tpu.dot_dimension_numbers<[1], [0], [0], [1], [0, 0, 1, 1], [], []>, precision = #tpu.contract_precision<fp32>} : vector<16x16xf32>, vector<16x128xf32>, vector<16x128xf32> -> vector<16x128xf32>
    %cst_7 = arith.constant dense<0.000000e+00> : vector<16x128xf32>
    %6 = tpu.matmul %2, %0, %cst_7 {dimension_numbers = #tpu.dot_dimension_numbers<[1], [0], [0], [1], [0, 0, 1, 1], [], []>, precision = #tpu.contract_precision<fp32>} : vector<16x16xf32>, vector<16x128xf32>, vector<16x128xf32> -> vector<16x128xf32>
    %cst_8 = arith.constant dense<0.000000e+00> : vector<16x128xf32>
    %7 = tpu.matmul %5, %3, %cst_8 {dimension_numbers = #tpu.dot_dimension_numbers<[1], [0], [0], [1], [0, 0, 1, 1], [], []>, precision = #tpu.contract_precision<fp32>} : vector<16x128xf32>, vector<128x128xf32>, vector<16x128xf32> -> vector<16x128xf32>
    %cst_9 = arith.constant dense<0.000000e+00> : vector<16x128xf32>
    %8 = tpu.matmul %6, %4, %cst_9 {dimension_numbers = #tpu.dot_dimension_numbers<[1], [0], [0], [1], [0, 0, 1, 1], [], []>, precision = #tpu.contract_precision<fp32>} : vector<16x128xf32>, vector<128x128xf32>, vector<16x128xf32> -> vector<16x128xf32>
    %9 = arith.subf %7, %8 : vector<16x128xf32>
    %cst_10 = arith.constant dense<0.000000e+00> : vector<16x128xf32>
    %10 = tpu.matmul %5, %4, %cst_10 {dimension_numbers = #tpu.dot_dimension_numbers<[1], [0], [0], [1], [0, 0, 1, 1], [], []>, precision = #tpu.contract_precision<fp32>} : vector<16x128xf32>, vector<128x128xf32>, vector<16x128xf32> -> vector<16x128xf32>
    %cst_11 = arith.constant dense<0.000000e+00> : vector<16x128xf32>
    %11 = tpu.matmul %6, %3, %cst_11 {dimension_numbers = #tpu.dot_dimension_numbers<[1], [0], [0], [1], [0, 0, 1, 1], [], []>, precision = #tpu.contract_precision<fp32>} : vector<16x128xf32>, vector<128x128xf32>, vector<16x128xf32> -> vector<16x128xf32>
    %12 = arith.addf %10, %11 : vector<16x128xf32>
    %c0_12 = arith.constant 0 : index
    %c0_13 = arith.constant 0 : index
    %13 = vector.load %arg4[%c0_12, %c0_13] : memref<16x128xf32, #tpu.memory_space<vmem>>, vector<16x128xf32>
    tpu.vector_store %arg4[%c0_12, %c0_13], %9 {strides = array<i32>} : memref<16x128xf32, #tpu.memory_space<vmem>>, vector<16x128xf32>,
    %c0_14 = arith.constant 0 : index
    %c0_15 = arith.constant 0 : index
    %14 = vector.load %arg5[%c0_14, %c0_15] : memref<16x128xf32, #tpu.memory_space<vmem>>, vector<16x128xf32>
    tpu.vector_store %arg5[%c0_14, %c0_15], %12 {strides = array<i32>} : memref<16x128xf32, #tpu.memory_space<vmem>>, vector<16x128xf32>,
    return
  }
  func.func @transform_0(%arg0: i32) -> (i32, i32) {
    %c0_i32 = arith.constant 0 : i32
    %c0_i32_0 = arith.constant 0 : i32
    return %arg0, %c0_i32 : i32, i32
  }
  func.func @transform_1(%arg0: i32) -> (i32, i32) {
    %c0_i32 = arith.constant 0 : i32
    %c0_i32_0 = arith.constant 0 : i32
    %c0_i32_1 = arith.constant 0 : i32
    return %c0_i32, %c0_i32_0 : i32, i32
  }
  func.func @transform_2(%arg0: i32) -> (i32, i32) {
    %c0_i32 = arith.constant 0 : i32
    %c0_i32_0 = arith.constant 0 : i32
    %c0_i32_1 = arith.constant 0 : i32
    return %c0_i32, %c0_i32_0 : i32, i32
  }
  func.func @transform_3(%arg0: i32) -> (i32, i32) {
    %c0_i32 = arith.constant 0 : i32
    %c0_i32_0 = arith.constant 0 : i32
    return %arg0, %c0_i32 : i32, i32
  }
  func.func @transform_4(%arg0: i32) -> (i32, i32) {
    %c0_i32 = arith.constant 0 : i32
    %c0_i32_0 = arith.constant 0 : i32
    return %arg0, %c0_i32 : i32, i32
  }
}

module attributes {stable_mosaic.version = 11 : i64} {
  func.func @post_kernel(%arg0: i32, %arg1: memref<16x128xf32, #tpu.memory_space<vmem>>, %arg2: memref<16x128xf32, #tpu.memory_space<vmem>>, %arg3: memref<512x128xf32, #tpu.memory_space<vmem>>, %arg4: memref<64x128xf32, #tpu.memory_space<vmem>>, %arg5: memref<16x128xf32, #tpu.memory_space<vmem>>, %arg6: memref<64x16xf32, #tpu.memory_space<vmem>>, %arg7: memref<256x256xf32, #tpu.memory_space<vmem>>, %arg8: memref<32x256xf32, #tpu.memory_space<vmem>>) attributes {dimension_semantics = [#tpu.dimension_semantics<parallel>], iteration_bounds = array<i64: 1>, scalar_prefetch = 0 : i64, scratch_operands = 0 : i64, tpu.core_type = #tpu.core_type<tc>, window_params = [{transform_indices = @transform_0, window_bounds = array<i64: 16, 128>}, {transform_indices = @transform_1, window_bounds = array<i64: 16, 128>}, {pipeline_mode = #tpu.pipeline_mode<synchronous>, transform_indices = @transform_2, window_bounds = array<i64: 512, 128>}, {pipeline_mode = #tpu.pipeline_mode<synchronous>, transform_indices = @transform_3, window_bounds = array<i64: 64, 128>}, {pipeline_mode = #tpu.pipeline_mode<synchronous>, transform_indices = @transform_4, window_bounds = array<i64: 16, 128>}, {pipeline_mode = #tpu.pipeline_mode<synchronous>, transform_indices = @transform_5, window_bounds = array<i64: 64, 16>}, {pipeline_mode = #tpu.pipeline_mode<synchronous>, transform_indices = @transform_6, window_bounds = array<i64: 256, 256>}, {transform_indices = @transform_7, window_bounds = array<i64: 32, 256>}]} {
    %c0 = arith.constant 0 : index
    %c0_0 = arith.constant 0 : index
    %0 = vector.load %arg1[%c0, %c0_0] : memref<16x128xf32, #tpu.memory_space<vmem>>, vector<16x128xf32>
    %c0_1 = arith.constant 0 : index
    %c0_2 = arith.constant 0 : index
    %1 = vector.load %arg2[%c0_1, %c0_2] : memref<16x128xf32, #tpu.memory_space<vmem>>, vector<16x128xf32>
    %c0_3 = arith.constant 0 : index
    %c0_4 = arith.constant 0 : index
    %2 = vector.load %arg3[%c0_3, %c0_4] : memref<512x128xf32, #tpu.memory_space<vmem>>, vector<128x128xf32>
    %c0_5 = arith.constant 0 : index
    %c0_6 = arith.constant 0 : index
    %3 = vector.load %arg4[%c0_5, %c0_6] : memref<64x128xf32, #tpu.memory_space<vmem>>, vector<16x128xf32>
    %c128 = arith.constant 128 : index
    %c0_7 = arith.constant 0 : index
    %4 = vector.load %arg3[%c128, %c0_7] : memref<512x128xf32, #tpu.memory_space<vmem>>, vector<128x128xf32>
    %c16 = arith.constant 16 : index
    %c0_8 = arith.constant 0 : index
    %5 = vector.load %arg4[%c16, %c0_8] : memref<64x128xf32, #tpu.memory_space<vmem>>, vector<16x128xf32>
    %cst = arith.constant dense<0.000000e+00> : vector<16x128xf32>
    %6 = tpu.matmul %0, %2, %cst {dimension_numbers = #tpu.dot_dimension_numbers<[1], [0], [0], [1], [0, 0, 1, 1], [], []>} : vector<16x128xf32>, vector<128x128xf32>, vector<16x128xf32> -> vector<16x128xf32>
    %7 = arith.addf %6, %3 : vector<16x128xf32>
    %cst_9 = arith.constant 0.000000e+00 : f32
    %8 = vector.broadcast %cst_9 : f32 to vector<16x128xf32>
    %9 = arith.cmpf oge, %7, %8 : vector<16x128xf32>
    %cst_10 = arith.constant 1.000000e-01 : f32
    %10 = vector.broadcast %cst_10 : f32 to vector<16x128xf32>
    %11 = arith.mulf %10, %7 : vector<16x128xf32>
    %12 = arith.select %9, %7, %11 : vector<16x128xi1>, vector<16x128xf32>
    %cst_11 = arith.constant dense<0.000000e+00> : vector<16x128xf32>
    %13 = tpu.matmul %12, %4, %cst_11 {dimension_numbers = #tpu.dot_dimension_numbers<[1], [0], [0], [1], [0, 0, 1, 1], [], []>} : vector<16x128xf32>, vector<128x128xf32>, vector<16x128xf32> -> vector<16x128xf32>
    %14 = arith.addf %13, %5 : vector<16x128xf32>
    %c256 = arith.constant 256 : index
    %c0_12 = arith.constant 0 : index
    %15 = vector.load %arg3[%c256, %c0_12] : memref<512x128xf32, #tpu.memory_space<vmem>>, vector<128x128xf32>
    %c32 = arith.constant 32 : index
    %c0_13 = arith.constant 0 : index
    %16 = vector.load %arg4[%c32, %c0_13] : memref<64x128xf32, #tpu.memory_space<vmem>>, vector<16x128xf32>
    %c384 = arith.constant 384 : index
    %c0_14 = arith.constant 0 : index
    %17 = vector.load %arg3[%c384, %c0_14] : memref<512x128xf32, #tpu.memory_space<vmem>>, vector<128x128xf32>
    %c48 = arith.constant 48 : index
    %c0_15 = arith.constant 0 : index
    %18 = vector.load %arg4[%c48, %c0_15] : memref<64x128xf32, #tpu.memory_space<vmem>>, vector<16x128xf32>
    %cst_16 = arith.constant dense<0.000000e+00> : vector<16x128xf32>
    %19 = tpu.matmul %1, %15, %cst_16 {dimension_numbers = #tpu.dot_dimension_numbers<[1], [0], [0], [1], [0, 0, 1, 1], [], []>} : vector<16x128xf32>, vector<128x128xf32>, vector<16x128xf32> -> vector<16x128xf32>
    %20 = arith.addf %19, %16 : vector<16x128xf32>
    %cst_17 = arith.constant 0.000000e+00 : f32
    %21 = vector.broadcast %cst_17 : f32 to vector<16x128xf32>
    %22 = arith.cmpf oge, %20, %21 : vector<16x128xf32>
    %cst_18 = arith.constant 1.000000e-01 : f32
    %23 = vector.broadcast %cst_18 : f32 to vector<16x128xf32>
    %24 = arith.mulf %23, %20 : vector<16x128xf32>
    %25 = arith.select %22, %20, %24 : vector<16x128xi1>, vector<16x128xf32>
    %cst_19 = arith.constant dense<0.000000e+00> : vector<16x128xf32>
    %26 = tpu.matmul %25, %17, %cst_19 {dimension_numbers = #tpu.dot_dimension_numbers<[1], [0], [0], [1], [0, 0, 1, 1], [], []>} : vector<16x128xf32>, vector<128x128xf32>, vector<16x128xf32> -> vector<16x128xf32>
    %27 = arith.addf %26, %18 : vector<16x128xf32>
    %c0_20 = arith.constant 0 : index
    %c0_21 = arith.constant 0 : index
    %28 = vector.load %arg5[%c0_20, %c0_21] : memref<16x128xf32, #tpu.memory_space<vmem>>, vector<16x128xf32>
    %29 = arith.mulf %14, %28 : vector<16x128xf32>
    %30 = arith.mulf %27, %28 : vector<16x128xf32>
    %31 = math.cos %30 : vector<16x128xf32>
    %32 = arith.mulf %29, %31 : vector<16x128xf32>
    %33 = math.sin %30 : vector<16x128xf32>
    %34 = arith.mulf %29, %33 : vector<16x128xf32>
    %c0_22 = arith.constant 0 : index
    %c0_23 = arith.constant 0 : index
    %35 = vector.load %arg6[%c0_22, %c0_23] : memref<64x16xf32, #tpu.memory_space<vmem>>, vector<32x16xf32>
    %c32_24 = arith.constant 32 : index
    %c0_25 = arith.constant 0 : index
    %36 = vector.load %arg6[%c32_24, %c0_25] : memref<64x16xf32, #tpu.memory_space<vmem>>, vector<32x16xf32>
    %c0_26 = arith.constant 0 : index
    %c0_27 = arith.constant 0 : index
    %37 = vector.load %arg7[%c0_26, %c0_27] : memref<256x256xf32, #tpu.memory_space<vmem>>, vector<128x256xf32>
    %c128_28 = arith.constant 128 : index
    %c0_29 = arith.constant 0 : index
    %38 = vector.load %arg7[%c128_28, %c0_29] : memref<256x256xf32, #tpu.memory_space<vmem>>, vector<128x256xf32>
    %cst_30 = arith.constant dense<0.000000e+00> : vector<32x128xf32>
    %39 = tpu.matmul %35, %32, %cst_30 {dimension_numbers = #tpu.dot_dimension_numbers<[1], [0], [0], [1], [0, 0, 1, 1], [], []>} : vector<32x16xf32>, vector<16x128xf32>, vector<32x128xf32> -> vector<32x128xf32>
    %cst_31 = arith.constant dense<0.000000e+00> : vector<32x128xf32>
    %40 = tpu.matmul %36, %34, %cst_31 {dimension_numbers = #tpu.dot_dimension_numbers<[1], [0], [0], [1], [0, 0, 1, 1], [], []>} : vector<32x16xf32>, vector<16x128xf32>, vector<32x128xf32> -> vector<32x128xf32>
    %41 = arith.subf %39, %40 : vector<32x128xf32>
    %cst_32 = arith.constant dense<0.000000e+00> : vector<32x128xf32>
    %42 = tpu.matmul %35, %34, %cst_32 {dimension_numbers = #tpu.dot_dimension_numbers<[1], [0], [0], [1], [0, 0, 1, 1], [], []>} : vector<32x16xf32>, vector<16x128xf32>, vector<32x128xf32> -> vector<32x128xf32>
    %cst_33 = arith.constant dense<0.000000e+00> : vector<32x128xf32>
    %43 = tpu.matmul %36, %32, %cst_33 {dimension_numbers = #tpu.dot_dimension_numbers<[1], [0], [0], [1], [0, 0, 1, 1], [], []>} : vector<32x16xf32>, vector<16x128xf32>, vector<32x128xf32> -> vector<32x128xf32>
    %44 = arith.addf %42, %43 : vector<32x128xf32>
    %cst_34 = arith.constant dense<0.000000e+00> : vector<32x256xf32>
    %45 = tpu.matmul %41, %37, %cst_34 {dimension_numbers = #tpu.dot_dimension_numbers<[1], [0], [0], [1], [0, 0, 1, 1], [], []>} : vector<32x128xf32>, vector<128x256xf32>, vector<32x256xf32> -> vector<32x256xf32>
    %cst_35 = arith.constant dense<0.000000e+00> : vector<32x256xf32>
    %46 = tpu.matmul %44, %38, %cst_35 {dimension_numbers = #tpu.dot_dimension_numbers<[1], [0], [0], [1], [0, 0, 1, 1], [], []>} : vector<32x128xf32>, vector<128x256xf32>, vector<32x256xf32> -> vector<32x256xf32>
    %47 = arith.subf %45, %46 : vector<32x256xf32>
    %cst_36 = arith.constant dense<0.000000e+00> : vector<32x256xf32>
    %48 = tpu.matmul %41, %38, %cst_36 {dimension_numbers = #tpu.dot_dimension_numbers<[1], [0], [0], [1], [0, 0, 1, 1], [], []>} : vector<32x128xf32>, vector<128x256xf32>, vector<32x256xf32> -> vector<32x256xf32>
    %cst_37 = arith.constant dense<0.000000e+00> : vector<32x256xf32>
    %49 = tpu.matmul %44, %37, %cst_37 {dimension_numbers = #tpu.dot_dimension_numbers<[1], [0], [0], [1], [0, 0, 1, 1], [], []>} : vector<32x128xf32>, vector<128x256xf32>, vector<32x256xf32> -> vector<32x256xf32>
    %50 = arith.addf %48, %49 : vector<32x256xf32>
    %51 = arith.mulf %47, %47 : vector<32x256xf32>
    %52 = arith.mulf %50, %50 : vector<32x256xf32>
    %53 = arith.addf %51, %52 : vector<32x256xf32>
    %54 = math.sqrt %53 : vector<32x256xf32>
    %c0_38 = arith.constant 0 : index
    %c0_39 = arith.constant 0 : index
    %55 = vector.load %arg8[%c0_38, %c0_39] : memref<32x256xf32, #tpu.memory_space<vmem>>, vector<32x256xf32>
    tpu.vector_store %arg8[%c0_38, %c0_39], %54 {strides = array<i32>} : memref<32x256xf32, #tpu.memory_space<vmem>>, vector<32x256xf32>,
    return
  }
  func.func @transform_0(%arg0: i32) -> (i32, i32) {
    %c0_i32 = arith.constant 0 : i32
    %c0_i32_0 = arith.constant 0 : i32
    return %arg0, %c0_i32 : i32, i32
  }
  func.func @transform_1(%arg0: i32) -> (i32, i32) {
    %c0_i32 = arith.constant 0 : i32
    %c0_i32_0 = arith.constant 0 : i32
    return %arg0, %c0_i32 : i32, i32
  }
  func.func @transform_2(%arg0: i32) -> (i32, i32) {
    %c0_i32 = arith.constant 0 : i32
    %c0_i32_0 = arith.constant 0 : i32
    %c0_i32_1 = arith.constant 0 : i32
    return %c0_i32, %c0_i32_0 : i32, i32
  }
  func.func @transform_3(%arg0: i32) -> (i32, i32) {
    %c0_i32 = arith.constant 0 : i32
    %c0_i32_0 = arith.constant 0 : i32
    %c0_i32_1 = arith.constant 0 : i32
    return %c0_i32, %c0_i32_0 : i32, i32
  }
  func.func @transform_4(%arg0: i32) -> (i32, i32) {
    %c0_i32 = arith.constant 0 : i32
    %c0_i32_0 = arith.constant 0 : i32
    %c0_i32_1 = arith.constant 0 : i32
    return %c0_i32, %c0_i32_0 : i32, i32
  }
  func.func @transform_5(%arg0: i32) -> (i32, i32) {
    %c0_i32 = arith.constant 0 : i32
    %c0_i32_0 = arith.constant 0 : i32
    %c0_i32_1 = arith.constant 0 : i32
    return %c0_i32, %c0_i32_0 : i32, i32
  }
  func.func @transform_6(%arg0: i32) -> (i32, i32) {
    %c0_i32 = arith.constant 0 : i32
    %c0_i32_0 = arith.constant 0 : i32
    %c0_i32_1 = arith.constant 0 : i32
    return %c0_i32, %c0_i32_0 : i32, i32
  }
  func.func @transform_7(%arg0: i32) -> (i32, i32) {
    %c0_i32 = arith.constant 0 : i32
    %c0_i32_0 = arith.constant 0 : i32
    return %arg0, %c0_i32 : i32, i32
  }
}

</mosaic_0001>

<llo_original>
// kernel: tpu_custom_call.1
$region0: #{tpu_custom_call.1}
  #allocation0 [shape = 'u32[]', space=smem, size = 0x4, offset = 0x4, fixed_abs, tag = 'smem constant byte address 0x4 - core index']
  #allocation1 [shape = 'u32[144,128]{1,0:T(1,128)}', space=vmem, size = 0x12000, scoped, tag = 'internal scratch']
  %s0 = inlined_call_operand.hbm [shape: f32[8,128], index: 0, kind: input, shape index: {}]
  %s1 = inlined_call_operand.hbm [shape: f32[8,128], index: 1, kind: output, shape index: {}]
  %s2 = sld [smem:[#allocation0]]
  $region18: #{tpu_custom_call.1} parent=0
    _
  %s4 = ssub.s32 1, %s2
  %s5 = scalar_select 0, %s4, %s2
  $region1: #{tpu_custom_call.1} parent=0
    #allocation2 [shape = 'u8[4096]{0}', space=vmem, size = 0x1000, scoped, tag = 'input window, operand 0, single buffered']
    #allocation3 [shape = 's32[1]{0}', space=sflag, size = 0x4, scoped, tag = 'scoped memory for tpu_custom_call.1']
    #allocation4 [shape = 's32[1]{0}', space=sflag, size = 0x4, scoped, tag = 'scoped memory for tpu_custom_call.1']
    #allocation5 [shape = 'u8[4096]{0}', space=vmem, size = 0x1000, scoped, tag = 'output window, operand 0, single buffered']
    %6 = vsyncpa [#allocation3], 0
    %7 = vsyncpa [#allocation4], 0
    // Predicated region
    $region2: #{tpu_custom_call.1} parent=1 // pred_check
      _
    $region3: #{tpu_custom_call.1} parent=1 // pred_check_branch
      %9 = sbr.rel (0) target = $region5
    $region4: #{tpu_custom_call.1} parent=1 // pred_region
      %s11 = ssub.s32 128, 128
      %12 = vsyncadd [#allocation3], %s11
      %s14 = sshll.u32 [#allocation2], 4
      %s15 = int_to_ptr.vmem [resolvable:$true] %s14
      %17 = dma.hbm_to_vmem [thread:$0]  %s0, 128, %s15, [#allocation3]
    $region5: #{tpu_custom_call.1} parent=1 // pred_fallthru
      _
    // Predicated region
    $region6: #{tpu_custom_call.1} parent=1 // pred_check
      _
    $region7: #{tpu_custom_call.1} parent=1 // pred_check_branch
      %19 = sbr.rel (0) target = $region9
    $region8: #{tpu_custom_call.1} parent=1 // pred_region
      %20 = dma.done [#allocation3], 128
    $region9: #{tpu_custom_call.1} parent=1 // pred_fallthru
      _
    %v21 = vld [vmem:[#allocation2] sm:$0xff]
    %v22 = vadd.f32 %v21, 1.0
    %v23 = vand.u32 2147483647, %v22
    %v24 = vand.u32 2147483647, %v21
    %v25 = vmin.f32 %v23, %v24
    %v26 = vmax.f32 %v23, %v24
    %v27 = vrcp.pop %v26
    %v28 = vmul.f32 %v25, %v27
    %v29 = vmul.f32 %v28, %v28
    %v30 = vmul.f32 0.002785687, %v29
    %v31 = vadd.f32 %v30, -0.015866
    %v32 = vmul.f32 %v31, %v29
    %v33 = vadd.f32 %v32, 0.04247222
    %v34 = vmul.f32 %v33, %v29
    %v35 = vadd.f32 %v34, -0.074975304
    %v36 = vmul.f32 %v35, %v29
    %v37 = vadd.f32 %v36, 0.1064488
    %v38 = vmul.f32 %v37, %v29
    %v39 = vadd.f32 %v38, -0.14207031
    %v40 = vmul.f32 %v39, %v29
    %v41 = vadd.f32 %v40, 0.19993454
    %v42 = vmul.f32 %v41, %v29
    %v43 = vadd.f32 %v42, -0.33333147
    %v44 = vmul.f32 %v43, %v29
    %v45 = vmul.f32 %v44, %v28
    %v46 = vadd.f32 %v45, %v28
    %vm47 = vcmp.gt.f32.partialorder %v24, %v23
    %v48 = vsub.f32 1.5707964, %v46
    %v49 = vsel %vm47, %v48, %v46
    %vm50 = vcmp.lt.f32.partialorder %v22, 0.0
    %v51 = vsub.f32 3.1415927, %v49
    %v52 = vsel %vm50, %v51, %v49
    %vm53 = vcmp.lt.s32.totalorder %v22, 0
    %v54 = vsel %vm53, 3.1415927, 0.0
    %vm55 = vcmp.eq.f32.partialorder %v21, 0.0
    %v56 = vsel %vm55, %v54, %v52
    %vm57 = vcmp.ne.f32.partialorder %v22, %v22
    %vm58 = vcmp.ne.f32.partialorder %v21, %v21
    %vm59 = vmor %vm57, %vm58
    %v60 = vsel %vm59, nan, %v56
    %vm61 = vcmp.lt.f32.partialorder %v22, 0.0
    %v62 = vsel %vm61, 2.3561945, 0.7853982
    %vm63 = vcmp.eq.s32.totalorder %v23, inf
    %vm64 = vcmp.eq.s32.totalorder %v24, inf
    %vm65 = vmand %vm63, %vm64
    %v66 = vsel %vm65, %v62, %v60
    %v67 = vand.u32 2147483647, %v66
    %v68 = vand.u32 %v21, 2147483648
    %v69 = vor.u32 %v67, %v68
    %70 = vst [vmem:[#allocation5] sm:$0xff] %v69
    // Predicated region
    $region10: #{tpu_custom_call.1} parent=1 // pred_check
      _
    $region11: #{tpu_custom_call.1} parent=1 // pred_check_branch
      %72 = sbr.rel (0) target = $region13
    $region12: #{tpu_custom_call.1} parent=1 // pred_region
      %s74 = ssub.s32 128, 128
      %75 = vsyncadd [#allocation4], %s74
      %s77 = sshll.u32 [#allocation5], 4
      %s78 = int_to_ptr.vmem [resolvable:$true] %s77
      %80 = dma.vmem_to_hbm [thread:$0]  %s78, 128, %s1, [#allocation4]
    $region13: #{tpu_custom_call.1} parent=1 // pred_fallthru
      _
    // Predicated region
    $region14: #{tpu_custom_call.1} parent=1 // pred_check
      _
    $region15: #{tpu_custom_call.1} parent=1 // pred_check_branch
      %82 = sbr.rel (0) target = $region17
    $region16: #{tpu_custom_call.1} parent=1 // pred_region
      %83 = dma.done [#allocation4], 128
    $region17: #{tpu_custom_call.1} parent=1 // pred_fallthru
      _
    %84 = vsyncpa [#allocation3], 1
    %85 = vsyncpa [#allocation4], 1

// kernel: fwd.2
$region0: #{fwd.2}
  #allocation0 [shape = 'u32[]', space=smem, size = 0x4, offset = 0x4, fixed_abs, tag = 'smem constant byte address 0x4 - core index']
  #allocation1 [shape = 'u32[144,128]{1,0:T(1,128)}', space=vmem, size = 0x12000, scoped, tag = 'internal scratch']
  %s0 = inlined_call_operand.vmem [shape: f32[16,128], index: 0, kind: input, shape index: {}]
  %s1 = inlined_call_operand.hbm [shape: f32[32,16], index: 1, kind: input, shape index: {}]
  %s2 = inlined_call_operand.vmem [shape: f32[256,128], index: 2, kind: input, shape index: {}]
  %s3 = inlined_call_operand.vmem [shape: f32[16,128], index: 3, kind: output, shape index: {0}]
  %s4 = inlined_call_operand.vmem [shape: f32[16,128], index: 4, kind: output, shape index: {1}]
  %5 = xla_tuple %s3, %s4
  %s6 = sld [smem:[#allocation0]]
  $region34: #{fwd.2} parent=0
    _
  %s8 = ssub.s32 1, %s6
  %s9 = scalar_select 0, %s8, %s6
  $region1: #{fwd.2} parent=0
    #allocation2 [shape = 'u8[16384]{0}', space=vmem, size = 0x4000, scoped, tag = 'input window, operand 1, single buffered']
    #allocation3 [shape = 's32[1]{0}', space=sflag, size = 0x4, scoped, tag = 'scoped memory for fwd.2']
    %10 = vsyncpa [#allocation3], 0
    // Predicated region
    $region2: #{fwd.2} parent=1 // pred_check
      _
    $region3: #{fwd.2} parent=1 // pred_check_branch
      %12 = sbr.rel (0) target = $region5
    $region4: #{fwd.2} parent=1 // pred_region
      _
    $region5: #{fwd.2} parent=1 // pred_fallthru
      _
    // Predicated region
    $region6: #{fwd.2} parent=1 // pred_check
      _
    $region7: #{fwd.2} parent=1 // pred_check_branch
      %14 = sbr.rel (0) target = $region9
    $region8: #{fwd.2} parent=1 // pred_region
      %s16 = ssub.s32 512, 512
      %17 = vsyncadd [#allocation3], %s16
      %s18 = sshll.u32 [#allocation2], 4
      %s19 = int_to_ptr.vmem [resolvable:$true] %s18
      %24 = dma.hbm_to_vmem [thread:$0]  %s1, 512, %s19, [#allocation3], 128, 128, 8
    $region9: #{fwd.2} parent=1 // pred_fallthru
      _
    // Predicated region
    $region10: #{fwd.2} parent=1 // pred_check
      _
    $region11: #{fwd.2} parent=1 // pred_check_branch
      %26 = sbr.rel (0) target = $region13
    $region12: #{fwd.2} parent=1 // pred_region
      _
    $region13: #{fwd.2} parent=1 // pred_fallthru
      _
    // Predicated region
    $region14: #{fwd.2} parent=1 // pred_check
      _
    $region15: #{fwd.2} parent=1 // pred_check_branch
      %28 = sbr.rel (0) target = $region17
    $region16: #{fwd.2} parent=1 // pred_region
      %29 = dma.done [#allocation3], 512
    $region17: #{fwd.2} parent=1 // pred_fallthru
      _
    %v30 = vld [vmem:[%s0] sm:$0xff]
    %v31 = vld [vmem:[%s0 + $0x8] sm:$0xff]
    %v32 = vld [vmem:[#allocation2] sm:$0xff]
    %v33 = vld [vmem:[#allocation2 + $0x8] sm:$0xff]
    %v34 = vld [vmem:[#allocation2 + $0x10] sm:$0xff]
    %v35 = vld [vmem:[#allocation2 + $0x18] sm:$0xff]
    %v36 = vld [vmem:[%s2] sm:$0xff]
    %v37 = vld [vmem:[%s2 + $0x8] sm:$0xff]
    %v38 = vld [vmem:[%s2 + $0x10] sm:$0xff]
    %v39 = vld [vmem:[%s2 + $0x18] sm:$0xff]
    %v40 = vld [vmem:[%s2 + $0x20] sm:$0xff]
    %v41 = vld [vmem:[%s2 + $0x28] sm:$0xff]
    %v42 = vld [vmem:[%s2 + $0x30] sm:$0xff]
    %v43 = vld [vmem:[%s2 + $0x38] sm:$0xff]
    %v44 = vld [vmem:[%s2 + $0x40] sm:$0xff]
    %v45 = vld [vmem:[%s2 + $0x48] sm:$0xff]
    %v46 = vld [vmem:[%s2 + $0x50] sm:$0xff]
    %v47 = vld [vmem:[%s2 + $0x58] sm:$0xff]
    %v48 = vld [vmem:[%s2 + $0x60] sm:$0xff]
    %v49 = vld [vmem:[%s2 + $0x68] sm:$0xff]
    %v50 = vld [vmem:[%s2 + $0x70] sm:$0xff]
    %v51 = vld [vmem:[%s2 + $0x78] sm:$0xff]
    %v52 = vld [vmem:[%s2 + $0x80] sm:$0xff]
    %v53 = vld [vmem:[%s2 + $0x88] sm:$0xff]
    %v54 = vld [vmem:[%s2 + $0x90] sm:$0xff]
    %v55 = vld [vmem:[%s2 + $0x98] sm:$0xff]
    %v56 = vld [vmem:[%s2 + $0xa0] sm:$0xff]
    %v57 = vld [vmem:[%s2 + $0xa8] sm:$0xff]
    %v58 = vld [vmem:[%s2 + $0xb0] sm:$0xff]
    %v59 = vld [vmem:[%s2 + $0xb8] sm:$0xff]
    %v60 = vld [vmem:[%s2 + $0xc0] sm:$0xff]
    %v61 = vld [vmem:[%s2 + $0xc8] sm:$0xff]
    %v62 = vld [vmem:[%s2 + $0xd0] sm:$0xff]
    %v63 = vld [vmem:[%s2 + $0xd8] sm:$0xff]
    %v64 = vld [vmem:[%s2 + $0xe0] sm:$0xff]
    %v65 = vld [vmem:[%s2 + $0xe8] sm:$0xff]
    %v66 = vld [vmem:[%s2 + $0xf0] sm:$0xff]
    %v67 = vld [vmem:[%s2 + $0xf8] sm:$0xff]
    %vm68 = vcmask 130048
    %v70 = vsel %vm68, %v32, 0
    %v73 = vsel %vm68, %v33, 0
    %75 = vmatprep.subr.mxu0 0.0
    %v76 = vand.u32 %v30, 4294901760
    %77 = vmatpush1.msra.mxu0 %v76
    %78 = vmatprep.subr.mxu0 0.0
    %v79 = vand.u32 %v31, 4294901760
    %80 = vmatpush1.msra.mxu0 %v79
    %81 = vmatprep.subr.mxu0 0.0
    %82 = vmatpush1.msra.mxu0 0.0
    %83 = vmatprep.subr.mxu0 0.0
    %84 = vmatpush1.msra.mxu0 0.0
    %85 = vmatprep.subr.mxu0 0.0
    %86 = vmatpush1.msra.mxu0 0.0
    %87 = vmatprep.subr.mxu0 0.0
    %88 = vmatpush1.msra.mxu0 0.0
    %89 = vmatprep.subr.mxu0 0.0
    %90 = vmatpush1.msra.mxu0 0.0
    %91 = vmatprep.subr.mxu0 0.0
    %92 = vmatpush1.msra.mxu0 0.0
    %93 = vmatprep.subr.mxu0 0.0
    %94 = vmatpush1.msra.mxu0 0.0
    %95 = vmatprep.subr.mxu0 0.0
    %96 = vmatpush1.msra.mxu0 0.0
    %97 = vmatprep.subr.mxu0 0.0
    %98 = vmatpush1.msra.mxu0 0.0
    %99 = vmatprep.subr.mxu0 0.0
    %100 = vmatpush1.msra.mxu0 0.0
    %101 = vmatprep.subr.mxu0 0.0
    %102 = vmatpush1.msra.mxu0 0.0
    %103 = vmatprep.subr.mxu0 0.0
    %104 = vmatpush1.msra.mxu0 0.0
    %105 = vmatprep.subr.mxu0 0.0
    %106 = vmatpush1.msra.mxu0 0.0
    %107 = vmatprep.subr.mxu0 0.0
    %108 = vmatpush1.msra.mxu0 0.0
    %109 = vmatprep.subr.mxu0 0.0
    %110 = vmatpush1.msra.mxu0 0.0
    %111 = vmatprep.subr.mxu0 0.0
    %112 = vmatpush1.msra.mxu0 0.0
    %113 = vmatprep.subr.mxu0 0.0
    %114 = vmatpush1.msra.mxu0 0.0
    %115 = vmatprep.subr.mxu0 0.0
    %116 = vmatpush1.msra.mxu0 0.0
    %117 = vmatprep.subr.mxu0 0.0
    %118 = vmatpush1.msra.mxu0 0.0
    %119 = vmatprep.subr.mxu0 0.0
    %120 = vmatpush1.msra.mxu0 0.0
    %121 = vmatprep.subr.mxu0 0.0
    %122 = vmatpush1.msra.mxu0 0.0
    %123 = vmatprep.subr.mxu0 0.0
    %124 = vmatpush1.msra.mxu0 0.0
    %125 = vmatprep.subr.mxu0 0.0
    %126 = vmatpush1.msra.mxu0 0.0
    %127 = vmatprep.subr.mxu0 0.0
    %128 = vmatpush1.msra.mxu0 0.0
    %129 = vmatprep.subr.mxu0 0.0
    %130 = vmatpush1.msra.mxu0 0.0
    %131 = vmatprep.subr.mxu0 0.0
    %132 = vmatpush1.msra.mxu0 0.0
    %133 = vmatprep.subr.mxu0 0.0
    %134 = vmatpush1.msra.mxu0 0.0
    %135 = vmatprep.subr.mxu0 0.0
    %136 = vmatpush1.msra.mxu0 0.0
    %137 = vmatprep.subr.mxu0 0.0
    %138 = vmatpush1.msra.mxu0 0.0
    %139 = vmatprep.subr.mxu0 0.0
    %140 = vmatpush1.msra.mxu0 0.0
    %141 = vmatprep.mubr.f32.mxu0 0.0
    %v142 = vand.u32 %v70, 4294901760
    %v143 = vsub.f32 %v70, %v142
    %v144 = vand.u32 %v143, 4294901760
    %v145 = vsub.f32 %v143, %v144
    %v146 = vand.u32 %v145, 4294901760
    %147 = vmatmul.mubr.f32.gmra.mrb[0].mxu0 %v146
    %v148 = vpop.f32.mrb[0].mxu0
    %v149 = vadd.f32 0.0, %v148
    %v150 = vpop.f32.mrb[0].mxu0
    %151 = vmatprep.mubr.f32.mxu0 0.0
    %v152 = vand.u32 %v73, 4294901760
    %v153 = vsub.f32 %v73, %v152
    %v154 = vand.u32 %v153, 4294901760
    %v155 = vsub.f32 %v153, %v154
    %v156 = vand.u32 %v155, 4294901760
    %157 = vmatmul.mubr.f32.gmra.mrb[0].mxu0 %v156
    %v158 = vpop.f32.mrb[0].mxu0
    %v159 = vadd.f32 0.0, %v158
    %v160 = vpop.f32.mrb[0].mxu0
    %161 = vdwg.mxu0
    %162 = vmatprep.subr.mxu0 0.0
    %v163 = vand.u32 %v30, 4294901760
    %v164 = vsub.f32 %v30, %v163
    %v165 = vand.u32 %v164, 4294901760
    %v166 = vsub.f32 %v164, %v165
    %v167 = vand.u32 %v166, 4294901760
    %168 = vmatpush1.msra.mxu0 %v167
    %169 = vmatprep.subr.mxu0 0.0
    %v170 = vand.u32 %v31, 4294901760
    %v171 = vsub.f32 %v31, %v170
    %v172 = vand.u32 %v171, 4294901760
    %v173 = vsub.f32 %v171, %v172
    %v174 = vand.u32 %v173, 4294901760
    %175 = vmatpush1.msra.mxu0 %v174
    %176 = vmatprep.subr.mxu0 0.0
    %177 = vmatpush1.msra.mxu0 0.0
    %178 = vmatprep.subr.mxu0 0.0
    %179 = vmatpush1.msra.mxu0 0.0
    %180 = vmatprep.subr.mxu0 0.0
    %181 = vmatpush1.msra.mxu0 0.0
    %182 = vmatprep.subr.mxu0 0.0
    %183 = vmatpush1.msra.mxu0 0.0
    %184 = vmatprep.subr.mxu0 0.0
    %185 = vmatpush1.msra.mxu0 0.0
    %186 = vmatprep.subr.mxu0 0.0
    %187 = vmatpush1.msra.mxu0 0.0
    %188 = vmatprep.subr.mxu0 0.0
    %189 = vmatpush1.msra.mxu0 0.0
    %190 = vmatprep.subr.mxu0 0.0
    %191 = vmatpush1.msra.mxu0 0.0
    %192 = vmatprep.subr.mxu0 0.0
    %193 = vmatpush1.msra.mxu0 0.0
    %194 = vmatprep.subr.mxu0 0.0
    %195 = vmatpush1.msra.mxu0 0.0
    %196 = vmatprep.subr.mxu0 0.0
    %197 = vmatpush1.msra.mxu0 0.0
    %198 = vmatprep.subr.mxu0 0.0
    %199 = vmatpush1.msra.mxu0 0.0
    %200 = vmatprep.subr.mxu0 0.0
    %201 = vmatpush1.msra.mxu0 0.0
    %202 = vmatprep.subr.mxu0 0.0
    %203 = vmatpush1.msra.mxu0 0.0
    %204 = vmatprep.subr.mxu0 0.0
    %205 = vmatpush1.msra.mxu0 0.0
    %206 = vmatprep.subr.mxu0 0.0
    %207 = vmatpush1.msra.mxu0 0.0
    %208 = vmatprep.subr.mxu0 0.0
    %209 = vmatpush1.msra.mxu0 0.0
    %210 = vmatprep.subr.mxu0 0.0
    %211 = vmatpush1.msra.mxu0 0.0
    %212 = vmatprep.subr.mxu0 0.0
    %213 = vmatpush1.msra.mxu0 0.0
    %214 = vmatprep.subr.mxu0 0.0
    %215 = vmatpush1.msra.mxu0 0.0
    %216 = vmatprep.subr.mxu0 0.0
    %217 = vmatpush1.msra.mxu0 0.0
    %218 = vmatprep.subr.mxu0 0.0
    %219 = vmatpush1.msra.mxu0 0.0
    %220 = vmatprep.subr.mxu0 0.0
    %221 = vmatpush1.msra.mxu0 0.0
    %222 = vmatprep.subr.mxu0 0.0
    %223 = vmatpush1.msra.mxu0 0.0
    %224 = vmatprep.subr.mxu0 0.0
    %225 = vmatpush1.msra.mxu0 0.0
    %226 = vmatprep.subr.mxu0 0.0
    %227 = vmatpush1.msra.mxu0 0.0
    %228 = vmatprep.subr.mxu0 0.0
    %229 = vmatpush1.msra.mxu0 0.0
    %230 = vmatprep.subr.mxu0 0.0
    %231 = vmatpush1.msra.mxu0 0.0
    %232 = vmatprep.subr.mxu0 0.0
    %233 = vmatpush1.msra.mxu0 0.0
    %234 = vmatprep.subr.mxu0 0.0
    %235 = vmatpush1.msra.mxu0 0.0
    %236 = vmatprep.mubr.f32.mxu0 0.0
    %v237 = vand.u32 %v70, 4294901760
    %238 = vmatmul.mubr.f32.gmra.mrb[0].mxu0 %v237
    %v239 = vpop.f32.mrb[0].mxu0
    %v240 = vadd.f32 %v149, %v239
    %v241 = vpop.f32.mrb[0].mxu0
    %242 = vmatprep.mubr.f32.mxu0 0.0
    %v243 = vand.u32 %v73, 4294901760
    %244 = vmatmul.mubr.f32.gmra.mrb[0].mxu0 %v243
    %v245 = vpop.f32.mrb[0].mxu0
    %v246 = vadd.f32 %v159, %v245
    %v247 = vpop.f32.mrb[0].mxu0
    %248 = vdwg.mxu0
    %249 = vmatprep.subr.mxu0 0.0
    %v250 = vand.u32 %v30, 4294901760
    %v251 = vsub.f32 %v30, %v250
    %252 = vmatpush1.msra.mxu0 %v251
    %253 = vmatprep.subr.mxu0 0.0
    %v254 = vand.u32 %v31, 4294901760
    %v255 = vsub.f32 %v31, %v254
    %256 = vmatpush1.msra.mxu0 %v255
    %257 = vmatprep.subr.mxu0 0.0
    %258 = vmatpush1.msra.mxu0 0.0
    %259 = vmatprep.subr.mxu0 0.0
    %260 = vmatpush1.msra.mxu0 0.0
    %261 = vmatprep.subr.mxu0 0.0
    %262 = vmatpush1.msra.mxu0 0.0
    %263 = vmatprep.subr.mxu0 0.0
    %264 = vmatpush1.msra.mxu0 0.0
    %265 = vmatprep.subr.mxu0 0.0
    %266 = vmatpush1.msra.mxu0 0.0
    %267 = vmatprep.subr.mxu0 0.0
    %268 = vmatpush1.msra.mxu0 0.0
    %269 = vmatprep.subr.mxu0 0.0
    %270 = vmatpush1.msra.mxu0 0.0
    %271 = vmatprep.subr.mxu0 0.0
    %272 = vmatpush1.msra.mxu0 0.0
    %273 = vmatprep.subr.mxu0 0.0
    %274 = vmatpush1.msra.mxu0 0.0
    %275 = vmatprep.subr.mxu0 0.0
    %276 = vmatpush1.msra.mxu0 0.0
    %277 = vmatprep.subr.mxu0 0.0
    %278 = vmatpush1.msra.mxu0 0.0
    %279 = vmatprep.subr.mxu0 0.0
    %280 = vmatpush1.msra.mxu0 0.0
    %281 = vmatprep.subr.mxu0 0.0
    %282 = vmatpush1.msra.mxu0 0.0
    %283 = vmatprep.subr.mxu0 0.0
    %284 = vmatpush1.msra.mxu0 0.0
    %285 = vmatprep.subr.mxu0 0.0
    %286 = vmatpush1.msra.mxu0 0.0
    %287 = vmatprep.subr.mxu0 0.0
    %288 = vmatpush1.msra.mxu0 0.0
    %289 = vmatprep.subr.mxu0 0.0
    %290 = vmatpush1.msra.mxu0 0.0
    %291 = vmatprep.subr.mxu0 0.0
    %292 = vmatpush1.msra.mxu0 0.0
    %293 = vmatprep.subr.mxu0 0.0
    %294 = vmatpush1.msra.mxu0 0.0
    %295 = vmatprep.subr.mxu0 0.0
    %296 = vmatpush1.msra.mxu0 0.0
    %297 = vmatprep.subr.mxu0 0.0
    %298 = vmatpush1.msra.mxu0 0.0
    %299 = vmatprep.subr.mxu0 0.0
    %300 = vmatpush1.msra.mxu0 0.0
    %301 = vmatprep.subr.mxu0 0.0
    %302 = vmatpush1.msra.mxu0 0.0
    %303 = vmatprep.subr.mxu0 0.0
    %304 = vmatpush1.msra.mxu0 0.0
    %305 = vmatprep.subr.mxu0 0.0
    %306 = vmatpush1.msra.mxu0 0.0
    %307 = vmatprep.subr.mxu0 0.0
    %308 = vmatpush1.msra.mxu0 0.0
    %309 = vmatprep.subr.mxu0 0.0
    %310 = vmatpush1.msra.mxu0 0.0
    %311 = vmatprep.subr.mxu0 0.0
    %312 = vmatpush1.msra.mxu0 0.0
    %313 = vmatprep.subr.mxu0 0.0
    %314 = vmatpush1.msra.mxu0 0.0
    %315 = vmatprep.subr.mxu0 0.0
    %316 = vmatpush1.msra.mxu0 0.0
    %317 = vmatprep.mubr.f32.mxu0 0.0
    %v318 = vand.u32 %v70, 4294901760
    %v319 = vsub.f32 %v70, %v318
    %320 = vmatmul.mubr.f32.gmra.mrb[0].mxu0 %v319
    %v321 = vpop.f32.mrb[0].mxu0
    %v322 = vadd.f32 %v240, %v321
    %v323 = vpop.f32.mrb[0].mxu0
    %324 = vmatprep.mubr.f32.mxu0 0.0
    %v325 = vand.u32 %v73, 4294901760
    %v326 = vsub.f32 %v73, %v325
    %327 = vmatmul.mubr.f32.gmra.mrb[0].mxu0 %v326
    %v328 = vpop.f32.mrb[0].mxu0
    %v329 = vadd.f32 %v246, %v328
    %v330 = vpop.f32.mrb[0].mxu0
    %331 = vdwg.mxu0
    %332 = vmatprep.subr.mxu0 0.0
    %v333 = vand.u32 %v30, 4294901760
    %334 = vmatpush1.msra.mxu0 %v333
    %335 = vmatprep.subr.mxu0 0.0
    %v336 = vand.u32 %v31, 4294901760
    %337 = vmatpush1.msra.mxu0 %v336
    %338 = vmatprep.subr.mxu0 0.0
    %339 = vmatpush1.msra.mxu0 0.0
    %340 = vmatprep.subr.mxu0 0.0
    %341 = vmatpush1.msra.mxu0 0.0
    %342 = vmatprep.subr.mxu0 0.0
    %343 = vmatpush1.msra.mxu0 0.0
    %344 = vmatprep.subr.mxu0 0.0
    %345 = vmatpush1.msra.mxu0 0.0
    %346 = vmatprep.subr.mxu0 0.0
    %347 = vmatpush1.msra.mxu0 0.0
    %348 = vmatprep.subr.mxu0 0.0
    %349 = vmatpush1.msra.mxu0 0.0
    %350 = vmatprep.subr.mxu0 0.0
    %351 = vmatpush1.msra.mxu0 0.0
    %352 = vmatprep.subr.mxu0 0.0
    %353 = vmatpush1.msra.mxu0 0.0
    %354 = vmatprep.subr.mxu0 0.0
    %355 = vmatpush1.msra.mxu0 0.0
    %356 = vmatprep.subr.mxu0 0.0
    %357 = vmatpush1.msra.mxu0 0.0
    %358 = vmatprep.subr.mxu0 0.0
    %359 = vmatpush1.msra.mxu0 0.0
    %360 = vmatprep.subr.mxu0 0.0
    %361 = vmatpush1.msra.mxu0 0.0
    %362 = vmatprep.subr.mxu0 0.0
    %363 = vmatpush1.msra.mxu0 0.0
    %364 = vmatprep.subr.mxu0 0.0
    %365 = vmatpush1.msra.mxu0 0.0
    %366 = vmatprep.subr.mxu0 0.0
    %367 = vmatpush1.msra.mxu0 0.0
    %368 = vmatprep.subr.mxu0 0.0
    %369 = vmatpush1.msra.mxu0 0.0
    %370 = vmatprep.subr.mxu0 0.0
    %371 = vmatpush1.msra.mxu0 0.0
    %372 = vmatprep.subr.mxu0 0.0
    %373 = vmatpush1.msra.mxu0 0.0
    %374 = vmatprep.subr.mxu0 0.0
    %375 = vmatpush1.msra.mxu0 0.0
    %376 = vmatprep.subr.mxu0 0.0
    %377 = vmatpush1.msra.mxu0 0.0
    %378 = vmatprep.subr.mxu0 0.0
    %379 = vmatpush1.msra.mxu0 0.0
    %380 = vmatprep.subr.mxu0 0.0
    %381 = vmatpush1.msra.mxu0 0.0
    %382 = vmatprep.subr.mxu0 0.0
    %383 = vmatpush1.msra.mxu0 0.0
    %384 = vmatprep.subr.mxu0 0.0
    %385 = vmatpush1.msra.mxu0 0.0
    %386 = vmatprep.subr.mxu0 0.0
    %387 = vmatpush1.msra.mxu0 0.0
    %388 = vmatprep.subr.mxu0 0.0
    %389 = vmatpush1.msra.mxu0 0.0
    %390 = vmatprep.subr.mxu0 0.0
    %391 = vmatpush1.msra.mxu0 0.0
    %392 = vmatprep.subr.mxu0 0.0
    %393 = vmatpush1.msra.mxu0 0.0
    %394 = vmatprep.subr.mxu0 0.0
    %395 = vmatpush1.msra.mxu0 0.0
    %396 = vmatprep.subr.mxu0 0.0
    %397 = vmatpush1.msra.mxu0 0.0
    %398 = vmatprep.mubr.f32.mxu0 0.0
    %v399 = vand.u32 %v70, 4294901760
    %v400 = vsub.f32 %v70, %v399
    %v401 = vand.u32 %v400, 4294901760
    %402 = vmatmul.mubr.f32.gmra.mrb[0].mxu0 %v401
    %v403 = vpop.f32.mrb[0].mxu0
    %v404 = vadd.f32 %v322, %v403
    %v405 = vpop.f32.mrb[0].mxu0
    %406 = vmatprep.mubr.f32.mxu0 0.0
    %v407 = vand.u32 %v73, 4294901760
    %v408 = vsub.f32 %v73, %v407
    %v409 = vand.u32 %v408, 4294901760
    %410 = vmatmul.mubr.f32.gmra.mrb[0].mxu0 %v409
    %v411 = vpop.f32.mrb[0].mxu0
    %v412 = vadd.f32 %v329, %v411
    %v413 = vpop.f32.mrb[0].mxu0
    %414 = vdwg.mxu0
    %415 = vmatprep.subr.mxu0 0.0
    %v416 = vand.u32 %v30, 4294901760
    %v417 = vsub.f32 %v30, %v416
    %v418 = vand.u32 %v417, 4294901760
    %419 = vmatpush1.msra.mxu0 %v418
    %420 = vmatprep.subr.mxu0 0.0
    %v421 = vand.u32 %v31, 4294901760
    %v422 = vsub.f32 %v31, %v421
    %v423 = vand.u32 %v422, 4294901760
    %424 = vmatpush1.msra.mxu0 %v423
    %425 = vmatprep.subr.mxu0 0.0
    %426 = vmatpush1.msra.mxu0 0.0
    %427 = vmatprep.subr.mxu0 0.0
    %428 = vmatpush1.msra.mxu0 0.0
    %429 = vmatprep.subr.mxu0 0.0
    %430 = vmatpush1.msra.mxu0 0.0
    %431 = vmatprep.subr.mxu0 0.0
    %432 = vmatpush1.msra.mxu0 0.0
    %433 = vmatprep.subr.mxu0 0.0
    %434 = vmatpush1.msra.mxu0 0.0
    %435 = vmatprep.subr.mxu0 0.0
    %436 = vmatpush1.msra.mxu0 0.0
    %437 = vmatprep.subr.mxu0 0.0
    %438 = vmatpush1.msra.mxu0 0.0
    %439 = vmatprep.subr.mxu0 0.0
    %440 = vmatpush1.msra.mxu0 0.0
    %441 = vmatprep.subr.mxu0 0.0
    %442 = vmatpush1.msra.mxu0 0.0
    %443 = vmatprep.subr.mxu0 0.0
    %444 = vmatpush1.msra.mxu0 0.0
    %445 = vmatprep.subr.mxu0 0.0
    %446 = vmatpush1.msra.mxu0 0.0
    %447 = vmatprep.subr.mxu0 0.0
    %448 = vmatpush1.msra.mxu0 0.0
    %449 = vmatprep.subr.mxu0 0.0
    %450 = vmatpush1.msra.mxu0 0.0
    %451 = vmatprep.subr.mxu0 0.0
    %452 = vmatpush1.msra.mxu0 0.0
    %453 = vmatprep.subr.mxu0 0.0
    %454 = vmatpush1.msra.mxu0 0.0
    %455 = vmatprep.subr.mxu0 0.0
    %456 = vmatpush1.msra.mxu0 0.0
    %457 = vmatprep.subr.mxu0 0.0
    %458 = vmatpush1.msra.mxu0 0.0
    %459 = vmatprep.subr.mxu0 0.0
    %460 = vmatpush1.msra.mxu0 0.0
    %461 = vmatprep.subr.mxu0 0.0
    %462 = vmatpush1.msra.mxu0 0.0
    %463 = vmatprep.subr.mxu0 0.0
    %464 = vmatpush1.msra.mxu0 0.0
    %465 = vmatprep.subr.mxu0 0.0
    %466 = vmatpush1.msra.mxu0 0.0
    %467 = vmatprep.subr.mxu0 0.0
    %468 = vmatpush1.msra.mxu0 0.0
    %469 = vmatprep.subr.mxu0 0.0
    %470 = vmatpush1.msra.mxu0 0.0
    %471 = vmatprep.subr.mxu0 0.0
    %472 = vmatpush1.msra.mxu0 0.0
    %473 = vmatprep.subr.mxu0 0.0
    %474 = vmatpush1.msra.mxu0 0.0
    %475 = vmatprep.subr.mxu0 0.0
    %476 = vmatpush1.msra.mxu0 0.0
    %477 = vmatprep.subr.mxu0 0.0
    %478 = vmatpush1.msra.mxu0 0.0
    %479 = vmatprep.subr.mxu0 0.0
    %480 = vmatpush1.msra.mxu0 0.0
    %481 = vmatprep.subr.mxu0 0.0
    %482 = vmatpush1.msra.mxu0 0.0
    %483 = vmatprep.subr.mxu0 0.0
    %484 = vmatpush1.msra.mxu0 0.0
    %485 = vmatprep.mubr.f32.mxu0 0.0
    %v486 = vand.u32 %v70, 4294901760
    %487 = vmatmul.mubr.f32.gmra.mrb[0].mxu0 %v486
    %v488 = vpop.f32.mrb[0].mxu0
    %v489 = vadd.f32 %v404, %v488
    %v490 = vpop.f32.mrb[0].mxu0
    %491 = vmatprep.mubr.f32.mxu0 0.0
    %v492 = vand.u32 %v73, 4294901760
    %493 = vmatmul.mubr.f32.gmra.mrb[0].mxu0 %v492
    %v494 = vpop.f32.mrb[0].mxu0
    %v495 = vadd.f32 %v412, %v494
    %v496 = vpop.f32.mrb[0].mxu0
    %497 = vdwg.mxu0
    %498 = vmatprep.subr.mxu0 0.0
    %v499 = vand.u32 %v30, 4294901760
    %500 = vmatpush1.msra.mxu0 %v499
    %501 = vmatprep.subr.mxu0 0.0
    %v502 = vand.u32 %v31, 4294901760
    %503 = vmatpush1.msra.mxu0 %v502
    %504 = vmatprep.subr.mxu0 0.0
    %505 = vmatpush1.msra.mxu0 0.0
    %506 = vmatprep.subr.mxu0 0.0
    %507 = vmatpush1.msra.mxu0 0.0
    %508 = vmatprep.subr.mxu0 0.0
    %509 = vmatpush1.msra.mxu0 0.0
    %510 = vmatprep.subr.mxu0 0.0
    %511 = vmatpush1.msra.mxu0 0.0
    %512 = vmatprep.subr.mxu0 0.0
    %513 = vmatpush1.msra.mxu0 0.0
    %514 = vmatprep.subr.mxu0 0.0
    %515 = vmatpush1.msra.mxu0 0.0
    %516 = vmatprep.subr.mxu0 0.0
    %517 = vmatpush1.msra.mxu0 0.0
    %518 = vmatprep.subr.mxu0 0.0
    %519 = vmatpush1.msra.mxu0 0.0
    %520 = vmatprep.subr.mxu0 0.0
    %521 = vmatpush1.msra.mxu0 0.0
    %522 = vmatprep.subr.mxu0 0.0
    %523 = vmatpush1.msra.mxu0 0.0
    %524 = vmatprep.subr.mxu0 0.0
    %525 = vmatpush1.msra.mxu0 0.0
    %526 = vmatprep.subr.mxu0 0.0
    %527 = vmatpush1.msra.mxu0 0.0
    %528 = vmatprep.subr.mxu0 0.0
    %529 = vmatpush1.msra.mxu0 0.0
    %530 = vmatprep.subr.mxu0 0.0
    %531 = vmatpush1.msra.mxu0 0.0
    %532 = vmatprep.subr.mxu0 0.0
    %533 = vmatpush1.msra.mxu0 0.0
    %534 = vmatprep.subr.mxu0 0.0
    %535 = vmatpush1.msra.mxu0 0.0
    %536 = vmatprep.subr.mxu0 0.0
    %537 = vmatpush1.msra.mxu0 0.0
    %538 = vmatprep.subr.mxu0 0.0
    %539 = vmatpush1.msra.mxu0 0.0
    %540 = vmatprep.subr.mxu0 0.0
    %541 = vmatpush1.msra.mxu0 0.0
    %542 = vmatprep.subr.mxu0 0.0
    %543 = vmatpush1.msra.mxu0 0.0
    %544 = vmatprep.subr.mxu0 0.0
    %545 = vmatpush1.msra.mxu0 0.0
    %546 = vmatprep.subr.mxu0 0.0
    %547 = vmatpush1.msra.mxu0 0.0
    %548 = vmatprep.subr.mxu0 0.0
    %549 = vmatpush1.msra.mxu0 0.0
    %550 = vmatprep.subr.mxu0 0.0
    %551 = vmatpush1.msra.mxu0 0.0
    %552 = vmatprep.subr.mxu0 0.0
    %553 = vmatpush1.msra.mxu0 0.0
    %554 = vmatprep.subr.mxu0 0.0
    %555 = vmatpush1.msra.mxu0 0.0
    %556 = vmatprep.subr.mxu0 0.0
    %557 = vmatpush1.msra.mxu0 0.0
    %558 = vmatprep.subr.mxu0 0.0
    %559 = vmatpush1.msra.mxu0 0.0
    %560 = vmatprep.subr.mxu0 0.0
    %561 = vmatpush1.msra.mxu0 0.0
    %562 = vmatprep.subr.mxu0 0.0
    %563 = vmatpush1.msra.mxu0 0.0
    %564 = vmatprep.mubr.f32.mxu0 0.0
    %v565 = vand.u32 %v70, 4294901760
    %566 = vmatmul.mubr.f32.gmra.mrb[0].mxu0 %v565
    %v567 = vpop.f32.mrb[0].mxu0
    %v568 = vadd.f32 %v489, %v567
    %v569 = vpop.f32.mrb[0].mxu0
    %570 = vmatprep.mubr.f32.mxu0 0.0
    %v571 = vand.u32 %v73, 4294901760
    %572 = vmatmul.mubr.f32.gmra.mrb[0].mxu0 %v571
    %v573 = vpop.f32.mrb[0].mxu0
    %v574 = vadd.f32 %v495, %v573
    %v575 = vpop.f32.mrb[0].mxu0
    %576 = vdwg.mxu0
    %v578 = vsel %vm68, %v34, 0
    %v581 = vsel %vm68, %v35, 0
    %583 = vmatprep.subr.mxu0 0.0
    %v584 = vand.u32 %v30, 4294901760
    %585 = vmatpush1.msra.mxu0 %v584
    %586 = vmatprep.subr.mxu0 0.0
    %v587 = vand.u32 %v31, 4294901760
    %588 = vmatpush1.msra.mxu0 %v587
    %589 = vmatprep.subr.mxu0 0.0
    %590 = vmatpush1.msra.mxu0 0.0
    %591 = vmatprep.subr.mxu0 0.0
    %592 = vmatpush1.msra.mxu0 0.0
    %593 = vmatprep.subr.mxu0 0.0
    %594 = vmatpush1.msra.mxu0 0.0
    %595 = vmatprep.subr.mxu0 0.0
    %596 = vmatpush1.msra.mxu0 0.0
    %597 = vmatprep.subr.mxu0 0.0
    %598 = vmatpush1.msra.mxu0 0.0
    %599 = vmatprep.subr.mxu0 0.0
    %600 = vmatpush1.msra.mxu0 0.0
    %601 = vmatprep.subr.mxu0 0.0
    %602 = vmatpush1.msra.mxu0 0.0
    %603 = vmatprep.subr.mxu0 0.0
    %604 = vmatpush1.msra.mxu0 0.0
    %605 = vmatprep.subr.mxu0 0.0
    %606 = vmatpush1.msra.mxu0 0.0
    %607 = vmatprep.subr.mxu0 0.0
    %608 = vmatpush1.msra.mxu0 0.0
    %609 = vmatprep.subr.mxu0 0.0
    %610 = vmatpush1.msra.mxu0 0.0
    %611 = vmatprep.subr.mxu0 0.0
    %612 = vmatpush1.msra.mxu0 0.0
    %613 = vmatprep.subr.mxu0 0.0
    %614 = vmatpush1.msra.mxu0 0.0
    %615 = vmatprep.subr.mxu0 0.0
    %616 = vmatpush1.msra.mxu0 0.0
    %617 = vmatprep.subr.mxu0 0.0
    %618 = vmatpush1.msra.mxu0 0.0
    %619 = vmatprep.subr.mxu0 0.0
    %620 = vmatpush1.msra.mxu0 0.0
    %621 = vmatprep.subr.mxu0 0.0
    %622 = vmatpush1.msra.mxu0 0.0
    %623 = vmatprep.subr.mxu0 0.0
    %624 = vmatpush1.msra.mxu0 0.0
    %625 = vmatprep.subr.mxu0 0.0
    %626 = vmatpush1.msra.mxu0 0.0
    %627 = vmatprep.subr.mxu0 0.0
    %628 = vmatpush1.msra.mxu0 0.0
    %629 = vmatprep.subr.mxu0 0.0
    %630 = vmatpush1.msra.mxu0 0.0
    %631 = vmatprep.subr.mxu0 0.0
    %632 = vmatpush1.msra.mxu0 0.0
    %633 = vmatprep.subr.mxu0 0.0
    %634 = vmatpush1.msra.mxu0 0.0
    %635 = vmatprep.subr.mxu0 0.0
    %636 = vmatpush1.msra.mxu0 0.0
    %637 = vmatprep.subr.mxu0 0.0
    %638 = vmatpush1.msra.mxu0 0.0
    %639 = vmatprep.subr.mxu0 0.0
    %640 = vmatpush1.msra.mxu0 0.0
    %641 = vmatprep.subr.mxu0 0.0
    %642 = vmatpush1.msra.mxu0 0.0
    %643 = vmatprep.subr.mxu0 0.0
    %644 = vmatpush1.msra.mxu0 0.0
    %645 = vmatprep.subr.mxu0 0.0
    %646 = vmatpush1.msra.mxu0 0.0
    %647 = vmatprep.subr.mxu0 0.0
    %648 = vmatpush1.msra.mxu0 0.0
    %649 = vmatprep.mubr.f32.mxu0 0.0
    %v650 = vand.u32 %v578, 4294901760
    %v651 = vsub.f32 %v578, %v650
    %v652 = vand.u32 %v651, 4294901760
    %v653 = vsub.f32 %v651, %v652
    %v654 = vand.u32 %v653, 4294901760
    %655 = vmatmul.mubr.f32.gmra.mrb[0].mxu0 %v654
    %v656 = vpop.f32.mrb[0].mxu0
    %v657 = vadd.f32 0.0, %v656
    %v658 = vpop.f32.mrb[0].mxu0
    %659 = vmatprep.mubr.f32.mxu0 0.0
    %v660 = vand.u32 %v581, 4294901760
    %v661 = vsub.f32 %v581, %v660
    %v662 = vand.u32 %v661, 4294901760
    %v663 = vsub.f32 %v661, %v662
    %v664 = vand.u32 %v663, 4294901760
    %665 = vmatmul.mubr.f32.gmra.mrb[0].mxu0 %v664
    %v666 = vpop.f32.mrb[0].mxu0
    %v667 = vadd.f32 0.0, %v666
    %v668 = vpop.f32.mrb[0].mxu0
    %669 = vdwg.mxu0
    %670 = vmatprep.subr.mxu0 0.0
    %v671 = vand.u32 %v30, 4294901760
    %v672 = vsub.f32 %v30, %v671
    %v673 = vand.u32 %v672, 4294901760
    %v674 = vsub.f32 %v672, %v673
    %v675 = vand.u32 %v674, 4294901760
    %676 = vmatpush1.msra.mxu0 %v675
    %677 = vmatprep.subr.mxu0 0.0
    %v678 = vand.u32 %v31, 4294901760
    %v679 = vsub.f32 %v31, %v678
    %v680 = vand.u32 %v679, 4294901760
    %v681 = vsub.f32 %v679, %v680
    %v682 = vand.u32 %v681, 4294901760
    %683 = vmatpush1.msra.mxu0 %v682
    %684 = vmatprep.subr.mxu0 0.0
    %685 = vmatpush1.msra.mxu0 0.0
    %686 = vmatprep.subr.mxu0 0.0
    %687 = vmatpush1.msra.mxu0 0.0
    %688 = vmatprep.subr.mxu0 0.0
    %689 = vmatpush1.msra.mxu0 0.0
    %690 = vmatprep.subr.mxu0 0.0
    %691 = vmatpush1.msra.mxu0 0.0
    %692 = vmatprep.subr.mxu0 0.0
    %693 = vmatpush1.msra.mxu0 0.0
    %694 = vmatprep.subr.mxu0 0.0
    %695 = vmatpush1.msra.mxu0 0.0
    %696 = vmatprep.subr.mxu0 0.0
    %697 = vmatpush1.msra.mxu0 0.0
    %698 = vmatprep.subr.mxu0 0.0
    %699 = vmatpush1.msra.mxu0 0.0
    %700 = vmatprep.subr.mxu0 0.0
    %701 = vmatpush1.msra.mxu0 0.0
    %702 = vmatprep.subr.mxu0 0.0
    %703 = vmatpush1.msra.mxu0 0.0
    %704 = vmatprep.subr.mxu0 0.0
    %705 = vmatpush1.msra.mxu0 0.0
    %706 = vmatprep.subr.mxu0 0.0
    %707 = vmatpush1.msra.mxu0 0.0
    %708 = vmatprep.subr.mxu0 0.0
    %709 = vmatpush1.msra.mxu0 0.0
    %710 = vmatprep.subr.mxu0 0.0
    %711 = vmatpush1.msra.mxu0 0.0
    %712 = vmatprep.subr.mxu0 0.0
    %713 = vmatpush1.msra.mxu0 0.0
    %714 = vmatprep.subr.mxu0 0.0
    %715 = vmatpush1.msra.mxu0 0.0
    %716 = vmatprep.subr.mxu0 0.0
    %717 = vmatpush1.msra.mxu0 0.0
    %718 = vmatprep.subr.mxu0 0.0
    %719 = vmatpush1.msra.mxu0 0.0
    %720 = vmatprep.subr.mxu0 0.0
    %721 = vmatpush1.msra.mxu0 0.0
    %722 = vmatprep.subr.mxu0 0.0
    %723 = vmatpush1.msra.mxu0 0.0
    %724 = vmatprep.subr.mxu0 0.0
    %725 = vmatpush1.msra.mxu0 0.0
    %726 = vmatprep.subr.mxu0 0.0
    %727 = vmatpush1.msra.mxu0 0.0
    %728 = vmatprep.subr.mxu0 0.0
    %729 = vmatpush1.msra.mxu0 0.0
    %730 = vmatprep.subr.mxu0 0.0
    %731 = vmatpush1.msra.mxu0 0.0
    %732 = vmatprep.subr.mxu0 0.0
    %733 = vmatpush1.msra.mxu0 0.0
    %734 = vmatprep.subr.mxu0 0.0
    %735 = vmatpush1.msra.mxu0 0.0
    %736 = vmatprep.subr.mxu0 0.0
    %737 = vmatpush1.msra.mxu0 0.0
    %738 = vmatprep.subr.mxu0 0.0
    %739 = vmatpush1.msra.mxu0 0.0
    %740 = vmatprep.subr.mxu0 0.0
    %741 = vmatpush1.msra.mxu0 0.0
    %742 = vmatprep.subr.mxu0 0.0
    %743 = vmatpush1.msra.mxu0 0.0
    %744 = vmatprep.mubr.f32.mxu0 0.0
    %v745 = vand.u32 %v578, 4294901760
    %746 = vmatmul.mubr.f32.gmra.mrb[0].mxu0 %v745
    %v747 = vpop.f32.mrb[0].mxu0
    %v748 = vadd.f32 %v657, %v747
    %v749 = vpop.f32.mrb[0].mxu0
    %750 = vmatprep.mubr.f32.mxu0 0.0
    %v751 = vand.u32 %v581, 4294901760
    %752 = vmatmul.mubr.f32.gmra.mrb[0].mxu0 %v751
    %v753 = vpop.f32.mrb[0].mxu0
    %v754 = vadd.f32 %v667, %v753
    %v755 = vpop.f32.mrb[0].mxu0
    %756 = vdwg.mxu0
    %757 = vmatprep.subr.mxu0 0.0
    %v758 = vand.u32 %v30, 4294901760
    %v759 = vsub.f32 %v30, %v758
    %760 = vmatpush1.msra.mxu0 %v759
    %761 = vmatprep.subr.mxu0 0.0
    %v762 = vand.u32 %v31, 4294901760
    %v763 = vsub.f32 %v31, %v762
    %764 = vmatpush1.msra.mxu0 %v763
    %765 = vmatprep.subr.mxu0 0.0
    %766 = vmatpush1.msra.mxu0 0.0
    %767 = vmatprep.subr.mxu0 0.0
    %768 = vmatpush1.msra.mxu0 0.0
    %769 = vmatprep.subr.mxu0 0.0
    %770 = vmatpush1.msra.mxu0 0.0
    %771 = vmatprep.subr.mxu0 0.0
    %772 = vmatpush1.msra.mxu0 0.0
    %773 = vmatprep.subr.mxu0 0.0
    %774 = vmatpush1.msra.mxu0 0.0
    %775 = vmatprep.subr.mxu0 0.0
    %776 = vmatpush1.msra.mxu0 0.0
    %777 = vmatprep.subr.mxu0 0.0
    %778 = vmatpush1.msra.mxu0 0.0
    %779 = vmatprep.subr.mxu0 0.0
    %780 = vmatpush1.msra.mxu0 0.0
    %781 = vmatprep.subr.mxu0 0.0
    %782 = vmatpush1.msra.mxu0 0.0
    %783 = vmatprep.subr.mxu0 0.0
    %784 = vmatpush1.msra.mxu0 0.0
    %785 = vmatprep.subr.mxu0 0.0
    %786 = vmatpush1.msra.mxu0 0.0
    %787 = vmatprep.subr.mxu0 0.0
    %788 = vmatpush1.msra.mxu0 0.0
    %789 = vmatprep.subr.mxu0 0.0
    %790 = vmatpush1.msra.mxu0 0.0
    %791 = vmatprep.subr.mxu0 0.0
    %792 = vmatpush1.msra.mxu0 0.0
    %793 = vmatprep.subr.mxu0 0.0
    %794 = vmatpush1.msra.mxu0 0.0
    %795 = vmatprep.subr.mxu0 0.0
    %796 = vmatpush1.msra.mxu0 0.0
    %797 = vmatprep.subr.mxu0 0.0
    %798 = vmatpush1.msra.mxu0 0.0
    %799 = vmatprep.subr.mxu0 0.0
    %800 = vmatpush1.msra.mxu0 0.0
    %801 = vmatprep.subr.mxu0 0.0
    %802 = vmatpush1.msra.mxu0 0.0
    %803 = vmatprep.subr.mxu0 0.0
    %804 = vmatpush1.msra.mxu0 0.0
    %805 = vmatprep.subr.mxu0 0.0
    %806 = vmatpush1.msra.mxu0 0.0
    %807 = vmatprep.subr.mxu0 0.0
    %808 = vmatpush1.msra.mxu0 0.0
    %809 = vmatprep.subr.mxu0 0.0
    %810 = vmatpush1.msra.mxu0 0.0
    %811 = vmatprep.subr.mxu0 0.0
    %812 = vmatpush1.msra.mxu0 0.0
    %813 = vmatprep.subr.mxu0 0.0
    %814 = vmatpush1.msra.mxu0 0.0
    %815 = vmatprep.subr.mxu0 0.0
    %816 = vmatpush1.msra.mxu0 0.0
    %817 = vmatprep.subr.mxu0 0.0
    %818 = vmatpush1.msra.mxu0 0.0
    %819 = vmatprep.subr.mxu0 0.0
    %820 = vmatpush1.msra.mxu0 0.0
    %821 = vmatprep.subr.mxu0 0.0
    %822 = vmatpush1.msra.mxu0 0.0
    %823 = vmatprep.subr.mxu0 0.0
    %824 = vmatpush1.msra.mxu0 0.0
    %825 = vmatprep.mubr.f32.mxu0 0.0
    %v826 = vand.u32 %v578, 4294901760
    %v827 = vsub.f32 %v578, %v826
    %828 = vmatmul.mubr.f32.gmra.mrb[0].mxu0 %v827
    %v829 = vpop.f32.mrb[0].mxu0
    %v830 = vadd.f32 %v748, %v829
    %v831 = vpop.f32.mrb[0].mxu0
    %832 = vmatprep.mubr.f32.mxu0 0.0
    %v833 = vand.u32 %v581, 4294901760
    %v834 = vsub.f32 %v581, %v833
    %835 = vmatmul.mubr.f32.gmra.mrb[0].mxu0 %v834
    %v836 = vpop.f32.mrb[0].mxu0
    %v837 = vadd.f32 %v754, %v836
    %v838 = vpop.f32.mrb[0].mxu0
    %839 = vdwg.mxu0
    %840 = vmatprep.subr.mxu0 0.0
    %v841 = vand.u32 %v30, 4294901760
    %842 = vmatpush1.msra.mxu0 %v841
    %843 = vmatprep.subr.mxu0 0.0
    %v844 = vand.u32 %v31, 4294901760
    %845 = vmatpush1.msra.mxu0 %v844
    %846 = vmatprep.subr.mxu0 0.0
    %847 = vmatpush1.msra.mxu0 0.0
    %848 = vmatprep.subr.mxu0 0.0
    %849 = vmatpush1.msra.mxu0 0.0
    %850 = vmatprep.subr.mxu0 0.0
    %851 = vmatpush1.msra.mxu0 0.0
    %852 = vmatprep.subr.mxu0 0.0
    %853 = vmatpush1.msra.mxu0 0.0
    %854 = vmatprep.subr.mxu0 0.0
    %855 = vmatpush1.msra.mxu0 0.0
    %856 = vmatprep.subr.mxu0 0.0
    %857 = vmatpush1.msra.mxu0 0.0
    %858 = vmatprep.subr.mxu0 0.0
    %859 = vmatpush1.msra.mxu0 0.0
    %860 = vmatprep.subr.mxu0 0.0
    %861 = vmatpush1.msra.mxu0 0.0
    %862 = vmatprep.subr.mxu0 0.0
    %863 = vmatpush1.msra.mxu0 0.0
    %864 = vmatprep.subr.mxu0 0.0
    %865 = vmatpush1.msra.mxu0 0.0
    %866 = vmatprep.subr.mxu0 0.0
    %867 = vmatpush1.msra.mxu0 0.0
    %868 = vmatprep.subr.mxu0 0.0
    %869 = vmatpush1.msra.mxu0 0.0
    %870 = vmatprep.subr.mxu0 0.0
    %871 = vmatpush1.msra.mxu0 0.0
    %872 = vmatprep.subr.mxu0 0.0
    %873 = vmatpush1.msra.mxu0 0.0
    %874 = vmatprep.subr.mxu0 0.0
    %875 = vmatpush1.msra.mxu0 0.0
    %876 = vmatprep.subr.mxu0 0.0
    %877 = vmatpush1.msra.mxu0 0.0
    %878 = vmatprep.subr.mxu0 0.0
    %879 = vmatpush1.msra.mxu0 0.0
    %880 = vmatprep.subr.mxu0 0.0
    %881 = vmatpush1.msra.mxu0 0.0
    %882 = vmatprep.subr.mxu0 0.0
    %883 = vmatpush1.msra.mxu0 0.0
    %884 = vmatprep.subr.mxu0 0.0
    %885 = vmatpush1.msra.mxu0 0.0
    %886 = vmatprep.subr.mxu0 0.0
    %887 = vmatpush1.msra.mxu0 0.0
    %888 = vmatprep.subr.mxu0 0.0
    %889 = vmatpush1.msra.mxu0 0.0
    %890 = vmatprep.subr.mxu0 0.0
    %891 = vmatpush1.msra.mxu0 0.0
    %892 = vmatprep.subr.mxu0 0.0
    %893 = vmatpush1.msra.mxu0 0.0
    %894 = vmatprep.subr.mxu0 0.0
    %895 = vmatpush1.msra.mxu0 0.0
    %896 = vmatprep.subr.mxu0 0.0
    %897 = vmatpush1.msra.mxu0 0.0
    %898 = vmatprep.subr.mxu0 0.0
    %899 = vmatpush1.msra.mxu0 0.0
    %900 = vmatprep.subr.mxu0 0.0
    %901 = vmatpush1.msra.mxu0 0.0
    %902 = vmatprep.subr.mxu0 0.0
    %903 = vmatpush1.msra.mxu0 0.0
    %904 = vmatprep.subr.mxu0 0.0
    %905 = vmatpush1.msra.mxu0 0.0
    %906 = vmatprep.mubr.f32.mxu0 0.0
    %v907 = vand.u32 %v578, 4294901760
    %v908 = vsub.f32 %v578, %v907
    %v909 = vand.u32 %v908, 4294901760
    %910 = vmatmul.mubr.f32.gmra.mrb[0].mxu0 %v909
    %v911 = vpop.f32.mrb[0].mxu0
    %v912 = vadd.f32 %v830, %v911
    %v913 = vpop.f32.mrb[0].mxu0
    %914 = vmatprep.mubr.f32.mxu0 0.0
    %v915 = vand.u32 %v581, 4294901760
    %v916 = vsub.f32 %v581, %v915
    %v917 = vand.u32 %v916, 4294901760
    %918 = vmatmul.mubr.f32.gmra.mrb[0].mxu0 %v917
    %v919 = vpop.f32.mrb[0].mxu0
    %v920 = vadd.f32 %v837, %v919
    %v921 = vpop.f32.mrb[0].mxu0
    %922 = vdwg.mxu0
    %923 = vmatprep.subr.mxu0 0.0
    %v924 = vand.u32 %v30, 4294901760
    %v925 = vsub.f32 %v30, %v924
    %v926 = vand.u32 %v925, 4294901760
    %927 = vmatpush1.msra.mxu0 %v926
    %928 = vmatprep.subr.mxu0 0.0
    %v929 = vand.u32 %v31, 4294901760
    %v930 = vsub.f32 %v31, %v929
    %v931 = vand.u32 %v930, 4294901760
    %932 = vmatpush1.msra.mxu0 %v931
    %933 = vmatprep.subr.mxu0 0.0
    %934 = vmatpush1.msra.mxu0 0.0
    %935 = vmatprep.subr.mxu0 0.0
    %936 = vmatpush1.msra.mxu0 0.0
    %937 = vmatprep.subr.mxu0 0.0
    %938 = vmatpush1.msra.mxu0 0.0
    %939 = vmatprep.subr.mxu0 0.0
    %940 = vmatpush1.msra.mxu0 0.0
    %941 = vmatprep.subr.mxu0 0.0
    %942 = vmatpush1.msra.mxu0 0.0
    %943 = vmatprep.subr.mxu0 0.0
    %944 = vmatpush1.msra.mxu0 0.0
    %945 = vmatprep.subr.mxu0 0.0
    %946 = vmatpush1.msra.mxu0 0.0
    %947 = vmatprep.subr.mxu0 0.0
    %948 = vmatpush1.msra.mxu0 0.0
    %949 = vmatprep.subr.mxu0 0.0
    %950 = vmatpush1.msra.mxu0 0.0
    %951 = vmatprep.subr.mxu0 0.0
    %952 = vmatpush1.msra.mxu0 0.0
    %953 = vmatprep.subr.mxu0 0.0
    %954 = vmatpush1.msra.mxu0 0.0
    %955 = vmatprep.subr.mxu0 0.0
    %956 = vmatpush1.msra.mxu0 0.0
    %957 = vmatprep.subr.mxu0 0.0
    %958 = vmatpush1.msra.mxu0 0.0
    %959 = vmatprep.subr.mxu0 0.0
    %960 = vmatpush1.msra.mxu0 0.0
    %961 = vmatprep.subr.mxu0 0.0
    %962 = vmatpush1.msra.mxu0 0.0
    %963 = vmatprep.subr.mxu0 0.0
    %964 = vmatpush1.msra.mxu0 0.0
    %965 = vmatprep.subr.mxu0 0.0
    %966 = vmatpush1.msra.mxu0 0.0
    %967 = vmatprep.subr.mxu0 0.0
    %968 = vmatpush1.msra.mxu0 0.0
    %969 = vmatprep.subr.mxu0 0.0
    %970 = vmatpush1.msra.mxu0 0.0
    %971 = vmatprep.subr.mxu0 0.0
    %972 = vmatpush1.msra.mxu0 0.0
    %973 = vmatprep.subr.mxu0 0.0
    %974 = vmatpush1.msra.mxu0 0.0
    %975 = vmatprep.subr.mxu0 0.0
    %976 = vmatpush1.msra.mxu0 0.0
    %977 = vmatprep.subr.mxu0 0.0
    %978 = vmatpush1.msra.mxu0 0.0
    %979 = vmatprep.subr.mxu0 0.0
    %980 = vmatpush1.msra.mxu0 0.0
    %981 = vmatprep.subr.mxu0 0.0
    %982 = vmatpush1.msra.mxu0 0.0
    %983 = vmatprep.subr.mxu0 0.0
    %984 = vmatpush1.msra.mxu0 0.0
    %985 = vmatprep.subr.mxu0 0.0
    %986 = vmatpush1.msra.mxu0 0.0
    %987 = vmatprep.subr.mxu0 0.0
    %988 = vmatpush1.msra.mxu0 0.0
    %989 = vmatprep.subr.mxu0 0.0
    %990 = vmatpush1.msra.mxu0 0.0
    %991 = vmatprep.subr.mxu0 0.0
    %992 = vmatpush1.msra.mxu0 0.0
    %993 = vmatprep.mubr.f32.mxu0 0.0
    %v994 = vand.u32 %v578, 4294901760
    %995 = vmatmul.mubr.f32.gmra.mrb[0].mxu0 %v994
    %v996 = vpop.f32.mrb[0].mxu0
    %v997 = vadd.f32 %v912, %v996
    %v998 = vpop.f32.mrb[0].mxu0
    %999 = vmatprep.mubr.f32.mxu0 0.0
    %v1000 = vand.u32 %v581, 4294901760
    %1001 = vmatmul.mubr.f32.gmra.mrb[0].mxu0 %v1000
    %v1002 = vpop.f32.mrb[0].mxu0
    %v1003 = vadd.f32 %v920, %v1002
    %v1004 = vpop.f32.mrb[0].mxu0
    %1005 = vdwg.mxu0
    %1006 = vmatprep.subr.mxu0 0.0
    %v1007 = vand.u32 %v30, 4294901760
    %1008 = vmatpush1.msra.mxu0 %v1007
    %1009 = vmatprep.subr.mxu0 0.0
    %v1010 = vand.u32 %v31, 4294901760
    %1011 = vmatpush1.msra.mxu0 %v1010
    %1012 = vmatprep.subr.mxu0 0.0
    %1013 = vmatpush1.msra.mxu0 0.0
    %1014 = vmatprep.subr.mxu0 0.0
    %1015 = vmatpush1.msra.mxu0 0.0
    %1016 = vmatprep.subr.mxu0 0.0
    %1017 = vmatpush1.msra.mxu0 0.0
    %1018 = vmatprep.subr.mxu0 0.0
    %1019 = vmatpush1.msra.mxu0 0.0
    %1020 = vmatprep.subr.mxu0 0.0
    %1021 = vmatpush1.msra.mxu0 0.0
    %1022 = vmatprep.subr.mxu0 0.0
    %1023 = vmatpush1.msra.mxu0 0.0
    %1024 = vmatprep.subr.mxu0 0.0
    %1025 = vmatpush1.msra.mxu0 0.0
    %1026 = vmatprep.subr.mxu0 0.0
    %1027 = vmatpush1.msra.mxu0 0.0
    %1028 = vmatprep.subr.mxu0 0.0
    %1029 = vmatpush1.msra.mxu0 0.0
    %1030 = vmatprep.subr.mxu0 0.0
    %1031 = vmatpush1.msra.mxu0 0.0
    %1032 = vmatprep.subr.mxu0 0.0
    %1033 = vmatpush1.msra.mxu0 0.0
    %1034 = vmatprep.subr.mxu0 0.0
    %1035 = vmatpush1.msra.mxu0 0.0
    %1036 = vmatprep.subr.mxu0 0.0
    %1037 = vmatpush1.msra.mxu0 0.0
    %1038 = vmatprep.subr.mxu0 0.0
    %1039 = vmatpush1.msra.mxu0 0.0
    %1040 = vmatprep.subr.mxu0 0.0
    %1041 = vmatpush1.msra.mxu0 0.0
    %1042 = vmatprep.subr.mxu0 0.0
    %1043 = vmatpush1.msra.mxu0 0.0
    %1044 = vmatprep.subr.mxu0 0.0
    %1045 = vmatpush1.msra.mxu0 0.0
    %1046 = vmatprep.subr.mxu0 0.0
    %1047 = vmatpush1.msra.mxu0 0.0
    %1048 = vmatprep.subr.mxu0 0.0
    %1049 = vmatpush1.msra.mxu0 0.0
    %1050 = vmatprep.subr.mxu0 0.0
    %1051 = vmatpush1.msra.mxu0 0.0
    %1052 = vmatprep.subr.mxu0 0.0
    %1053 = vmatpush1.msra.mxu0 0.0
    %1054 = vmatprep.subr.mxu0 0.0
    %1055 = vmatpush1.msra.mxu0 0.0
    %1056 = vmatprep.subr.mxu0 0.0
    %1057 = vmatpush1.msra.mxu0 0.0
    %1058 = vmatprep.subr.mxu0 0.0
    %1059 = vmatpush1.msra.mxu0 0.0
    %1060 = vmatprep.subr.mxu0 0.0
    %1061 = vmatpush1.msra.mxu0 0.0
    %1062 = vmatprep.subr.mxu0 0.0
    %1063 = vmatpush1.msra.mxu0 0.0
    %1064 = vmatprep.subr.mxu0 0.0
    %1065 = vmatpush1.msra.mxu0 0.0
    %1066 = vmatprep.subr.mxu0 0.0
    %1067 = vmatpush1.msra.mxu0 0.0
    %1068 = vmatprep.subr.mxu0 0.0
    %1069 = vmatpush1.msra.mxu0 0.0
    %1070 = vmatprep.subr.mxu0 0.0
    %1071 = vmatpush1.msra.mxu0 0.0
    %1072 = vmatprep.mubr.f32.mxu0 0.0
    %v1073 = vand.u32 %v578, 4294901760
    %1074 = vmatmul.mubr.f32.gmra.mrb[0].mxu0 %v1073
    %v1075 = vpop.f32.mrb[0].mxu0
    %v1076 = vadd.f32 %v997, %v1075
    %v1077 = vpop.f32.mrb[0].mxu0
    %1078 = vmatprep.mubr.f32.mxu0 0.0
    %v1079 = vand.u32 %v581, 4294901760
    %1080 = vmatmul.mubr.f32.gmra.mrb[0].mxu0 %v1079
    %v1081 = vpop.f32.mrb[0].mxu0
    %v1082 = vadd.f32 %v1003, %v1081
    %v1083 = vpop.f32.mrb[0].mxu0
    %1084 = vdwg.mxu0
    %1085 = vmatprep.subr.mxu0 0.0
    %v1086 = vand.u32 %v36, 4294901760
    %1087 = vmatpush1.msra.mxu0 %v1086
    %1088 = vmatprep.subr.mxu0 0.0
    %v1089 = vand.u32 %v37, 4294901760
    %1090 = vmatpush1.msra.mxu0 %v1089
    %1091 = vmatprep.subr.mxu0 0.0
    %v1092 = vand.u32 %v38, 4294901760
    %1093 = vmatpush1.msra.mxu0 %v1092
    %1094 = vmatprep.subr.mxu0 0.0
    %v1095 = vand.u32 %v39, 4294901760
    %1096 = vmatpush1.msra.mxu0 %v1095
    %1097 = vmatprep.subr.mxu0 0.0
    %v1098 = vand.u32 %v40, 4294901760
    %1099 = vmatpush1.msra.mxu0 %v1098
    %1100 = vmatprep.subr.mxu0 0.0
    %v1101 = vand.u32 %v41, 4294901760
    %1102 = vmatpush1.msra.mxu0 %v1101
    %1103 = vmatprep.subr.mxu0 0.0
    %v1104 = vand.u32 %v42, 4294901760
    %1105 = vmatpush1.msra.mxu0 %v1104
    %1106 = vmatprep.subr.mxu0 0.0
    %v1107 = vand.u32 %v43, 4294901760
    %1108 = vmatpush1.msra.mxu0 %v1107
    %1109 = vmatprep.subr.mxu0 0.0
    %v1110 = vand.u32 %v44, 4294901760
    %1111 = vmatpush1.msra.mxu0 %v1110
    %1112 = vmatprep.subr.mxu0 0.0
    %v1113 = vand.u32 %v45, 4294901760
    %1114 = vmatpush1.msra.mxu0 %v1113
    %1115 = vmatprep.subr.mxu0 0.0
    %v1116 = vand.u32 %v46, 4294901760
    %1117 = vmatpush1.msra.mxu0 %v1116
    %1118 = vmatprep.subr.mxu0 0.0
    %v1119 = vand.u32 %v47, 4294901760
    %1120 = vmatpush1.msra.mxu0 %v1119
    %1121 = vmatprep.subr.mxu0 0.0
    %v1122 = vand.u32 %v48, 4294901760
    %1123 = vmatpush1.msra.mxu0 %v1122
    %1124 = vmatprep.subr.mxu0 0.0
    %v1125 = vand.u32 %v49, 4294901760
    %1126 = vmatpush1.msra.mxu0 %v1125
    %1127 = vmatprep.subr.mxu0 0.0
    %v1128 = vand.u32 %v50, 4294901760
    %1129 = vmatpush1.msra.mxu0 %v1128
    %1130 = vmatprep.subr.mxu0 0.0
    %v1131 = vand.u32 %v51, 4294901760
    %1132 = vmatpush1.msra.mxu0 %v1131
    %1133 = vmatprep.subr.mxu0 0.0
    %1134 = vmatpush1.msra.mxu0 0.0
    %1135 = vmatprep.subr.mxu0 0.0
    %1136 = vmatpush1.msra.mxu0 0.0
    %1137 = vmatprep.subr.mxu0 0.0
    %1138 = vmatpush1.msra.mxu0 0.0
    %1139 = vmatprep.subr.mxu0 0.0
    %1140 = vmatpush1.msra.mxu0 0.0
    %1141 = vmatprep.subr.mxu0 0.0
    %1142 = vmatpush1.msra.mxu0 0.0
    %1143 = vmatprep.subr.mxu0 0.0
    %1144 = vmatpush1.msra.mxu0 0.0
    %1145 = vmatprep.subr.mxu0 0.0
    %1146 = vmatpush1.msra.mxu0 0.0
    %1147 = vmatprep.subr.mxu0 0.0
    %1148 = vmatpush1.msra.mxu0 0.0
    %1149 = vmatprep.subr.mxu0 0.0
    %1150 = vmatpush1.msra.mxu0 0.0
    %1151 = vmatprep.subr.mxu0 0.0
    %1152 = vmatpush1.msra.mxu0 0.0
    %1153 = vmatprep.subr.mxu0 0.0
    %1154 = vmatpush1.msra.mxu0 0.0
    %1155 = vmatprep.subr.mxu0 0.0
    %1156 = vmatpush1.msra.mxu0 0.0
    %1157 = vmatprep.subr.mxu0 0.0
    %1158 = vmatpush1.msra.mxu0 0.0
    %1159 = vmatprep.subr.mxu0 0.0
    %1160 = vmatpush1.msra.mxu0 0.0
    %1161 = vmatprep.subr.mxu0 0.0
    %1162 = vmatpush1.msra.mxu0 0.0
    %1163 = vmatprep.subr.mxu0 0.0
    %1164 = vmatpush1.msra.mxu0 0.0
    %1165 = vmatprep.mubr.f32.mxu0 0.0
    %v1166 = vand.u32 %v568, 4294901760
    %v1167 = vsub.f32 %v568, %v1166
    %v1168 = vand.u32 %v1167, 4294901760
    %v1169 = vsub.f32 %v1167, %v1168
    %v1170 = vand.u32 %v1169, 4294901760
    %1171 = vmatmul.mubr.f32.gmra.mrb[0].mxu0 %v1170
    %v1172 = vpop.f32.mrb[0].mxu0
    %v1173 = vadd.f32 0.0, %v1172
    %v1174 = vpop.f32.mrb[0].mxu0
    %1175 = vmatprep.mubr.f32.mxu0 0.0
    %v1176 = vand.u32 %v574, 4294901760
    %v1177 = vsub.f32 %v574, %v1176
    %v1178 = vand.u32 %v1177, 4294901760
    %v1179 = vsub.f32 %v1177, %v1178
    %v1180 = vand.u32 %v1179, 4294901760
    %1181 = vmatmul.mubr.f32.gmra.mrb[0].mxu0 %v1180
    %v1182 = vpop.f32.mrb[0].mxu0
    %v1183 = vadd.f32 0.0, %v1182
    %v1184 = vpop.f32.mrb[0].mxu0
    %1185 = vdwg.mxu0
    %1186 = vmatprep.subr.mxu0 0.0
    %v1187 = vand.u32 %v36, 4294901760
    %v1188 = vsub.f32 %v36, %v1187
    %v1189 = vand.u32 %v1188, 4294901760
    %v1190 = vsub.f32 %v1188, %v1189
    %v1191 = vand.u32 %v1190, 4294901760
    %1192 = vmatpush1.msra.mxu0 %v1191
    %1193 = vmatprep.subr.mxu0 0.0
    %v1194 = vand.u32 %v37, 4294901760
    %v1195 = vsub.f32 %v37, %v1194
    %v1196 = vand.u32 %v1195, 4294901760
    %v1197 = vsub.f32 %v1195, %v1196
    %v1198 = vand.u32 %v1197, 4294901760
    %1199 = vmatpush1.msra.mxu0 %v1198
    %1200 = vmatprep.subr.mxu0 0.0
    %v1201 = vand.u32 %v38, 4294901760
    %v1202 = vsub.f32 %v38, %v1201
    %v1203 = vand.u32 %v1202, 4294901760
    %v1204 = vsub.f32 %v1202, %v1203
    %v1205 = vand.u32 %v1204, 4294901760
    %1206 = vmatpush1.msra.mxu0 %v1205
    %1207 = vmatprep.subr.mxu0 0.0
    %v1208 = vand.u32 %v39, 4294901760
    %v1209 = vsub.f32 %v39, %v1208
    %v1210 = vand.u32 %v1209, 4294901760
    %v1211 = vsub.f32 %v1209, %v1210
    %v1212 = vand.u32 %v1211, 4294901760
    %1213 = vmatpush1.msra.mxu0 %v1212
    %1214 = vmatprep.subr.mxu0 0.0
    %v1215 = vand.u32 %v40, 4294901760
    %v1216 = vsub.f32 %v40, %v1215
    %v1217 = vand.u32 %v1216, 4294901760
    %v1218 = vsub.f32 %v1216, %v1217
    %v1219 = vand.u32 %v1218, 4294901760
    %1220 = vmatpush1.msra.mxu0 %v1219
    %1221 = vmatprep.subr.mxu0 0.0
    %v1222 = vand.u32 %v41, 4294901760
    %v1223 = vsub.f32 %v41, %v1222
    %v1224 = vand.u32 %v1223, 4294901760
    %v1225 = vsub.f32 %v1223, %v1224
    %v1226 = vand.u32 %v1225, 4294901760
    %1227 = vmatpush1.msra.mxu0 %v1226
    %1228 = vmatprep.subr.mxu0 0.0
    %v1229 = vand.u32 %v42, 4294901760
    %v1230 = vsub.f32 %v42, %v1229
    %v1231 = vand.u32 %v1230, 4294901760
    %v1232 = vsub.f32 %v1230, %v1231
    %v1233 = vand.u32 %v1232, 4294901760
    %1234 = vmatpush1.msra.mxu0 %v1233
    %1235 = vmatprep.subr.mxu0 0.0
    %v1236 = vand.u32 %v43, 4294901760
    %v1237 = vsub.f32 %v43, %v1236
    %v1238 = vand.u32 %v1237, 4294901760
    %v1239 = vsub.f32 %v1237, %v1238
    %v1240 = vand.u32 %v1239, 4294901760
    %1241 = vmatpush1.msra.mxu0 %v1240
    %1242 = vmatprep.subr.mxu0 0.0
    %v1243 = vand.u32 %v44, 4294901760
    %v1244 = vsub.f32 %v44, %v1243
    %v1245 = vand.u32 %v1244, 4294901760
    %v1246 = vsub.f32 %v1244, %v1245
    %v1247 = vand.u32 %v1246, 4294901760
    %1248 = vmatpush1.msra.mxu0 %v1247
    %1249 = vmatprep.subr.mxu0 0.0
    %v1250 = vand.u32 %v45, 4294901760
    %v1251 = vsub.f32 %v45, %v1250
    %v1252 = vand.u32 %v1251, 4294901760
    %v1253 = vsub.f32 %v1251, %v1252
    %v1254 = vand.u32 %v1253, 4294901760
    %1255 = vmatpush1.msra.mxu0 %v1254
    %1256 = vmatprep.subr.mxu0 0.0
    %v1257 = vand.u32 %v46, 4294901760
    %v1258 = vsub.f32 %v46, %v1257
    %v1259 = vand.u32 %v1258, 4294901760
    %v1260 = vsub.f32 %v1258, %v1259
    %v1261 = vand.u32 %v1260, 4294901760
    %1262 = vmatpush1.msra.mxu0 %v1261
    %1263 = vmatprep.subr.mxu0 0.0
    %v1264 = vand.u32 %v47, 4294901760
    %v1265 = vsub.f32 %v47, %v1264
    %v1266 = vand.u32 %v1265, 4294901760
    %v1267 = vsub.f32 %v1265, %v1266
    %v1268 = vand.u32 %v1267, 4294901760
    %1269 = vmatpush1.msra.mxu0 %v1268
    %1270 = vmatprep.subr.mxu0 0.0
    %v1271 = vand.u32 %v48, 4294901760
    %v1272 = vsub.f32 %v48, %v1271
    %v1273 = vand.u32 %v1272, 4294901760
    %v1274 = vsub.f32 %v1272, %v1273
    %v1275 = vand.u32 %v1274, 4294901760
    %1276 = vmatpush1.msra.mxu0 %v1275
    %1277 = vmatprep.subr.mxu0 0.0
    %v1278 = vand.u32 %v49, 4294901760
    %v1279 = vsub.f32 %v49, %v1278
    %v1280 = vand.u32 %v1279, 4294901760
    %v1281 = vsub.f32 %v1279, %v1280
    %v1282 = vand.u32 %v1281, 4294901760
    %1283 = vmatpush1.msra.mxu0 %v1282
    %1284 = vmatprep.subr.mxu0 0.0
    %v1285 = vand.u32 %v50, 4294901760
    %v1286 = vsub.f32 %v50, %v1285
    %v1287 = vand.u32 %v1286, 4294901760
    %v1288 = vsub.f32 %v1286, %v1287
    %v1289 = vand.u32 %v1288, 4294901760
    %1290 = vmatpush1.msra.mxu0 %v1289
    %1291 = vmatprep.subr.mxu0 0.0
    %v1292 = vand.u32 %v51, 4294901760
    %v1293 = vsub.f32 %v51, %v1292
    %v1294 = vand.u32 %v1293, 4294901760
    %v1295 = vsub.f32 %v1293, %v1294
    %v1296 = vand.u32 %v1295, 4294901760
    %1297 = vmatpush1.msra.mxu0 %v1296
    %1298 = vmatprep.subr.mxu0 0.0
    %1299 = vmatpush1.msra.mxu0 0.0
    %1300 = vmatprep.subr.mxu0 0.0
    %1301 = vmatpush1.msra.mxu0 0.0
    %1302 = vmatprep.subr.mxu0 0.0
    %1303 = vmatpush1.msra.mxu0 0.0
    %1304 = vmatprep.subr.mxu0 0.0
    %1305 = vmatpush1.msra.mxu0 0.0
    %1306 = vmatprep.subr.mxu0 0.0
    %1307 = vmatpush1.msra.mxu0 0.0
    %1308 = vmatprep.subr.mxu0 0.0
    %1309 = vmatpush1.msra.mxu0 0.0
    %1310 = vmatprep.subr.mxu0 0.0
    %1311 = vmatpush1.msra.mxu0 0.0
    %1312 = vmatprep.subr.mxu0 0.0
    %1313 = vmatpush1.msra.mxu0 0.0
    %1314 = vmatprep.subr.mxu0 0.0
    %1315 = vmatpush1.msra.mxu0 0.0
    %1316 = vmatprep.subr.mxu0 0.0
    %1317 = vmatpush1.msra.mxu0 0.0
    %1318 = vmatprep.subr.mxu0 0.0
    %1319 = vmatpush1.msra.mxu0 0.0
    %1320 = vmatprep.subr.mxu0 0.0
    %1321 = vmatpush1.msra.mxu0 0.0
    %1322 = vmatprep.subr.mxu0 0.0
    %1323 = vmatpush1.msra.mxu0 0.0
    %1324 = vmatprep.subr.mxu0 0.0
    %1325 = vmatpush1.msra.mxu0 0.0
    %1326 = vmatprep.subr.mxu0 0.0
    %1327 = vmatpush1.msra.mxu0 0.0
    %1328 = vmatprep.subr.mxu0 0.0
    %1329 = vmatpush1.msra.mxu0 0.0
    %1330 = vmatprep.mubr.f32.mxu0 0.0
    %v1331 = vand.u32 %v568, 4294901760
    %1332 = vmatmul.mubr.f32.gmra.mrb[0].mxu0 %v1331
    %v1333 = vpop.f32.mrb[0].mxu0
    %v1334 = vadd.f32 %v1173, %v1333
    %v1335 = vpop.f32.mrb[0].mxu0
    %1336 = vmatprep.mubr.f32.mxu0 0.0
    %v1337 = vand.u32 %v574, 4294901760
    %1338 = vmatmul.mubr.f32.gmra.mrb[0].mxu0 %v1337
    %v1339 = vpop.f32.mrb[0].mxu0
    %v1340 = vadd.f32 %v1183, %v1339
    %v1341 = vpop.f32.mrb[0].mxu0
    %1342 = vdwg.mxu0
    %1343 = vmatprep.subr.mxu0 0.0
    %v1344 = vand.u32 %v36, 4294901760
    %v1345 = vsub.f32 %v36, %v1344
    %1346 = vmatpush1.msra.mxu0 %v1345
    %1347 = vmatprep.subr.mxu0 0.0
    %v1348 = vand.u32 %v37, 4294901760
    %v1349 = vsub.f32 %v37, %v1348
    %1350 = vmatpush1.msra.mxu0 %v1349
    %1351 = vmatprep.subr.mxu0 0.0
    %v1352 = vand.u32 %v38, 4294901760
    %v1353 = vsub.f32 %v38, %v1352
    %1354 = vmatpush1.msra.mxu0 %v1353
    %1355 = vmatprep.subr.mxu0 0.0
    %v1356 = vand.u32 %v39, 4294901760
    %v1357 = vsub.f32 %v39, %v1356
    %1358 = vmatpush1.msra.mxu0 %v1357
    %1359 = vmatprep.subr.mxu0 0.0
    %v1360 = vand.u32 %v40, 4294901760
    %v1361 = vsub.f32 %v40, %v1360
    %1362 = vmatpush1.msra.mxu0 %v1361
    %1363 = vmatprep.subr.mxu0 0.0
    %v1364 = vand.u32 %v41, 4294901760
    %v1365 = vsub.f32 %v41, %v1364
    %1366 = vmatpush1.msra.mxu0 %v1365
    %1367 = vmatprep.subr.mxu0 0.0
    %v1368 = vand.u32 %v42, 4294901760
    %v1369 = vsub.f32 %v42, %v1368
    %1370 = vmatpush1.msra.mxu0 %v1369
    %1371 = vmatprep.subr.mxu0 0.0
    %v1372 = vand.u32 %v43, 4294901760
    %v1373 = vsub.f32 %v43, %v1372
    %1374 = vmatpush1.msra.mxu0 %v1373
    %1375 = vmatprep.subr.mxu0 0.0
    %v1376 = vand.u32 %v44, 4294901760
    %v1377 = vsub.f32 %v44, %v1376
    %1378 = vmatpush1.msra.mxu0 %v1377
    %1379 = vmatprep.subr.mxu0 0.0
    %v1380 = vand.u32 %v45, 4294901760
    %v1381 = vsub.f32 %v45, %v1380
    %1382 = vmatpush1.msra.mxu0 %v1381
    %1383 = vmatprep.subr.mxu0 0.0
    %v1384 = vand.u32 %v46, 4294901760
    %v1385 = vsub.f32 %v46, %v1384
    %1386 = vmatpush1.msra.mxu0 %v1385
    %1387 = vmatprep.subr.mxu0 0.0
    %v1388 = vand.u32 %v47, 4294901760
    %v1389 = vsub.f32 %v47, %v1388
    %1390 = vmatpush1.msra.mxu0 %v1389
    %1391 = vmatprep.subr.mxu0 0.0
    %v1392 = vand.u32 %v48, 4294901760
    %v1393 = vsub.f32 %v48, %v1392
    %1394 = vmatpush1.msra.mxu0 %v1393
    %1395 = vmatprep.subr.mxu0 0.0
    %v1396 = vand.u32 %v49, 4294901760
    %v1397 = vsub.f32 %v49, %v1396
    %1398 = vmatpush1.msra.mxu0 %v1397
    %1399 = vmatprep.subr.mxu0 0.0
    %v1400 = vand.u32 %v50, 4294901760
    %v1401 = vsub.f32 %v50, %v1400
    %1402 = vmatpush1.msra.mxu0 %v1401
    %1403 = vmatprep.subr.mxu0 0.0
    %v1404 = vand.u32 %v51, 4294901760
    %v1405 = vsub.f32 %v51, %v1404
    %1406 = vmatpush1.msra.mxu0 %v1405
    %1407 = vmatprep.subr.mxu0 0.0
    %1408 = vmatpush1.msra.mxu0 0.0
    %1409 = vmatprep.subr.mxu0 0.0
    %1410 = vmatpush1.msra.mxu0 0.0
    %1411 = vmatprep.subr.mxu0 0.0
    %1412 = vmatpush1.msra.mxu0 0.0
    %1413 = vmatprep.subr.mxu0 0.0
    %1414 = vmatpush1.msra.mxu0 0.0
    %1415 = vmatprep.subr.mxu0 0.0
    %1416 = vmatpush1.msra.mxu0 0.0
    %1417 = vmatprep.subr.mxu0 0.0
    %1418 = vmatpush1.msra.mxu0 0.0
    %1419 = vmatprep.subr.mxu0 0.0
    %1420 = vmatpush1.msra.mxu0 0.0
    %1421 = vmatprep.subr.mxu0 0.0
    %1422 = vmatpush1.msra.mxu0 0.0
    %1423 = vmatprep.subr.mxu0 0.0
    %1424 = vmatpush1.msra.mxu0 0.0
    %1425 = vmatprep.subr.mxu0 0.0
    %1426 = vmatpush1.msra.mxu0 0.0
    %1427 = vmatprep.subr.mxu0 0.0
    %1428 = vmatpush1.msra.mxu0 0.0
    %1429 = vmatprep.subr.mxu0 0.0
    %1430 = vmatpush1.msra.mxu0 0.0
    %1431 = vmatprep.subr.mxu0 0.0
    %1432 = vmatpush1.msra.mxu0 0.0
    %1433 = vmatprep.subr.mxu0 0.0
    %1434 = vmatpush1.msra.mxu0 0.0
    %1435 = vmatprep.subr.mxu0 0.0
    %1436 = vmatpush1.msra.mxu0 0.0
    %1437 = vmatprep.subr.mxu0 0.0
    %1438 = vmatpush1.msra.mxu0 0.0
    %1439 = vmatprep.mubr.f32.mxu0 0.0
    %v1440 = vand.u32 %v568, 4294901760
    %v1441 = vsub.f32 %v568, %v1440
    %1442 = vmatmul.mubr.f32.gmra.mrb[0].mxu0 %v1441
    %v1443 = vpop.f32.mrb[0].mxu0
    %v1444 = vadd.f32 %v1334, %v1443
    %v1445 = vpop.f32.mrb[0].mxu0
    %1446 = vmatprep.mubr.f32.mxu0 0.0
    %v1447 = vand.u32 %v574, 4294901760
    %v1448 = vsub.f32 %v574, %v1447
    %1449 = vmatmul.mubr.f32.gmra.mrb[0].mxu0 %v1448
    %v1450 = vpop.f32.mrb[0].mxu0
    %v1451 = vadd.f32 %v1340, %v1450
    %v1452 = vpop.f32.mrb[0].mxu0
    %1453 = vdwg.mxu0
    %1454 = vmatprep.subr.mxu0 0.0
    %v1455 = vand.u32 %v36, 4294901760
    %1456 = vmatpush1.msra.mxu0 %v1455
    %1457 = vmatprep.subr.mxu0 0.0
    %v1458 = vand.u32 %v37, 4294901760
    %1459 = vmatpush1.msra.mxu0 %v1458
    %1460 = vmatprep.subr.mxu0 0.0
    %v1461 = vand.u32 %v38, 4294901760
    %1462 = vmatpush1.msra.mxu0 %v1461
    %1463 = vmatprep.subr.mxu0 0.0
    %v1464 = vand.u32 %v39, 4294901760
    %1465 = vmatpush1.msra.mxu0 %v1464
    %1466 = vmatprep.subr.mxu0 0.0
    %v1467 = vand.u32 %v40, 4294901760
    %1468 = vmatpush1.msra.mxu0 %v1467
    %1469 = vmatprep.subr.mxu0 0.0
    %v1470 = vand.u32 %v41, 4294901760
    %1471 = vmatpush1.msra.mxu0 %v1470
    %1472 = vmatprep.subr.mxu0 0.0
    %v1473 = vand.u32 %v42, 4294901760
    %1474 = vmatpush1.msra.mxu0 %v1473
    %1475 = vmatprep.subr.mxu0 0.0
    %v1476 = vand.u32 %v43, 4294901760
    %1477 = vmatpush1.msra.mxu0 %v1476
    %1478 = vmatprep.subr.mxu0 0.0
    %v1479 = vand.u32 %v44, 4294901760
    %1480 = vmatpush1.msra.mxu0 %v1479
    %1481 = vmatprep.subr.mxu0 0.0
    %v1482 = vand.u32 %v45, 4294901760
    %1483 = vmatpush1.msra.mxu0 %v1482
    %1484 = vmatprep.subr.mxu0 0.0
    %v1485 = vand.u32 %v46, 4294901760
    %1486 = vmatpush1.msra.mxu0 %v1485
    %1487 = vmatprep.subr.mxu0 0.0
    %v1488 = vand.u32 %v47, 4294901760
    %1489 = vmatpush1.msra.mxu0 %v1488
    %1490 = vmatprep.subr.mxu0 0.0
    %v1491 = vand.u32 %v48, 4294901760
    %1492 = vmatpush1.msra.mxu0 %v1491
    %1493 = vmatprep.subr.mxu0 0.0
    %v1494 = vand.u32 %v49, 4294901760
    %1495 = vmatpush1.msra.mxu0 %v1494
    %1496 = vmatprep.subr.mxu0 0.0
    %v1497 = vand.u32 %v50, 4294901760
    %1498 = vmatpush1.msra.mxu0 %v1497
    %1499 = vmatprep.subr.mxu0 0.0
    %v1500 = vand.u32 %v51, 4294901760
    %1501 = vmatpush1.msra.mxu0 %v1500
    %1502 = vmatprep.subr.mxu0 0.0
    %1503 = vmatpush1.msra.mxu0 0.0
    %1504 = vmatprep.subr.mxu0 0.0
    %1505 = vmatpush1.msra.mxu0 0.0
    %1506 = vmatprep.subr.mxu0 0.0
    %1507 = vmatpush1.msra.mxu0 0.0
    %1508 = vmatprep.subr.mxu0 0.0
    %1509 = vmatpush1.msra.mxu0 0.0
    %1510 = vmatprep.subr.mxu0 0.0
    %1511 = vmatpush1.msra.mxu0 0.0
    %1512 = vmatprep.subr.mxu0 0.0
    %1513 = vmatpush1.msra.mxu0 0.0
    %1514 = vmatprep.subr.mxu0 0.0
    %1515 = vmatpush1.msra.mxu0 0.0
    %1516 = vmatprep.subr.mxu0 0.0
    %1517 = vmatpush1.msra.mxu0 0.0
    %1518 = vmatprep.subr.mxu0 0.0
    %1519 = vmatpush1.msra.mxu0 0.0
    %1520 = vmatprep.subr.mxu0 0.0
    %1521 = vmatpush1.msra.mxu0 0.0
    %1522 = vmatprep.subr.mxu0 0.0
    %1523 = vmatpush1.msra.mxu0 0.0
    %1524 = vmatprep.subr.mxu0 0.0
    %1525 = vmatpush1.msra.mxu0 0.0
    %1526 = vmatprep.subr.mxu0 0.0
    %1527 = vmatpush1.msra.mxu0 0.0
    %1528 = vmatprep.subr.mxu0 0.0
    %1529 = vmatpush1.msra.mxu0 0.0
    %1530 = vmatprep.subr.mxu0 0.0
    %1531 = vmatpush1.msra.mxu0 0.0
    %1532 = vmatprep.subr.mxu0 0.0
    %1533 = vmatpush1.msra.mxu0 0.0
    %1534 = vmatprep.mubr.f32.mxu0 0.0
    %v1535 = vand.u32 %v568, 4294901760
    %v1536 = vsub.f32 %v568, %v1535
    %v1537 = vand.u32 %v1536, 4294901760
    %1538 = vmatmul.mubr.f32.gmra.mrb[0].mxu0 %v1537
    %v1539 = vpop.f32.mrb[0].mxu0
    %v1540 = vadd.f32 %v1444, %v1539
    %v1541 = vpop.f32.mrb[0].mxu0
    %1542 = vmatprep.mubr.f32.mxu0 0.0
    %v1543 = vand.u32 %v574, 4294901760
    %v1544 = vsub.f32 %v574, %v1543
    %v1545 = vand.u32 %v1544, 4294901760
    %1546 = vmatmul.mubr.f32.gmra.mrb[0].mxu0 %v1545
    %v1547 = vpop.f32.mrb[0].mxu0
    %v1548 = vadd.f32 %v1451, %v1547
    %v1549 = vpop.f32.mrb[0].mxu0
    %1550 = vdwg.mxu0
    %1551 = vmatprep.subr.mxu0 0.0
    %v1552 = vand.u32 %v36, 4294901760
    %v1553 = vsub.f32 %v36, %v1552
    %v1554 = vand.u32 %v1553, 4294901760
    %1555 = vmatpush1.msra.mxu0 %v1554
    %1556 = vmatprep.subr.mxu0 0.0
    %v1557 = vand.u32 %v37, 4294901760
    %v1558 = vsub.f32 %v37, %v1557
    %v1559 = vand.u32 %v1558, 4294901760
    %1560 = vmatpush1.msra.mxu0 %v1559
    %1561 = vmatprep.subr.mxu0 0.0
    %v1562 = vand.u32 %v38, 4294901760
    %v1563 = vsub.f32 %v38, %v1562
    %v1564 = vand.u32 %v1563, 4294901760
    %1565 = vmatpush1.msra.mxu0 %v1564
    %1566 = vmatprep.subr.mxu0 0.0
    %v1567 = vand.u32 %v39, 4294901760
    %v1568 = vsub.f32 %v39, %v1567
    %v1569 = vand.u32 %v1568, 4294901760
    %1570 = vmatpush1.msra.mxu0 %v1569
    %1571 = vmatprep.subr.mxu0 0.0
    %v1572 = vand.u32 %v40, 4294901760
    %v1573 = vsub.f32 %v40, %v1572
    %v1574 = vand.u32 %v1573, 4294901760
    %1575 = vmatpush1.msra.mxu0 %v1574
    %1576 = vmatprep.subr.mxu0 0.0
    %v1577 = vand.u32 %v41, 4294901760
    %v1578 = vsub.f32 %v41, %v1577
    %v1579 = vand.u32 %v1578, 4294901760
    %1580 = vmatpush1.msra.mxu0 %v1579
    %1581 = vmatprep.subr.mxu0 0.0
    %v1582 = vand.u32 %v42, 4294901760
    %v1583 = vsub.f32 %v42, %v1582
    %v1584 = vand.u32 %v1583, 4294901760
    %1585 = vmatpush1.msra.mxu0 %v1584
    %1586 = vmatprep.subr.mxu0 0.0
    %v1587 = vand.u32 %v43, 4294901760
    %v1588 = vsub.f32 %v43, %v1587
    %v1589 = vand.u32 %v1588, 4294901760
    %1590 = vmatpush1.msra.mxu0 %v1589
    %1591 = vmatprep.subr.mxu0 0.0
    %v1592 = vand.u32 %v44, 4294901760
    %v1593 = vsub.f32 %v44, %v1592
    %v1594 = vand.u32 %v1593, 4294901760
    %1595 = vmatpush1.msra.mxu0 %v1594
    %1596 = vmatprep.subr.mxu0 0.0
    %v1597 = vand.u32 %v45, 4294901760
    %v1598 = vsub.f32 %v45, %v1597
    %v1599 = vand.u32 %v1598, 4294901760
    %1600 = vmatpush1.msra.mxu0 %v1599
    %1601 = vmatprep.subr.mxu0 0.0
    %v1602 = vand.u32 %v46, 4294901760
    %v1603 = vsub.f32 %v46, %v1602
    %v1604 = vand.u32 %v1603, 4294901760
    %1605 = vmatpush1.msra.mxu0 %v1604
    %1606 = vmatprep.subr.mxu0 0.0
    %v1607 = vand.u32 %v47, 4294901760
    %v1608 = vsub.f32 %v47, %v1607
    %v1609 = vand.u32 %v1608, 4294901760
    %1610 = vmatpush1.msra.mxu0 %v1609
    %1611 = vmatprep.subr.mxu0 0.0
    %v1612 = vand.u32 %v48, 4294901760
    %v1613 = vsub.f32 %v48, %v1612
    %v1614 = vand.u32 %v1613, 4294901760
    %1615 = vmatpush1.msra.mxu0 %v1614
    %1616 = vmatprep.subr.mxu0 0.0
    %v1617 = vand.u32 %v49, 4294901760
    %v1618 = vsub.f32 %v49, %v1617
    %v1619 = vand.u32 %v1618, 4294901760
    %1620 = vmatpush1.msra.mxu0 %v1619
    %1621 = vmatprep.subr.mxu0 0.0
    %v1622 = vand.u32 %v50, 4294901760
    %v1623 = vsub.f32 %v50, %v1622
    %v1624 = vand.u32 %v1623, 4294901760
    %1625 = vmatpush1.msra.mxu0 %v1624
    %1626 = vmatprep.subr.mxu0 0.0
    %v1627 = vand.u32 %v51, 4294901760
    %v1628 = vsub.f32 %v51, %v1627
    %v1629 = vand.u32 %v1628, 4294901760
    %1630 = vmatpush1.msra.mxu0 %v1629
    %1631 = vmatprep.subr.mxu0 0.0
    %1632 = vmatpush1.msra.mxu0 0.0
    %1633 = vmatprep.subr.mxu0 0.0
    %1634 = vmatpush1.msra.mxu0 0.0
    %1635 = vmatprep.subr.mxu0 0.0
    %1636 = vmatpush1.msra.mxu0 0.0
    %1637 = vmatprep.subr.mxu0 0.0
    %1638 = vmatpush1.msra.mxu0 0.0
    %1639 = vmatprep.subr.mxu0 0.0
    %1640 = vmatpush1.msra.mxu0 0.0
    %1641 = vmatprep.subr.mxu0 0.0
    %1642 = vmatpush1.msra.mxu0 0.0
    %1643 = vmatprep.subr.mxu0 0.0
    %1644 = vmatpush1.msra.mxu0 0.0
    %1645 = vmatprep.subr.mxu0 0.0
    %1646 = vmatpush1.msra.mxu0 0.0
    %1647 = vmatprep.subr.mxu0 0.0
    %1648 = vmatpush1.msra.mxu0 0.0
    %1649 = vmatprep.subr.mxu0 0.0
    %1650 = vmatpush1.msra.mxu0 0.0
    %1651 = vmatprep.subr.mxu0 0.0
    %1652 = vmatpush1.msra.mxu0 0.0
    %1653 = vmatprep.subr.mxu0 0.0
    %1654 = vmatpush1.msra.mxu0 0.0
    %1655 = vmatprep.subr.mxu0 0.0
    %1656 = vmatpush1.msra.mxu0 0.0
    %1657 = vmatprep.subr.mxu0 0.0
    %1658 = vmatpush1.msra.mxu0 0.0
    %1659 = vmatprep.subr.mxu0 0.0
    %1660 = vmatpush1.msra.mxu0 0.0
    %1661 = vmatprep.subr.mxu0 0.0
    %1662 = vmatpush1.msra.mxu0 0.0
    %1663 = vmatprep.mubr.f32.mxu0 0.0
    %v1664 = vand.u32 %v568, 4294901760
    %1665 = vmatmul.mubr.f32.gmra.mrb[0].mxu0 %v1664
    %v1666 = vpop.f32.mrb[0].mxu0
    %v1667 = vadd.f32 %v1540, %v1666
    %v1668 = vpop.f32.mrb[0].mxu0
    %1669 = vmatprep.mubr.f32.mxu0 0.0
    %v1670 = vand.u32 %v574, 4294901760
    %1671 = vmatmul.mubr.f32.gmra.mrb[0].mxu0 %v1670
    %v1672 = vpop.f32.mrb[0].mxu0
    %v1673 = vadd.f32 %v1548, %v1672
    %v1674 = vpop.f32.mrb[0].mxu0
    %1675 = vdwg.mxu0
    %1676 = vmatprep.subr.mxu0 0.0
    %v1677 = vand.u32 %v36, 4294901760
    %1678 = vmatpush1.msra.mxu0 %v1677
    %1679 = vmatprep.subr.mxu0 0.0
    %v1680 = vand.u32 %v37, 4294901760
    %1681 = vmatpush1.msra.mxu0 %v1680
    %1682 = vmatprep.subr.mxu0 0.0
    %v1683 = vand.u32 %v38, 4294901760
    %1684 = vmatpush1.msra.mxu0 %v1683
    %1685 = vmatprep.subr.mxu0 0.0
    %v1686 = vand.u32 %v39, 4294901760
    %1687 = vmatpush1.msra.mxu0 %v1686
    %1688 = vmatprep.subr.mxu0 0.0
    %v1689 = vand.u32 %v40, 4294901760
    %1690 = vmatpush1.msra.mxu0 %v1689
    %1691 = vmatprep.subr.mxu0 0.0
    %v1692 = vand.u32 %v41, 4294901760
    %1693 = vmatpush1.msra.mxu0 %v1692
    %1694 = vmatprep.subr.mxu0 0.0
    %v1695 = vand.u32 %v42, 4294901760
    %1696 = vmatpush1.msra.mxu0 %v1695
    %1697 = vmatprep.subr.mxu0 0.0
    %v1698 = vand.u32 %v43, 4294901760
    %1699 = vmatpush1.msra.mxu0 %v1698
    %1700 = vmatprep.subr.mxu0 0.0
    %v1701 = vand.u32 %v44, 4294901760
    %1702 = vmatpush1.msra.mxu0 %v1701
    %1703 = vmatprep.subr.mxu0 0.0
    %v1704 = vand.u32 %v45, 4294901760
    %1705 = vmatpush1.msra.mxu0 %v1704
    %1706 = vmatprep.subr.mxu0 0.0
    %v1707 = vand.u32 %v46, 4294901760
    %1708 = vmatpush1.msra.mxu0 %v1707
    %1709 = vmatprep.subr.mxu0 0.0
    %v1710 = vand.u32 %v47, 4294901760
    %1711 = vmatpush1.msra.mxu0 %v1710
    %1712 = vmatprep.subr.mxu0 0.0
    %v1713 = vand.u32 %v48, 4294901760
    %1714 = vmatpush1.msra.mxu0 %v1713
    %1715 = vmatprep.subr.mxu0 0.0
    %v1716 = vand.u32 %v49, 4294901760
    %1717 = vmatpush1.msra.mxu0 %v1716
    %1718 = vmatprep.subr.mxu0 0.0
    %v1719 = vand.u32 %v50, 4294901760
    %1720 = vmatpush1.msra.mxu0 %v1719
    %1721 = vmatprep.subr.mxu0 0.0
    %v1722 = vand.u32 %v51, 4294901760
    %1723 = vmatpush1.msra.mxu0 %v1722
    %1724 = vmatprep.subr.mxu0 0.0
    %1725 = vmatpush1.msra.mxu0 0.0
    %1726 = vmatprep.subr.mxu0 0.0
    %1727 = vmatpush1.msra.mxu0 0.0
    %1728 = vmatprep.subr.mxu0 0.0
    %1729 = vmatpush1.msra.mxu0 0.0
    %1730 = vmatprep.subr.mxu0 0.0
    %1731 = vmatpush1.msra.mxu0 0.0
    %1732 = vmatprep.subr.mxu0 0.0
    %1733 = vmatpush1.msra.mxu0 0.0
    %1734 = vmatprep.subr.mxu0 0.0
    %1735 = vmatpush1.msra.mxu0 0.0
    %1736 = vmatprep.subr.mxu0 0.0
    %1737 = vmatpush1.msra.mxu0 0.0
    %1738 = vmatprep.subr.mxu0 0.0
    %1739 = vmatpush1.msra.mxu0 0.0
    %1740 = vmatprep.subr.mxu0 0.0
    %1741 = vmatpush1.msra.mxu0 0.0
    %1742 = vmatprep.subr.mxu0 0.0
    %1743 = vmatpush1.msra.mxu0 0.0
    %1744 = vmatprep.subr.mxu0 0.0
    %1745 = vmatpush1.msra.mxu0 0.0
    %1746 = vmatprep.subr.mxu0 0.0
    %1747 = vmatpush1.msra.mxu0 0.0
    %1748 = vmatprep.subr.mxu0 0.0
    %1749 = vmatpush1.msra.mxu0 0.0
    %1750 = vmatprep.subr.mxu0 0.0
    %1751 = vmatpush1.msra.mxu0 0.0
    %1752 = vmatprep.subr.mxu0 0.0
    %1753 = vmatpush1.msra.mxu0 0.0
    %1754 = vmatprep.subr.mxu0 0.0
    %1755 = vmatpush1.msra.mxu0 0.0
    %1756 = vmatprep.mubr.f32.mxu0 0.0
    %v1757 = vand.u32 %v568, 4294901760
    %1758 = vmatmul.mubr.f32.gmra.mrb[0].mxu0 %v1757
    %v1759 = vpop.f32.mrb[0].mxu0
    %v1760 = vadd.f32 %v1667, %v1759
    %v1761 = vpop.f32.mrb[0].mxu0
    %1762 = vmatprep.mubr.f32.mxu0 0.0
    %v1763 = vand.u32 %v574, 4294901760
    %1764 = vmatmul.mubr.f32.gmra.mrb[0].mxu0 %v1763
    %v1765 = vpop.f32.mrb[0].mxu0
    %v1766 = vadd.f32 %v1673, %v1765
    %v1767 = vpop.f32.mrb[0].mxu0
    %1768 = vdwg.mxu0
    %1769 = vmatprep.subr.mxu0 0.0
    %v1770 = vand.u32 %v52, 4294901760
    %1771 = vmatpush1.msra.mxu0 %v1770
    %1772 = vmatprep.subr.mxu0 0.0
    %v1773 = vand.u32 %v53, 4294901760
    %1774 = vmatpush1.msra.mxu0 %v1773
    %1775 = vmatprep.subr.mxu0 0.0
    %v1776 = vand.u32 %v54, 4294901760
    %1777 = vmatpush1.msra.mxu0 %v1776
    %1778 = vmatprep.subr.mxu0 0.0
    %v1779 = vand.u32 %v55, 4294901760
    %1780 = vmatpush1.msra.mxu0 %v1779
    %1781 = vmatprep.subr.mxu0 0.0
    %v1782 = vand.u32 %v56, 4294901760
    %1783 = vmatpush1.msra.mxu0 %v1782
    %1784 = vmatprep.subr.mxu0 0.0
    %v1785 = vand.u32 %v57, 4294901760
    %1786 = vmatpush1.msra.mxu0 %v1785
    %1787 = vmatprep.subr.mxu0 0.0
    %v1788 = vand.u32 %v58, 4294901760
    %1789 = vmatpush1.msra.mxu0 %v1788
    %1790 = vmatprep.subr.mxu0 0.0
    %v1791 = vand.u32 %v59, 4294901760
    %1792 = vmatpush1.msra.mxu0 %v1791
    %1793 = vmatprep.subr.mxu0 0.0
    %v1794 = vand.u32 %v60, 4294901760
    %1795 = vmatpush1.msra.mxu0 %v1794
    %1796 = vmatprep.subr.mxu0 0.0
    %v1797 = vand.u32 %v61, 4294901760
    %1798 = vmatpush1.msra.mxu0 %v1797
    %1799 = vmatprep.subr.mxu0 0.0
    %v1800 = vand.u32 %v62, 4294901760
    %1801 = vmatpush1.msra.mxu0 %v1800
    %1802 = vmatprep.subr.mxu0 0.0
    %v1803 = vand.u32 %v63, 4294901760
    %1804 = vmatpush1.msra.mxu0 %v1803
    %1805 = vmatprep.subr.mxu0 0.0
    %v1806 = vand.u32 %v64, 4294901760
    %1807 = vmatpush1.msra.mxu0 %v1806
    %1808 = vmatprep.subr.mxu0 0.0
    %v1809 = vand.u32 %v65, 4294901760
    %1810 = vmatpush1.msra.mxu0 %v1809
    %1811 = vmatprep.subr.mxu0 0.0
    %v1812 = vand.u32 %v66, 4294901760
    %1813 = vmatpush1.msra.mxu0 %v1812
    %1814 = vmatprep.subr.mxu0 0.0
    %v1815 = vand.u32 %v67, 4294901760
    %1816 = vmatpush1.msra.mxu0 %v1815
    %1817 = vmatprep.subr.mxu0 0.0
    %1818 = vmatpush1.msra.mxu0 0.0
    %1819 = vmatprep.subr.mxu0 0.0
    %1820 = vmatpush1.msra.mxu0 0.0
    %1821 = vmatprep.subr.mxu0 0.0
    %1822 = vmatpush1.msra.mxu0 0.0
    %1823 = vmatprep.subr.mxu0 0.0
    %1824 = vmatpush1.msra.mxu0 0.0
    %1825 = vmatprep.subr.mxu0 0.0
    %1826 = vmatpush1.msra.mxu0 0.0
    %1827 = vmatprep.subr.mxu0 0.0
    %1828 = vmatpush1.msra.mxu0 0.0
    %1829 = vmatprep.subr.mxu0 0.0
    %1830 = vmatpush1.msra.mxu0 0.0
    %1831 = vmatprep.subr.mxu0 0.0
    %1832 = vmatpush1.msra.mxu0 0.0
    %1833 = vmatprep.subr.mxu0 0.0
    %1834 = vmatpush1.msra.mxu0 0.0
    %1835 = vmatprep.subr.mxu0 0.0
    %1836 = vmatpush1.msra.mxu0 0.0
    %1837 = vmatprep.subr.mxu0 0.0
    %1838 = vmatpush1.msra.mxu0 0.0
    %1839 = vmatprep.subr.mxu0 0.0
    %1840 = vmatpush1.msra.mxu0 0.0
    %1841 = vmatprep.subr.mxu0 0.0
    %1842 = vmatpush1.msra.mxu0 0.0
    %1843 = vmatprep.subr.mxu0 0.0
    %1844 = vmatpush1.msra.mxu0 0.0
    %1845 = vmatprep.subr.mxu0 0.0
    %1846 = vmatpush1.msra.mxu0 0.0
    %1847 = vmatprep.subr.mxu0 0.0
    %1848 = vmatpush1.msra.mxu0 0.0
    %1849 = vmatprep.mubr.f32.mxu0 0.0
    %v1850 = vand.u32 %v1076, 4294901760
    %v1851 = vsub.f32 %v1076, %v1850
    %v1852 = vand.u32 %v1851, 4294901760
    %v1853 = vsub.f32 %v1851, %v1852
    %v1854 = vand.u32 %v1853, 4294901760
    %1855 = vmatmul.mubr.f32.gmra.mrb[0].mxu0 %v1854
    %v1856 = vpop.f32.mrb[0].mxu0
    %v1857 = vadd.f32 0.0, %v1856
    %v1858 = vpop.f32.mrb[0].mxu0
    %1859 = vmatprep.mubr.f32.mxu0 0.0
    %v1860 = vand.u32 %v1082, 4294901760
    %v1861 = vsub.f32 %v1082, %v1860
    %v1862 = vand.u32 %v1861, 4294901760
    %v1863 = vsub.f32 %v1861, %v1862
    %v1864 = vand.u32 %v1863, 4294901760
    %1865 = vmatmul.mubr.f32.gmra.mrb[0].mxu0 %v1864
    %v1866 = vpop.f32.mrb[0].mxu0
    %v1867 = vadd.f32 0.0, %v1866
    %v1868 = vpop.f32.mrb[0].mxu0
    %1869 = vdwg.mxu0
    %1870 = vmatprep.subr.mxu0 0.0
    %v1871 = vand.u32 %v52, 4294901760
    %v1872 = vsub.f32 %v52, %v1871
    %v1873 = vand.u32 %v1872, 4294901760
    %v1874 = vsub.f32 %v1872, %v1873
    %v1875 = vand.u32 %v1874, 4294901760
    %1876 = vmatpush1.msra.mxu0 %v1875
    %1877 = vmatprep.subr.mxu0 0.0
    %v1878 = vand.u32 %v53, 4294901760
    %v1879 = vsub.f32 %v53, %v1878
    %v1880 = vand.u32 %v1879, 4294901760
    %v1881 = vsub.f32 %v1879, %v1880
    %v1882 = vand.u32 %v1881, 4294901760
    %1883 = vmatpush1.msra.mxu0 %v1882
    %1884 = vmatprep.subr.mxu0 0.0
    %v1885 = vand.u32 %v54, 4294901760
    %v1886 = vsub.f32 %v54, %v1885
    %v1887 = vand.u32 %v1886, 4294901760
    %v1888 = vsub.f32 %v1886, %v1887
    %v1889 = vand.u32 %v1888, 4294901760
    %1890 = vmatpush1.msra.mxu0 %v1889
    %1891 = vmatprep.subr.mxu0 0.0
    %v1892 = vand.u32 %v55, 4294901760
    %v1893 = vsub.f32 %v55, %v1892
    %v1894 = vand.u32 %v1893, 4294901760
    %v1895 = vsub.f32 %v1893, %v1894
    %v1896 = vand.u32 %v1895, 4294901760
    %1897 = vmatpush1.msra.mxu0 %v1896
    %1898 = vmatprep.subr.mxu0 0.0
    %v1899 = vand.u32 %v56, 4294901760
    %v1900 = vsub.f32 %v56, %v1899
    %v1901 = vand.u32 %v1900, 4294901760
    %v1902 = vsub.f32 %v1900, %v1901
    %v1903 = vand.u32 %v1902, 4294901760
    %1904 = vmatpush1.msra.mxu0 %v1903
    %1905 = vmatprep.subr.mxu0 0.0
    %v1906 = vand.u32 %v57, 4294901760
    %v1907 = vsub.f32 %v57, %v1906
    %v1908 = vand.u32 %v1907, 4294901760
    %v1909 = vsub.f32 %v1907, %v1908
    %v1910 = vand.u32 %v1909, 4294901760
    %1911 = vmatpush1.msra.mxu0 %v1910
    %1912 = vmatprep.subr.mxu0 0.0
    %v1913 = vand.u32 %v58, 4294901760
    %v1914 = vsub.f32 %v58, %v1913
    %v1915 = vand.u32 %v1914, 4294901760
    %v1916 = vsub.f32 %v1914, %v1915
    %v1917 = vand.u32 %v1916, 4294901760
    %1918 = vmatpush1.msra.mxu0 %v1917
    %1919 = vmatprep.subr.mxu0 0.0
    %v1920 = vand.u32 %v59, 4294901760
    %v1921 = vsub.f32 %v59, %v1920
    %v1922 = vand.u32 %v1921, 4294901760
    %v1923 = vsub.f32 %v1921, %v1922
    %v1924 = vand.u32 %v1923, 4294901760
    %1925 = vmatpush1.msra.mxu0 %v1924
    %1926 = vmatprep.subr.mxu0 0.0
    %v1927 = vand.u32 %v60, 4294901760
    %v1928 = vsub.f32 %v60, %v1927
    %v1929 = vand.u32 %v1928, 4294901760
    %v1930 = vsub.f32 %v1928, %v1929
    %v1931 = vand.u32 %v1930, 4294901760
    %1932 = vmatpush1.msra.mxu0 %v1931
    %1933 = vmatprep.subr.mxu0 0.0
    %v1934 = vand.u32 %v61, 4294901760
    %v1935 = vsub.f32 %v61, %v1934
    %v1936 = vand.u32 %v1935, 4294901760
    %v1937 = vsub.f32 %v1935, %v1936
    %v1938 = vand.u32 %v1937, 4294901760
    %1939 = vmatpush1.msra.mxu0 %v1938
    %1940 = vmatprep.subr.mxu0 0.0
    %v1941 = vand.u32 %v62, 4294901760
    %v1942 = vsub.f32 %v62, %v1941
    %v1943 = vand.u32 %v1942, 4294901760
    %v1944 = vsub.f32 %v1942, %v1943
    %v1945 = vand.u32 %v1944, 4294901760
    %1946 = vmatpush1.msra.mxu0 %v1945
    %1947 = vmatprep.subr.mxu0 0.0
    %v1948 = vand.u32 %v63, 4294901760
    %v1949 = vsub.f32 %v63, %v1948
    %v1950 = vand.u32 %v1949, 4294901760
    %v1951 = vsub.f32 %v1949, %v1950
    %v1952 = vand.u32 %v1951, 4294901760
    %1953 = vmatpush1.msra.mxu0 %v1952
    %1954 = vmatprep.subr.mxu0 0.0
    %v1955 = vand.u32 %v64, 4294901760
    %v1956 = vsub.f32 %v64, %v1955
    %v1957 = vand.u32 %v1956, 4294901760
    %v1958 = vsub.f32 %v1956, %v1957
    %v1959 = vand.u32 %v1958, 4294901760
    %1960 = vmatpush1.msra.mxu0 %v1959
    %1961 = vmatprep.subr.mxu0 0.0
    %v1962 = vand.u32 %v65, 4294901760
    %v1963 = vsub.f32 %v65, %v1962
    %v1964 = vand.u32 %v1963, 4294901760
    %v1965 = vsub.f32 %v1963, %v1964
    %v1966 = vand.u32 %v1965, 4294901760
    %1967 = vmatpush1.msra.mxu0 %v1966
    %1968 = vmatprep.subr.mxu0 0.0
    %v1969 = vand.u32 %v66, 4294901760
    %v1970 = vsub.f32 %v66, %v1969
    %v1971 = vand.u32 %v1970, 4294901760
    %v1972 = vsub.f32 %v1970, %v1971
    %v1973 = vand.u32 %v1972, 4294901760
    %1974 = vmatpush1.msra.mxu0 %v1973
    %1975 = vmatprep.subr.mxu0 0.0
    %v1976 = vand.u32 %v67, 4294901760
    %v1977 = vsub.f32 %v67, %v1976
    %v1978 = vand.u32 %v1977, 4294901760
    %v1979 = vsub.f32 %v1977, %v1978
    %v1980 = vand.u32 %v1979, 4294901760
    %1981 = vmatpush1.msra.mxu0 %v1980
    %1982 = vmatprep.subr.mxu0 0.0
    %1983 = vmatpush1.msra.mxu0 0.0
    %1984 = vmatprep.subr.mxu0 0.0
    %1985 = vmatpush1.msra.mxu0 0.0
    %1986 = vmatprep.subr.mxu0 0.0
    %1987 = vmatpush1.msra.mxu0 0.0
    %1988 = vmatprep.subr.mxu0 0.0
    %1989 = vmatpush1.msra.mxu0 0.0
    %1990 = vmatprep.subr.mxu0 0.0
    %1991 = vmatpush1.msra.mxu0 0.0
    %1992 = vmatprep.subr.mxu0 0.0
    %1993 = vmatpush1.msra.mxu0 0.0
    %1994 = vmatprep.subr.mxu0 0.0
    %1995 = vmatpush1.msra.mxu0 0.0
    %1996 = vmatprep.subr.mxu0 0.0
    %1997 = vmatpush1.msra.mxu0 0.0
    %1998 = vmatprep.subr.mxu0 0.0
    %1999 = vmatpush1.msra.mxu0 0.0
    %2000 = vmatprep.subr.mxu0 0.0
    %2001 = vmatpush1.msra.mxu0 0.0
    %2002 = vmatprep.subr.mxu0 0.0
    %2003 = vmatpush1.msra.mxu0 0.0
    %2004 = vmatprep.subr.mxu0 0.0
    %2005 = vmatpush1.msra.mxu0 0.0
    %2006 = vmatprep.subr.mxu0 0.0
    %2007 = vmatpush1.msra.mxu0 0.0
    %2008 = vmatprep.subr.mxu0 0.0
    %2009 = vmatpush1.msra.mxu0 0.0
    %2010 = vmatprep.subr.mxu0 0.0
    %2011 = vmatpush1.msra.mxu0 0.0
    %2012 = vmatprep.subr.mxu0 0.0
    %2013 = vmatpush1.msra.mxu0 0.0
    %2014 = vmatprep.mubr.f32.mxu0 0.0
    %v2015 = vand.u32 %v1076, 4294901760
    %2016 = vmatmul.mubr.f32.gmra.mrb[0].mxu0 %v2015
    %v2017 = vpop.f32.mrb[0].mxu0
    %v2018 = vadd.f32 %v1857, %v2017
    %v2019 = vpop.f32.mrb[0].mxu0
    %2020 = vmatprep.mubr.f32.mxu0 0.0
    %v2021 = vand.u32 %v1082, 4294901760
    %2022 = vmatmul.mubr.f32.gmra.mrb[0].mxu0 %v2021
    %v2023 = vpop.f32.mrb[0].mxu0
    %v2024 = vadd.f32 %v1867, %v2023
    %v2025 = vpop.f32.mrb[0].mxu0
    %2026 = vdwg.mxu0
    %2027 = vmatprep.subr.mxu0 0.0
    %v2028 = vand.u32 %v52, 4294901760
    %v2029 = vsub.f32 %v52, %v2028
    %2030 = vmatpush1.msra.mxu0 %v2029
    %2031 = vmatprep.subr.mxu0 0.0
    %v2032 = vand.u32 %v53, 4294901760
    %v2033 = vsub.f32 %v53, %v2032
    %2034 = vmatpush1.msra.mxu0 %v2033
    %2035 = vmatprep.subr.mxu0 0.0
    %v2036 = vand.u32 %v54, 4294901760
    %v2037 = vsub.f32 %v54, %v2036
    %2038 = vmatpush1.msra.mxu0 %v2037
    %2039 = vmatprep.subr.mxu0 0.0
    %v2040 = vand.u32 %v55, 4294901760
    %v2041 = vsub.f32 %v55, %v2040
    %2042 = vmatpush1.msra.mxu0 %v2041
    %2043 = vmatprep.subr.mxu0 0.0
    %v2044 = vand.u32 %v56, 4294901760
    %v2045 = vsub.f32 %v56, %v2044
    %2046 = vmatpush1.msra.mxu0 %v2045
    %2047 = vmatprep.subr.mxu0 0.0
    %v2048 = vand.u32 %v57, 4294901760
    %v2049 = vsub.f32 %v57, %v2048
    %2050 = vmatpush1.msra.mxu0 %v2049
    %2051 = vmatprep.subr.mxu0 0.0
    %v2052 = vand.u32 %v58, 4294901760
    %v2053 = vsub.f32 %v58, %v2052
    %2054 = vmatpush1.msra.mxu0 %v2053
    %2055 = vmatprep.subr.mxu0 0.0
    %v2056 = vand.u32 %v59, 4294901760
    %v2057 = vsub.f32 %v59, %v2056
    %2058 = vmatpush1.msra.mxu0 %v2057
    %2059 = vmatprep.subr.mxu0 0.0
    %v2060 = vand.u32 %v60, 4294901760
    %v2061 = vsub.f32 %v60, %v2060
    %2062 = vmatpush1.msra.mxu0 %v2061
    %2063 = vmatprep.subr.mxu0 0.0
    %v2064 = vand.u32 %v61, 4294901760
    %v2065 = vsub.f32 %v61, %v2064
    %2066 = vmatpush1.msra.mxu0 %v2065
    %2067 = vmatprep.subr.mxu0 0.0
    %v2068 = vand.u32 %v62, 4294901760
    %v2069 = vsub.f32 %v62, %v2068
    %2070 = vmatpush1.msra.mxu0 %v2069
    %2071 = vmatprep.subr.mxu0 0.0
    %v2072 = vand.u32 %v63, 4294901760
    %v2073 = vsub.f32 %v63, %v2072
    %2074 = vmatpush1.msra.mxu0 %v2073
    %2075 = vmatprep.subr.mxu0 0.0
    %v2076 = vand.u32 %v64, 4294901760
    %v2077 = vsub.f32 %v64, %v2076
    %2078 = vmatpush1.msra.mxu0 %v2077
    %2079 = vmatprep.subr.mxu0 0.0
    %v2080 = vand.u32 %v65, 4294901760
    %v2081 = vsub.f32 %v65, %v2080
    %2082 = vmatpush1.msra.mxu0 %v2081
    %2083 = vmatprep.subr.mxu0 0.0
    %v2084 = vand.u32 %v66, 4294901760
    %v2085 = vsub.f32 %v66, %v2084
    %2086 = vmatpush1.msra.mxu0 %v2085
    %2087 = vmatprep.subr.mxu0 0.0
    %v2088 = vand.u32 %v67, 4294901760
    %v2089 = vsub.f32 %v67, %v2088
    %2090 = vmatpush1.msra.mxu0 %v2089
    %2091 = vmatprep.subr.mxu0 0.0
    %2092 = vmatpush1.msra.mxu0 0.0
    %2093 = vmatprep.subr.mxu0 0.0
    %2094 = vmatpush1.msra.mxu0 0.0
    %2095 = vmatprep.subr.mxu0 0.0
    %2096 = vmatpush1.msra.mxu0 0.0
    %2097 = vmatprep.subr.mxu0 0.0
    %2098 = vmatpush1.msra.mxu0 0.0
    %2099 = vmatprep.subr.mxu0 0.0
    %2100 = vmatpush1.msra.mxu0 0.0
    %2101 = vmatprep.subr.mxu0 0.0
    %2102 = vmatpush1.msra.mxu0 0.0
    %2103 = vmatprep.subr.mxu0 0.0
    %2104 = vmatpush1.msra.mxu0 0.0
    %2105 = vmatprep.subr.mxu0 0.0
    %2106 = vmatpush1.msra.mxu0 0.0
    %2107 = vmatprep.subr.mxu0 0.0
    %2108 = vmatpush1.msra.mxu0 0.0
    %2109 = vmatprep.subr.mxu0 0.0
    %2110 = vmatpush1.msra.mxu0 0.0
    %2111 = vmatprep.subr.mxu0 0.0
    %2112 = vmatpush1.msra.mxu0 0.0
    %2113 = vmatprep.subr.mxu0 0.0
    %2114 = vmatpush1.msra.mxu0 0.0
    %2115 = vmatprep.subr.mxu0 0.0
    %2116 = vmatpush1.msra.mxu0 0.0
    %2117 = vmatprep.subr.mxu0 0.0
    %2118 = vmatpush1.msra.mxu0 0.0
    %2119 = vmatprep.subr.mxu0 0.0
    %2120 = vmatpush1.msra.mxu0 0.0
    %2121 = vmatprep.subr.mxu0 0.0
    %2122 = vmatpush1.msra.mxu0 0.0
    %2123 = vmatprep.mubr.f32.mxu0 0.0
    %v2124 = vand.u32 %v1076, 4294901760
    %v2125 = vsub.f32 %v1076, %v2124
    %2126 = vmatmul.mubr.f32.gmra.mrb[0].mxu0 %v2125
    %v2127 = vpop.f32.mrb[0].mxu0
    %v2128 = vadd.f32 %v2018, %v2127
    %v2129 = vpop.f32.mrb[0].mxu0
    %2130 = vmatprep.mubr.f32.mxu0 0.0
    %v2131 = vand.u32 %v1082, 4294901760
    %v2132 = vsub.f32 %v1082, %v2131
    %2133 = vmatmul.mubr.f32.gmra.mrb[0].mxu0 %v2132
    %v2134 = vpop.f32.mrb[0].mxu0
    %v2135 = vadd.f32 %v2024, %v2134
    %v2136 = vpop.f32.mrb[0].mxu0
    %2137 = vdwg.mxu0
    %2138 = vmatprep.subr.mxu0 0.0
    %v2139 = vand.u32 %v52, 4294901760
    %2140 = vmatpush1.msra.mxu0 %v2139
    %2141 = vmatprep.subr.mxu0 0.0
    %v2142 = vand.u32 %v53, 4294901760
    %2143 = vmatpush1.msra.mxu0 %v2142
    %2144 = vmatprep.subr.mxu0 0.0
    %v2145 = vand.u32 %v54, 4294901760
    %2146 = vmatpush1.msra.mxu0 %v2145
    %2147 = vmatprep.subr.mxu0 0.0
    %v2148 = vand.u32 %v55, 4294901760
    %2149 = vmatpush1.msra.mxu0 %v2148
    %2150 = vmatprep.subr.mxu0 0.0
    %v2151 = vand.u32 %v56, 4294901760
    %2152 = vmatpush1.msra.mxu0 %v2151
    %2153 = vmatprep.subr.mxu0 0.0
    %v2154 = vand.u32 %v57, 4294901760
    %2155 = vmatpush1.msra.mxu0 %v2154
    %2156 = vmatprep.subr.mxu0 0.0
    %v2157 = vand.u32 %v58, 4294901760
    %2158 = vmatpush1.msra.mxu0 %v2157
    %2159 = vmatprep.subr.mxu0 0.0
    %v2160 = vand.u32 %v59, 4294901760
    %2161 = vmatpush1.msra.mxu0 %v2160
    %2162 = vmatprep.subr.mxu0 0.0
    %v2163 = vand.u32 %v60, 4294901760
    %2164 = vmatpush1.msra.mxu0 %v2163
    %2165 = vmatprep.subr.mxu0 0.0
    %v2166 = vand.u32 %v61, 4294901760
    %2167 = vmatpush1.msra.mxu0 %v2166
    %2168 = vmatprep.subr.mxu0 0.0
    %v2169 = vand.u32 %v62, 4294901760
    %2170 = vmatpush1.msra.mxu0 %v2169
    %2171 = vmatprep.subr.mxu0 0.0
    %v2172 = vand.u32 %v63, 4294901760
    %2173 = vmatpush1.msra.mxu0 %v2172
    %2174 = vmatprep.subr.mxu0 0.0
    %v2175 = vand.u32 %v64, 4294901760
    %2176 = vmatpush1.msra.mxu0 %v2175
    %2177 = vmatprep.subr.mxu0 0.0
    %v2178 = vand.u32 %v65, 4294901760
    %2179 = vmatpush1.msra.mxu0 %v2178
    %2180 = vmatprep.subr.mxu0 0.0
    %v2181 = vand.u32 %v66, 4294901760
    %2182 = vmatpush1.msra.mxu0 %v2181
    %2183 = vmatprep.subr.mxu0 0.0
    %v2184 = vand.u32 %v67, 4294901760
    %2185 = vmatpush1.msra.mxu0 %v2184
    %2186 = vmatprep.subr.mxu0 0.0
    %2187 = vmatpush1.msra.mxu0 0.0
    %2188 = vmatprep.subr.mxu0 0.0
    %2189 = vmatpush1.msra.mxu0 0.0
    %2190 = vmatprep.subr.mxu0 0.0
    %2191 = vmatpush1.msra.mxu0 0.0
    %2192 = vmatprep.subr.mxu0 0.0
    %2193 = vmatpush1.msra.mxu0 0.0
    %2194 = vmatprep.subr.mxu0 0.0
    %2195 = vmatpush1.msra.mxu0 0.0
    %2196 = vmatprep.subr.mxu0 0.0
    %2197 = vmatpush1.msra.mxu0 0.0
    %2198 = vmatprep.subr.mxu0 0.0
    %2199 = vmatpush1.msra.mxu0 0.0
    %2200 = vmatprep.subr.mxu0 0.0
    %2201 = vmatpush1.msra.mxu0 0.0
    %2202 = vmatprep.subr.mxu0 0.0
    %2203 = vmatpush1.msra.mxu0 0.0
    %2204 = vmatprep.subr.mxu0 0.0
    %2205 = vmatpush1.msra.mxu0 0.0
    %2206 = vmatprep.subr.mxu0 0.0
    %2207 = vmatpush1.msra.mxu0 0.0
    %2208 = vmatprep.subr.mxu0 0.0
    %2209 = vmatpush1.msra.mxu0 0.0
    %2210 = vmatprep.subr.mxu0 0.0
    %2211 = vmatpush1.msra.mxu0 0.0
    %2212 = vmatprep.subr.mxu0 0.0
    %2213 = vmatpush1.msra.mxu0 0.0
    %2214 = vmatprep.subr.mxu0 0.0
    %2215 = vmatpush1.msra.mxu0 0.0
    %2216 = vmatprep.subr.mxu0 0.0
    %2217 = vmatpush1.msra.mxu0 0.0
    %2218 = vmatprep.mubr.f32.mxu0 0.0
    %v2219 = vand.u32 %v1076, 4294901760
    %v2220 = vsub.f32 %v1076, %v2219
    %v2221 = vand.u32 %v2220, 4294901760
    %2222 = vmatmul.mubr.f32.gmra.mrb[0].mxu0 %v2221
    %v2223 = vpop.f32.mrb[0].mxu0
    %v2224 = vadd.f32 %v2128, %v2223
    %v2225 = vpop.f32.mrb[0].mxu0
    %2226 = vmatprep.mubr.f32.mxu0 0.0
    %v2227 = vand.u32 %v1082, 4294901760
    %v2228 = vsub.f32 %v1082, %v2227
    %v2229 = vand.u32 %v2228, 4294901760
    %2230 = vmatmul.mubr.f32.gmra.mrb[0].mxu0 %v2229
    %v2231 = vpop.f32.mrb[0].mxu0
    %v2232 = vadd.f32 %v2135, %v2231
    %v2233 = vpop.f32.mrb[0].mxu0
    %2234 = vdwg.mxu0
    %2235 = vmatprep.subr.mxu0 0.0
    %v2236 = vand.u32 %v52, 4294901760
    %v2237 = vsub.f32 %v52, %v2236
    %v2238 = vand.u32 %v2237, 4294901760
    %2239 = vmatpush1.msra.mxu0 %v2238
    %2240 = vmatprep.subr.mxu0 0.0
    %v2241 = vand.u32 %v53, 4294901760
    %v2242 = vsub.f32 %v53, %v2241
    %v2243 = vand.u32 %v2242, 4294901760
    %2244 = vmatpush1.msra.mxu0 %v2243
    %2245 = vmatprep.subr.mxu0 0.0
    %v2246 = vand.u32 %v54, 4294901760
    %v2247 = vsub.f32 %v54, %v2246
    %v2248 = vand.u32 %v2247, 4294901760
    %2249 = vmatpush1.msra.mxu0 %v2248
    %2250 = vmatprep.subr.mxu0 0.0
    %v2251 = vand.u32 %v55, 4294901760
    %v2252 = vsub.f32 %v55, %v2251
    %v2253 = vand.u32 %v2252, 4294901760
    %2254 = vmatpush1.msra.mxu0 %v2253
    %2255 = vmatprep.subr.mxu0 0.0
    %v2256 = vand.u32 %v56, 4294901760
    %v2257 = vsub.f32 %v56, %v2256
    %v2258 = vand.u32 %v2257, 4294901760
    %2259 = vmatpush1.msra.mxu0 %v2258
    %2260 = vmatprep.subr.mxu0 0.0
    %v2261 = vand.u32 %v57, 4294901760
    %v2262 = vsub.f32 %v57, %v2261
    %v2263 = vand.u32 %v2262, 4294901760
    %2264 = vmatpush1.msra.mxu0 %v2263
    %2265 = vmatprep.subr.mxu0 0.0
    %v2266 = vand.u32 %v58, 4294901760
    %v2267 = vsub.f32 %v58, %v2266
    %v2268 = vand.u32 %v2267, 4294901760
    %2269 = vmatpush1.msra.mxu0 %v2268
    %2270 = vmatprep.subr.mxu0 0.0
    %v2271 = vand.u32 %v59, 4294901760
    %v2272 = vsub.f32 %v59, %v2271
    %v2273 = vand.u32 %v2272, 4294901760
    %2274 = vmatpush1.msra.mxu0 %v2273
    %2275 = vmatprep.subr.mxu0 0.0
    %v2276 = vand.u32 %v60, 4294901760
    %v2277 = vsub.f32 %v60, %v2276
    %v2278 = vand.u32 %v2277, 4294901760
    %2279 = vmatpush1.msra.mxu0 %v2278
    %2280 = vmatprep.subr.mxu0 0.0
    %v2281 = vand.u32 %v61, 4294901760
    %v2282 = vsub.f32 %v61, %v2281
    %v2283 = vand.u32 %v2282, 4294901760
    %2284 = vmatpush1.msra.mxu0 %v2283
    %2285 = vmatprep.subr.mxu0 0.0
    %v2286 = vand.u32 %v62, 4294901760
    %v2287 = vsub.f32 %v62, %v2286
    %v2288 = vand.u32 %v2287, 4294901760
    %2289 = vmatpush1.msra.mxu0 %v2288
    %2290 = vmatprep.subr.mxu0 0.0
    %v2291 = vand.u32 %v63, 4294901760
    %v2292 = vsub.f32 %v63, %v2291
    %v2293 = vand.u32 %v2292, 4294901760
    %2294 = vmatpush1.msra.mxu0 %v2293
    %2295 = vmatprep.subr.mxu0 0.0
    %v2296 = vand.u32 %v64, 4294901760
    %v2297 = vsub.f32 %v64, %v2296
    %v2298 = vand.u32 %v2297, 4294901760
    %2299 = vmatpush1.msra.mxu0 %v2298
    %2300 = vmatprep.subr.mxu0 0.0
    %v2301 = vand.u32 %v65, 4294901760
    %v2302 = vsub.f32 %v65, %v2301
    %v2303 = vand.u32 %v2302, 4294901760
    %2304 = vmatpush1.msra.mxu0 %v2303
    %2305 = vmatprep.subr.mxu0 0.0
    %v2306 = vand.u32 %v66, 4294901760
    %v2307 = vsub.f32 %v66, %v2306
    %v2308 = vand.u32 %v2307, 4294901760
    %2309 = vmatpush1.msra.mxu0 %v2308
    %2310 = vmatprep.subr.mxu0 0.0
    %v2311 = vand.u32 %v67, 4294901760
    %v2312 = vsub.f32 %v67, %v2311
    %v2313 = vand.u32 %v2312, 4294901760
    %2314 = vmatpush1.msra.mxu0 %v2313
    %2315 = vmatprep.subr.mxu0 0.0
    %2316 = vmatpush1.msra.mxu0 0.0
    %2317 = vmatprep.subr.mxu0 0.0
    %2318 = vmatpush1.msra.mxu0 0.0
    %2319 = vmatprep.subr.mxu0 0.0
    %2320 = vmatpush1.msra.mxu0 0.0
    %2321 = vmatprep.subr.mxu0 0.0
    %2322 = vmatpush1.msra.mxu0 0.0
    %2323 = vmatprep.subr.mxu0 0.0
    %2324 = vmatpush1.msra.mxu0 0.0
    %2325 = vmatprep.subr.mxu0 0.0
    %2326 = vmatpush1.msra.mxu0 0.0
    %2327 = vmatprep.subr.mxu0 0.0
    %2328 = vmatpush1.msra.mxu0 0.0
    %2329 = vmatprep.subr.mxu0 0.0
    %2330 = vmatpush1.msra.mxu0 0.0
    %2331 = vmatprep.subr.mxu0 0.0
    %2332 = vmatpush1.msra.mxu0 0.0
    %2333 = vmatprep.subr.mxu0 0.0
    %2334 = vmatpush1.msra.mxu0 0.0
    %2335 = vmatprep.subr.mxu0 0.0
    %2336 = vmatpush1.msra.mxu0 0.0
    %2337 = vmatprep.subr.mxu0 0.0
    %2338 = vmatpush1.msra.mxu0 0.0
    %2339 = vmatprep.subr.mxu0 0.0
    %2340 = vmatpush1.msra.mxu0 0.0
    %2341 = vmatprep.subr.mxu0 0.0
    %2342 = vmatpush1.msra.mxu0 0.0
    %2343 = vmatprep.subr.mxu0 0.0
    %2344 = vmatpush1.msra.mxu0 0.0
    %2345 = vmatprep.subr.mxu0 0.0
    %2346 = vmatpush1.msra.mxu0 0.0
    %2347 = vmatprep.mubr.f32.mxu0 0.0
    %v2348 = vand.u32 %v1076, 4294901760
    %2349 = vmatmul.mubr.f32.gmra.mrb[0].mxu0 %v2348
    %v2350 = vpop.f32.mrb[0].mxu0
    %v2351 = vadd.f32 %v2224, %v2350
    %v2352 = vpop.f32.mrb[0].mxu0
    %2353 = vmatprep.mubr.f32.mxu0 0.0
    %v2354 = vand.u32 %v1082, 4294901760
    %2355 = vmatmul.mubr.f32.gmra.mrb[0].mxu0 %v2354
    %v2356 = vpop.f32.mrb[0].mxu0
    %v2357 = vadd.f32 %v2232, %v2356
    %v2358 = vpop.f32.mrb[0].mxu0
    %2359 = vdwg.mxu0
    %2360 = vmatprep.subr.mxu0 0.0
    %v2361 = vand.u32 %v52, 4294901760
    %2362 = vmatpush1.msra.mxu0 %v2361
    %2363 = vmatprep.subr.mxu0 0.0
    %v2364 = vand.u32 %v53, 4294901760
    %2365 = vmatpush1.msra.mxu0 %v2364
    %2366 = vmatprep.subr.mxu0 0.0
    %v2367 = vand.u32 %v54, 4294901760
    %2368 = vmatpush1.msra.mxu0 %v2367
    %2369 = vmatprep.subr.mxu0 0.0
    %v2370 = vand.u32 %v55, 4294901760
    %2371 = vmatpush1.msra.mxu0 %v2370
    %2372 = vmatprep.subr.mxu0 0.0
    %v2373 = vand.u32 %v56, 4294901760
    %2374 = vmatpush1.msra.mxu0 %v2373
    %2375 = vmatprep.subr.mxu0 0.0
    %v2376 = vand.u32 %v57, 4294901760
    %2377 = vmatpush1.msra.mxu0 %v2376
    %2378 = vmatprep.subr.mxu0 0.0
    %v2379 = vand.u32 %v58, 4294901760
    %2380 = vmatpush1.msra.mxu0 %v2379
    %2381 = vmatprep.subr.mxu0 0.0
    %v2382 = vand.u32 %v59, 4294901760
    %2383 = vmatpush1.msra.mxu0 %v2382
    %2384 = vmatprep.subr.mxu0 0.0
    %v2385 = vand.u32 %v60, 4294901760
    %2386 = vmatpush1.msra.mxu0 %v2385
    %2387 = vmatprep.subr.mxu0 0.0
    %v2388 = vand.u32 %v61, 4294901760
    %2389 = vmatpush1.msra.mxu0 %v2388
    %2390 = vmatprep.subr.mxu0 0.0
    %v2391 = vand.u32 %v62, 4294901760
    %2392 = vmatpush1.msra.mxu0 %v2391
    %2393 = vmatprep.subr.mxu0 0.0
    %v2394 = vand.u32 %v63, 4294901760
    %2395 = vmatpush1.msra.mxu0 %v2394
    %2396 = vmatprep.subr.mxu0 0.0
    %v2397 = vand.u32 %v64, 4294901760
    %2398 = vmatpush1.msra.mxu0 %v2397
    %2399 = vmatprep.subr.mxu0 0.0
    %v2400 = vand.u32 %v65, 4294901760
    %2401 = vmatpush1.msra.mxu0 %v2400
    %2402 = vmatprep.subr.mxu0 0.0
    %v2403 = vand.u32 %v66, 4294901760
    %2404 = vmatpush1.msra.mxu0 %v2403
    %2405 = vmatprep.subr.mxu0 0.0
    %v2406 = vand.u32 %v67, 4294901760
    %2407 = vmatpush1.msra.mxu0 %v2406
    %2408 = vmatprep.subr.mxu0 0.0
    %2409 = vmatpush1.msra.mxu0 0.0
    %2410 = vmatprep.subr.mxu0 0.0
    %2411 = vmatpush1.msra.mxu0 0.0
    %2412 = vmatprep.subr.mxu0 0.0
    %2413 = vmatpush1.msra.mxu0 0.0
    %2414 = vmatprep.subr.mxu0 0.0
    %2415 = vmatpush1.msra.mxu0 0.0
    %2416 = vmatprep.subr.mxu0 0.0
    %2417 = vmatpush1.msra.mxu0 0.0
    %2418 = vmatprep.subr.mxu0 0.0
    %2419 = vmatpush1.msra.mxu0 0.0
    %2420 = vmatprep.subr.mxu0 0.0
    %2421 = vmatpush1.msra.mxu0 0.0
    %2422 = vmatprep.subr.mxu0 0.0
    %2423 = vmatpush1.msra.mxu0 0.0
    %2424 = vmatprep.subr.mxu0 0.0
    %2425 = vmatpush1.msra.mxu0 0.0
    %2426 = vmatprep.subr.mxu0 0.0
    %2427 = vmatpush1.msra.mxu0 0.0
    %2428 = vmatprep.subr.mxu0 0.0
    %2429 = vmatpush1.msra.mxu0 0.0
    %2430 = vmatprep.subr.mxu0 0.0
    %2431 = vmatpush1.msra.mxu0 0.0
    %2432 = vmatprep.subr.mxu0 0.0
    %2433 = vmatpush1.msra.mxu0 0.0
    %2434 = vmatprep.subr.mxu0 0.0
    %2435 = vmatpush1.msra.mxu0 0.0
    %2436 = vmatprep.subr.mxu0 0.0
    %2437 = vmatpush1.msra.mxu0 0.0
    %2438 = vmatprep.subr.mxu0 0.0
    %2439 = vmatpush1.msra.mxu0 0.0
    %2440 = vmatprep.mubr.f32.mxu0 0.0
    %v2441 = vand.u32 %v1076, 4294901760
    %2442 = vmatmul.mubr.f32.gmra.mrb[0].mxu0 %v2441
    %v2443 = vpop.f32.mrb[0].mxu0
    %v2444 = vadd.f32 %v2351, %v2443
    %v2445 = vpop.f32.mrb[0].mxu0
    %2446 = vmatprep.mubr.f32.mxu0 0.0
    %v2447 = vand.u32 %v1082, 4294901760
    %2448 = vmatmul.mubr.f32.gmra.mrb[0].mxu0 %v2447
    %v2449 = vpop.f32.mrb[0].mxu0
    %v2450 = vadd.f32 %v2357, %v2449
    %v2451 = vpop.f32.mrb[0].mxu0
    %2452 = vdwg.mxu0
    %v2453 = vsub.f32 %v1760, %v2444
    %v2454 = vsub.f32 %v1766, %v2450
    %2455 = vmatprep.subr.mxu0 0.0
    %v2456 = vand.u32 %v36, 4294901760
    %2457 = vmatpush1.msra.mxu0 %v2456
    %2458 = vmatprep.subr.mxu0 0.0
    %v2459 = vand.u32 %v37, 4294901760
    %2460 = vmatpush1.msra.mxu0 %v2459
    %2461 = vmatprep.subr.mxu0 0.0
    %v2462 = vand.u32 %v38, 4294901760
    %2463 = vmatpush1.msra.mxu0 %v2462
    %2464 = vmatprep.subr.mxu0 0.0
    %v2465 = vand.u32 %v39, 4294901760
    %2466 = vmatpush1.msra.mxu0 %v2465
    %2467 = vmatprep.subr.mxu0 0.0
    %v2468 = vand.u32 %v40, 4294901760
    %2469 = vmatpush1.msra.mxu0 %v2468
    %2470 = vmatprep.subr.mxu0 0.0
    %v2471 = vand.u32 %v41, 4294901760
    %2472 = vmatpush1.msra.mxu0 %v2471
    %2473 = vmatprep.subr.mxu0 0.0
    %v2474 = vand.u32 %v42, 4294901760
    %2475 = vmatpush1.msra.mxu0 %v2474
    %2476 = vmatprep.subr.mxu0 0.0
    %v2477 = vand.u32 %v43, 4294901760
    %2478 = vmatpush1.msra.mxu0 %v2477
    %2479 = vmatprep.subr.mxu0 0.0
    %v2480 = vand.u32 %v44, 4294901760
    %2481 = vmatpush1.msra.mxu0 %v2480
    %2482 = vmatprep.subr.mxu0 0.0
    %v2483 = vand.u32 %v45, 4294901760
    %2484 = vmatpush1.msra.mxu0 %v2483
    %2485 = vmatprep.subr.mxu0 0.0
    %v2486 = vand.u32 %v46, 4294901760
    %2487 = vmatpush1.msra.mxu0 %v2486
    %2488 = vmatprep.subr.mxu0 0.0
    %v2489 = vand.u32 %v47, 4294901760
    %2490 = vmatpush1.msra.mxu0 %v2489
    %2491 = vmatprep.subr.mxu0 0.0
    %v2492 = vand.u32 %v48, 4294901760
    %2493 = vmatpush1.msra.mxu0 %v2492
    %2494 = vmatprep.subr.mxu0 0.0
    %v2495 = vand.u32 %v49, 4294901760
    %2496 = vmatpush1.msra.mxu0 %v2495
    %2497 = vmatprep.subr.mxu0 0.0
    %v2498 = vand.u32 %v50, 4294901760
    %2499 = vmatpush1.msra.mxu0 %v2498
    %2500 = vmatprep.subr.mxu0 0.0
    %v2501 = vand.u32 %v51, 4294901760
    %2502 = vmatpush1.msra.mxu0 %v2501
    %2503 = vmatprep.subr.mxu0 0.0
    %2504 = vmatpush1.msra.mxu0 0.0
    %2505 = vmatprep.subr.mxu0 0.0
    %2506 = vmatpush1.msra.mxu0 0.0
    %2507 = vmatprep.subr.mxu0 0.0
    %2508 = vmatpush1.msra.mxu0 0.0
    %2509 = vmatprep.subr.mxu0 0.0
    %2510 = vmatpush1.msra.mxu0 0.0
    %2511 = vmatprep.subr.mxu0 0.0
    %2512 = vmatpush1.msra.mxu0 0.0
    %2513 = vmatprep.subr.mxu0 0.0
    %2514 = vmatpush1.msra.mxu0 0.0
    %2515 = vmatprep.subr.mxu0 0.0
    %2516 = vmatpush1.msra.mxu0 0.0
    %2517 = vmatprep.subr.mxu0 0.0
    %2518 = vmatpush1.msra.mxu0 0.0
    %2519 = vmatprep.subr.mxu0 0.0
    %2520 = vmatpush1.msra.mxu0 0.0
    %2521 = vmatprep.subr.mxu0 0.0
    %2522 = vmatpush1.msra.mxu0 0.0
    %2523 = vmatprep.subr.mxu0 0.0
    %2524 = vmatpush1.msra.mxu0 0.0
    %2525 = vmatprep.subr.mxu0 0.0
    %2526 = vmatpush1.msra.mxu0 0.0
    %2527 = vmatprep.subr.mxu0 0.0
    %2528 = vmatpush1.msra.mxu0 0.0
    %2529 = vmatprep.subr.mxu0 0.0
    %2530 = vmatpush1.msra.mxu0 0.0
    %2531 = vmatprep.subr.mxu0 0.0
    %2532 = vmatpush1.msra.mxu0 0.0
    %2533 = vmatprep.subr.mxu0 0.0
    %2534 = vmatpush1.msra.mxu0 0.0
    %2535 = vmatprep.mubr.f32.mxu0 0.0
    %v2536 = vand.u32 %v1076, 4294901760
    %v2537 = vsub.f32 %v1076, %v2536
    %v2538 = vand.u32 %v2537, 4294901760
    %v2539 = vsub.f32 %v2537, %v2538
    %v2540 = vand.u32 %v2539, 4294901760
    %2541 = vmatmul.mubr.f32.gmra.mrb[0].mxu0 %v2540
    %v2542 = vpop.f32.mrb[0].mxu0
    %v2543 = vadd.f32 0.0, %v2542
    %v2544 = vpop.f32.mrb[0].mxu0
    %2545 = vmatprep.mubr.f32.mxu0 0.0
    %v2546 = vand.u32 %v1082, 4294901760
    %v2547 = vsub.f32 %v1082, %v2546
    %v2548 = vand.u32 %v2547, 4294901760
    %v2549 = vsub.f32 %v2547, %v2548
    %v2550 = vand.u32 %v2549, 4294901760
    %2551 = vmatmul.mubr.f32.gmra.mrb[0].mxu0 %v2550
    %v2552 = vpop.f32.mrb[0].mxu0
    %v2553 = vadd.f32 0.0, %v2552
    %v2554 = vpop.f32.mrb[0].mxu0
    %2555 = vdwg.mxu0
    %2556 = vmatprep.subr.mxu0 0.0
    %v2557 = vand.u32 %v36, 4294901760
    %v2558 = vsub.f32 %v36, %v2557
    %v2559 = vand.u32 %v2558, 4294901760
    %v2560 = vsub.f32 %v2558, %v2559
    %v2561 = vand.u32 %v2560, 4294901760
    %2562 = vmatpush1.msra.mxu0 %v2561
    %2563 = vmatprep.subr.mxu0 0.0
    %v2564 = vand.u32 %v37, 4294901760
    %v2565 = vsub.f32 %v37, %v2564
    %v2566 = vand.u32 %v2565, 4294901760
    %v2567 = vsub.f32 %v2565, %v2566
    %v2568 = vand.u32 %v2567, 4294901760
    %2569 = vmatpush1.msra.mxu0 %v2568
    %2570 = vmatprep.subr.mxu0 0.0
    %v2571 = vand.u32 %v38, 4294901760
    %v2572 = vsub.f32 %v38, %v2571
    %v2573 = vand.u32 %v2572, 4294901760
    %v2574 = vsub.f32 %v2572, %v2573
    %v2575 = vand.u32 %v2574, 4294901760
    %2576 = vmatpush1.msra.mxu0 %v2575
    %2577 = vmatprep.subr.mxu0 0.0
    %v2578 = vand.u32 %v39, 4294901760
    %v2579 = vsub.f32 %v39, %v2578
    %v2580 = vand.u32 %v2579, 4294901760
    %v2581 = vsub.f32 %v2579, %v2580
    %v2582 = vand.u32 %v2581, 4294901760
    %2583 = vmatpush1.msra.mxu0 %v2582
    %2584 = vmatprep.subr.mxu0 0.0
    %v2585 = vand.u32 %v40, 4294901760
    %v2586 = vsub.f32 %v40, %v2585
    %v2587 = vand.u32 %v2586, 4294901760
    %v2588 = vsub.f32 %v2586, %v2587
    %v2589 = vand.u32 %v2588, 4294901760
    %2590 = vmatpush1.msra.mxu0 %v2589
    %2591 = vmatprep.subr.mxu0 0.0
    %v2592 = vand.u32 %v41, 4294901760
    %v2593 = vsub.f32 %v41, %v2592
    %v2594 = vand.u32 %v2593, 4294901760
    %v2595 = vsub.f32 %v2593, %v2594
    %v2596 = vand.u32 %v2595, 4294901760
    %2597 = vmatpush1.msra.mxu0 %v2596
    %2598 = vmatprep.subr.mxu0 0.0
    %v2599 = vand.u32 %v42, 4294901760
    %v2600 = vsub.f32 %v42, %v2599
    %v2601 = vand.u32 %v2600, 4294901760
    %v2602 = vsub.f32 %v2600, %v2601
    %v2603 = vand.u32 %v2602, 4294901760
    %2604 = vmatpush1.msra.mxu0 %v2603
    %2605 = vmatprep.subr.mxu0 0.0
    %v2606 = vand.u32 %v43, 4294901760
    %v2607 = vsub.f32 %v43, %v2606
    %v2608 = vand.u32 %v2607, 4294901760
    %v2609 = vsub.f32 %v2607, %v2608
    %v2610 = vand.u32 %v2609, 4294901760
    %2611 = vmatpush1.msra.mxu0 %v2610
    %2612 = vmatprep.subr.mxu0 0.0
    %v2613 = vand.u32 %v44, 4294901760
    %v2614 = vsub.f32 %v44, %v2613
    %v2615 = vand.u32 %v2614, 4294901760
    %v2616 = vsub.f32 %v2614, %v2615
    %v2617 = vand.u32 %v2616, 4294901760
    %2618 = vmatpush1.msra.mxu0 %v2617
    %2619 = vmatprep.subr.mxu0 0.0
    %v2620 = vand.u32 %v45, 4294901760
    %v2621 = vsub.f32 %v45, %v2620
    %v2622 = vand.u32 %v2621, 4294901760
    %v2623 = vsub.f32 %v2621, %v2622
    %v2624 = vand.u32 %v2623, 4294901760
    %2625 = vmatpush1.msra.mxu0 %v2624
    %2626 = vmatprep.subr.mxu0 0.0
    %v2627 = vand.u32 %v46, 4294901760
    %v2628 = vsub.f32 %v46, %v2627
    %v2629 = vand.u32 %v2628, 4294901760
    %v2630 = vsub.f32 %v2628, %v2629
    %v2631 = vand.u32 %v2630, 4294901760
    %2632 = vmatpush1.msra.mxu0 %v2631
    %2633 = vmatprep.subr.mxu0 0.0
    %v2634 = vand.u32 %v47, 4294901760
    %v2635 = vsub.f32 %v47, %v2634
    %v2636 = vand.u32 %v2635, 4294901760
    %v2637 = vsub.f32 %v2635, %v2636
    %v2638 = vand.u32 %v2637, 4294901760
    %2639 = vmatpush1.msra.mxu0 %v2638
    %2640 = vmatprep.subr.mxu0 0.0
    %v2641 = vand.u32 %v48, 4294901760
    %v2642 = vsub.f32 %v48, %v2641
    %v2643 = vand.u32 %v2642, 4294901760
    %v2644 = vsub.f32 %v2642, %v2643
    %v2645 = vand.u32 %v2644, 4294901760
    %2646 = vmatpush1.msra.mxu0 %v2645
    %2647 = vmatprep.subr.mxu0 0.0
    %v2648 = vand.u32 %v49, 4294901760
    %v2649 = vsub.f32 %v49, %v2648
    %v2650 = vand.u32 %v2649, 4294901760
    %v2651 = vsub.f32 %v2649, %v2650
    %v2652 = vand.u32 %v2651, 4294901760
    %2653 = vmatpush1.msra.mxu0 %v2652
    %2654 = vmatprep.subr.mxu0 0.0
    %v2655 = vand.u32 %v50, 4294901760
    %v2656 = vsub.f32 %v50, %v2655
    %v2657 = vand.u32 %v2656, 4294901760
    %v2658 = vsub.f32 %v2656, %v2657
    %v2659 = vand.u32 %v2658, 4294901760
    %2660 = vmatpush1.msra.mxu0 %v2659
    %2661 = vmatprep.subr.mxu0 0.0
    %v2662 = vand.u32 %v51, 4294901760
    %v2663 = vsub.f32 %v51, %v2662
    %v2664 = vand.u32 %v2663, 4294901760
    %v2665 = vsub.f32 %v2663, %v2664
    %v2666 = vand.u32 %v2665, 4294901760
    %2667 = vmatpush1.msra.mxu0 %v2666
    %2668 = vmatprep.subr.mxu0 0.0
    %2669 = vmatpush1.msra.mxu0 0.0
    %2670 = vmatprep.subr.mxu0 0.0
    %2671 = vmatpush1.msra.mxu0 0.0
    %2672 = vmatprep.subr.mxu0 0.0
    %2673 = vmatpush1.msra.mxu0 0.0
    %2674 = vmatprep.subr.mxu0 0.0
    %2675 = vmatpush1.msra.mxu0 0.0
    %2676 = vmatprep.subr.mxu0 0.0
    %2677 = vmatpush1.msra.mxu0 0.0
    %2678 = vmatprep.subr.mxu0 0.0
    %2679 = vmatpush1.msra.mxu0 0.0
    %2680 = vmatprep.subr.mxu0 0.0
    %2681 = vmatpush1.msra.mxu0 0.0
    %2682 = vmatprep.subr.mxu0 0.0
    %2683 = vmatpush1.msra.mxu0 0.0
    %2684 = vmatprep.subr.mxu0 0.0
    %2685 = vmatpush1.msra.mxu0 0.0
    %2686 = vmatprep.subr.mxu0 0.0
    %2687 = vmatpush1.msra.mxu0 0.0
    %2688 = vmatprep.subr.mxu0 0.0
    %2689 = vmatpush1.msra.mxu0 0.0
    %2690 = vmatprep.subr.mxu0 0.0
    %2691 = vmatpush1.msra.mxu0 0.0
    %2692 = vmatprep.subr.mxu0 0.0
    %2693 = vmatpush1.msra.mxu0 0.0
    %2694 = vmatprep.subr.mxu0 0.0
    %2695 = vmatpush1.msra.mxu0 0.0
    %2696 = vmatprep.subr.mxu0 0.0
    %2697 = vmatpush1.msra.mxu0 0.0
    %2698 = vmatprep.subr.mxu0 0.0
    %2699 = vmatpush1.msra.mxu0 0.0
    %2700 = vmatprep.mubr.f32.mxu0 0.0
    %v2701 = vand.u32 %v1076, 4294901760
    %2702 = vmatmul.mubr.f32.gmra.mrb[0].mxu0 %v2701
    %v2703 = vpop.f32.mrb[0].mxu0
    %v2704 = vadd.f32 %v2543, %v2703
    %v2705 = vpop.f32.mrb[0].mxu0
    %2706 = vmatprep.mubr.f32.mxu0 0.0
    %v2707 = vand.u32 %v1082, 4294901760
    %2708 = vmatmul.mubr.f32.gmra.mrb[0].mxu0 %v2707
    %v2709 = vpop.f32.mrb[0].mxu0
    %v2710 = vadd.f32 %v2553, %v2709
    %v2711 = vpop.f32.mrb[0].mxu0
    %2712 = vdwg.mxu0
    %2713 = vmatprep.subr.mxu0 0.0
    %v2714 = vand.u32 %v36, 4294901760
    %v2715 = vsub.f32 %v36, %v2714
    %2716 = vmatpush1.msra.mxu0 %v2715
    %2717 = vmatprep.subr.mxu0 0.0
    %v2718 = vand.u32 %v37, 4294901760
    %v2719 = vsub.f32 %v37, %v2718
    %2720 = vmatpush1.msra.mxu0 %v2719
    %2721 = vmatprep.subr.mxu0 0.0
    %v2722 = vand.u32 %v38, 4294901760
    %v2723 = vsub.f32 %v38, %v2722
    %2724 = vmatpush1.msra.mxu0 %v2723
    %2725 = vmatprep.subr.mxu0 0.0
    %v2726 = vand.u32 %v39, 4294901760
    %v2727 = vsub.f32 %v39, %v2726
    %2728 = vmatpush1.msra.mxu0 %v2727
    %2729 = vmatprep.subr.mxu0 0.0
    %v2730 = vand.u32 %v40, 4294901760
    %v2731 = vsub.f32 %v40, %v2730
    %2732 = vmatpush1.msra.mxu0 %v2731
    %2733 = vmatprep.subr.mxu0 0.0
    %v2734 = vand.u32 %v41, 4294901760
    %v2735 = vsub.f32 %v41, %v2734
    %2736 = vmatpush1.msra.mxu0 %v2735
    %2737 = vmatprep.subr.mxu0 0.0
    %v2738 = vand.u32 %v42, 4294901760
    %v2739 = vsub.f32 %v42, %v2738
    %2740 = vmatpush1.msra.mxu0 %v2739
    %2741 = vmatprep.subr.mxu0 0.0
    %v2742 = vand.u32 %v43, 4294901760
    %v2743 = vsub.f32 %v43, %v2742
    %2744 = vmatpush1.msra.mxu0 %v2743
    %2745 = vmatprep.subr.mxu0 0.0
    %v2746 = vand.u32 %v44, 4294901760
    %v2747 = vsub.f32 %v44, %v2746
    %2748 = vmatpush1.msra.mxu0 %v2747
    %2749 = vmatprep.subr.mxu0 0.0
    %v2750 = vand.u32 %v45, 4294901760
    %v2751 = vsub.f32 %v45, %v2750
    %2752 = vmatpush1.msra.mxu0 %v2751
    %2753 = vmatprep.subr.mxu0 0.0
    %v2754 = vand.u32 %v46, 4294901760
    %v2755 = vsub.f32 %v46, %v2754
    %2756 = vmatpush1.msra.mxu0 %v2755
    %2757 = vmatprep.subr.mxu0 0.0
    %v2758 = vand.u32 %v47, 4294901760
    %v2759 = vsub.f32 %v47, %v2758
    %2760 = vmatpush1.msra.mxu0 %v2759
    %2761 = vmatprep.subr.mxu0 0.0
    %v2762 = vand.u32 %v48, 4294901760
    %v2763 = vsub.f32 %v48, %v2762
    %2764 = vmatpush1.msra.mxu0 %v2763
    %2765 = vmatprep.subr.mxu0 0.0
    %v2766 = vand.u32 %v49, 4294901760
    %v2767 = vsub.f32 %v49, %v2766
    %2768 = vmatpush1.msra.mxu0 %v2767
    %2769 = vmatprep.subr.mxu0 0.0
    %v2770 = vand.u32 %v50, 4294901760
    %v2771 = vsub.f32 %v50, %v2770
    %2772 = vmatpush1.msra.mxu0 %v2771
    %2773 = vmatprep.subr.mxu0 0.0
    %v2774 = vand.u32 %v51, 4294901760
    %v2775 = vsub.f32 %v51, %v2774
    %2776 = vmatpush1.msra.mxu0 %v2775
    %2777 = vmatprep.subr.mxu0 0.0
    %2778 = vmatpush1.msra.mxu0 0.0
    %2779 = vmatprep.subr.mxu0 0.0
    %2780 = vmatpush1.msra.mxu0 0.0
    %2781 = vmatprep.subr.mxu0 0.0
    %2782 = vmatpush1.msra.mxu0 0.0
    %2783 = vmatprep.subr.mxu0 0.0
    %2784 = vmatpush1.msra.mxu0 0.0
    %2785 = vmatprep.subr.mxu0 0.0
    %2786 = vmatpush1.msra.mxu0 0.0
    %2787 = vmatprep.subr.mxu0 0.0
    %2788 = vmatpush1.msra.mxu0 0.0
    %2789 = vmatprep.subr.mxu0 0.0
    %2790 = vmatpush1.msra.mxu0 0.0
    %2791 = vmatprep.subr.mxu0 0.0
    %2792 = vmatpush1.msra.mxu0 0.0
    %2793 = vmatprep.subr.mxu0 0.0
    %2794 = vmatpush1.msra.mxu0 0.0
    %2795 = vmatprep.subr.mxu0 0.0
    %2796 = vmatpush1.msra.mxu0 0.0
    %2797 = vmatprep.subr.mxu0 0.0
    %2798 = vmatpush1.msra.mxu0 0.0
    %2799 = vmatprep.subr.mxu0 0.0
    %2800 = vmatpush1.msra.mxu0 0.0
    %2801 = vmatprep.subr.mxu0 0.0
    %2802 = vmatpush1.msra.mxu0 0.0
    %2803 = vmatprep.subr.mxu0 0.0
    %2804 = vmatpush1.msra.mxu0 0.0
    %2805 = vmatprep.subr.mxu0 0.0
    %2806 = vmatpush1.msra.mxu0 0.0
    %2807 = vmatprep.subr.mxu0 0.0
    %2808 = vmatpush1.msra.mxu0 0.0
    %2809 = vmatprep.mubr.f32.mxu0 0.0
    %v2810 = vand.u32 %v1076, 4294901760
    %v2811 = vsub.f32 %v1076, %v2810
    %2812 = vmatmul.mubr.f32.gmra.mrb[0].mxu0 %v2811
    %v2813 = vpop.f32.mrb[0].mxu0
    %v2814 = vadd.f32 %v2704, %v2813
    %v2815 = vpop.f32.mrb[0].mxu0
    %2816 = vmatprep.mubr.f32.mxu0 0.0
    %v2817 = vand.u32 %v1082, 4294901760
    %v2818 = vsub.f32 %v1082, %v2817
    %2819 = vmatmul.mubr.f32.gmra.mrb[0].mxu0 %v2818
    %v2820 = vpop.f32.mrb[0].mxu0
    %v2821 = vadd.f32 %v2710, %v2820
    %v2822 = vpop.f32.mrb[0].mxu0
    %2823 = vdwg.mxu0
    %2824 = vmatprep.subr.mxu0 0.0
    %v2825 = vand.u32 %v36, 4294901760
    %2826 = vmatpush1.msra.mxu0 %v2825
    %2827 = vmatprep.subr.mxu0 0.0
    %v2828 = vand.u32 %v37, 4294901760
    %2829 = vmatpush1.msra.mxu0 %v2828
    %2830 = vmatprep.subr.mxu0 0.0
    %v2831 = vand.u32 %v38, 4294901760
    %2832 = vmatpush1.msra.mxu0 %v2831
    %2833 = vmatprep.subr.mxu0 0.0
    %v2834 = vand.u32 %v39, 4294901760
    %2835 = vmatpush1.msra.mxu0 %v2834
    %2836 = vmatprep.subr.mxu0 0.0
    %v2837 = vand.u32 %v40, 4294901760
    %2838 = vmatpush1.msra.mxu0 %v2837
    %2839 = vmatprep.subr.mxu0 0.0
    %v2840 = vand.u32 %v41, 4294901760
    %2841 = vmatpush1.msra.mxu0 %v2840
    %2842 = vmatprep.subr.mxu0 0.0
    %v2843 = vand.u32 %v42, 4294901760
    %2844 = vmatpush1.msra.mxu0 %v2843
    %2845 = vmatprep.subr.mxu0 0.0
    %v2846 = vand.u32 %v43, 4294901760
    %2847 = vmatpush1.msra.mxu0 %v2846
    %2848 = vmatprep.subr.mxu0 0.0
    %v2849 = vand.u32 %v44, 4294901760
    %2850 = vmatpush1.msra.mxu0 %v2849
    %2851 = vmatprep.subr.mxu0 0.0
    %v2852 = vand.u32 %v45, 4294901760
    %2853 = vmatpush1.msra.mxu0 %v2852
    %2854 = vmatprep.subr.mxu0 0.0
    %v2855 = vand.u32 %v46, 4294901760
    %2856 = vmatpush1.msra.mxu0 %v2855
    %2857 = vmatprep.subr.mxu0 0.0
    %v2858 = vand.u32 %v47, 4294901760
    %2859 = vmatpush1.msra.mxu0 %v2858
    %2860 = vmatprep.subr.mxu0 0.0
    %v2861 = vand.u32 %v48, 4294901760
    %2862 = vmatpush1.msra.mxu0 %v2861
    %2863 = vmatprep.subr.mxu0 0.0
    %v2864 = vand.u32 %v49, 4294901760
    %2865 = vmatpush1.msra.mxu0 %v2864
    %2866 = vmatprep.subr.mxu0 0.0
    %v2867 = vand.u32 %v50, 4294901760
    %2868 = vmatpush1.msra.mxu0 %v2867
    %2869 = vmatprep.subr.mxu0 0.0
    %v2870 = vand.u32 %v51, 4294901760
    %2871 = vmatpush1.msra.mxu0 %v2870
    %2872 = vmatprep.subr.mxu0 0.0
    %2873 = vmatpush1.msra.mxu0 0.0
    %2874 = vmatprep.subr.mxu0 0.0
    %2875 = vmatpush1.msra.mxu0 0.0
    %2876 = vmatprep.subr.mxu0 0.0
    %2877 = vmatpush1.msra.mxu0 0.0
    %2878 = vmatprep.subr.mxu0 0.0
    %2879 = vmatpush1.msra.mxu0 0.0
    %2880 = vmatprep.subr.mxu0 0.0
    %2881 = vmatpush1.msra.mxu0 0.0
    %2882 = vmatprep.subr.mxu0 0.0
    %2883 = vmatpush1.msra.mxu0 0.0
    %2884 = vmatprep.subr.mxu0 0.0
    %2885 = vmatpush1.msra.mxu0 0.0
    %2886 = vmatprep.subr.mxu0 0.0
    %2887 = vmatpush1.msra.mxu0 0.0
    %2888 = vmatprep.subr.mxu0 0.0
    %2889 = vmatpush1.msra.mxu0 0.0
    %2890 = vmatprep.subr.mxu0 0.0
    %2891 = vmatpush1.msra.mxu0 0.0
    %2892 = vmatprep.subr.mxu0 0.0
    %2893 = vmatpush1.msra.mxu0 0.0
    %2894 = vmatprep.subr.mxu0 0.0
    %2895 = vmatpush1.msra.mxu0 0.0
    %2896 = vmatprep.subr.mxu0 0.0
    %2897 = vmatpush1.msra.mxu0 0.0
    %2898 = vmatprep.subr.mxu0 0.0
    %2899 = vmatpush1.msra.mxu0 0.0
    %2900 = vmatprep.subr.mxu0 0.0
    %2901 = vmatpush1.msra.mxu0 0.0
    %2902 = vmatprep.subr.mxu0 0.0
    %2903 = vmatpush1.msra.mxu0 0.0
    %2904 = vmatprep.mubr.f32.mxu0 0.0
    %v2905 = vand.u32 %v1076, 4294901760
    %v2906 = vsub.f32 %v1076, %v2905
    %v2907 = vand.u32 %v2906, 4294901760
    %2908 = vmatmul.mubr.f32.gmra.mrb[0].mxu0 %v2907
    %v2909 = vpop.f32.mrb[0].mxu0
    %v2910 = vadd.f32 %v2814, %v2909
    %v2911 = vpop.f32.mrb[0].mxu0
    %2912 = vmatprep.mubr.f32.mxu0 0.0
    %v2913 = vand.u32 %v1082, 4294901760
    %v2914 = vsub.f32 %v1082, %v2913
    %v2915 = vand.u32 %v2914, 4294901760
    %2916 = vmatmul.mubr.f32.gmra.mrb[0].mxu0 %v2915
    %v2917 = vpop.f32.mrb[0].mxu0
    %v2918 = vadd.f32 %v2821, %v2917
    %v2919 = vpop.f32.mrb[0].mxu0
    %2920 = vdwg.mxu0
    %2921 = vmatprep.subr.mxu0 0.0
    %v2922 = vand.u32 %v36, 4294901760
    %v2923 = vsub.f32 %v36, %v2922
    %v2924 = vand.u32 %v2923, 4294901760
    %2925 = vmatpush1.msra.mxu0 %v2924
    %2926 = vmatprep.subr.mxu0 0.0
    %v2927 = vand.u32 %v37, 4294901760
    %v2928 = vsub.f32 %v37, %v2927
    %v2929 = vand.u32 %v2928, 4294901760
    %2930 = vmatpush1.msra.mxu0 %v2929
    %2931 = vmatprep.subr.mxu0 0.0
    %v2932 = vand.u32 %v38, 4294901760
    %v2933 = vsub.f32 %v38, %v2932
    %v2934 = vand.u32 %v2933, 4294901760
    %2935 = vmatpush1.msra.mxu0 %v2934
    %2936 = vmatprep.subr.mxu0 0.0
    %v2937 = vand.u32 %v39, 4294901760
    %v2938 = vsub.f32 %v39, %v2937
    %v2939 = vand.u32 %v2938, 4294901760
    %2940 = vmatpush1.msra.mxu0 %v2939
    %2941 = vmatprep.subr.mxu0 0.0
    %v2942 = vand.u32 %v40, 4294901760
    %v2943 = vsub.f32 %v40, %v2942
    %v2944 = vand.u32 %v2943, 4294901760
    %2945 = vmatpush1.msra.mxu0 %v2944
    %2946 = vmatprep.subr.mxu0 0.0
    %v2947 = vand.u32 %v41, 4294901760
    %v2948 = vsub.f32 %v41, %v2947
    %v2949 = vand.u32 %v2948, 4294901760
    %2950 = vmatpush1.msra.mxu0 %v2949
    %2951 = vmatprep.subr.mxu0 0.0
    %v2952 = vand.u32 %v42, 4294901760
    %v2953 = vsub.f32 %v42, %v2952
    %v2954 = vand.u32 %v2953, 4294901760
    %2955 = vmatpush1.msra.mxu0 %v2954
    %2956 = vmatprep.subr.mxu0 0.0
    %v2957 = vand.u32 %v43, 4294901760
    %v2958 = vsub.f32 %v43, %v2957
    %v2959 = vand.u32 %v2958, 4294901760
    %2960 = vmatpush1.msra.mxu0 %v2959
    %2961 = vmatprep.subr.mxu0 0.0
    %v2962 = vand.u32 %v44, 4294901760
    %v2963 = vsub.f32 %v44, %v2962
    %v2964 = vand.u32 %v2963, 4294901760
    %2965 = vmatpush1.msra.mxu0 %v2964
    %2966 = vmatprep.subr.mxu0 0.0
    %v2967 = vand.u32 %v45, 4294901760
    %v2968 = vsub.f32 %v45, %v2967
    %v2969 = vand.u32 %v2968, 4294901760
    %2970 = vmatpush1.msra.mxu0 %v2969
    %2971 = vmatprep.subr.mxu0 0.0
    %v2972 = vand.u32 %v46, 4294901760
    %v2973 = vsub.f32 %v46, %v2972
    %v2974 = vand.u32 %v2973, 4294901760
    %2975 = vmatpush1.msra.mxu0 %v2974
    %2976 = vmatprep.subr.mxu0 0.0
    %v2977 = vand.u32 %v47, 4294901760
    %v2978 = vsub.f32 %v47, %v2977
    %v2979 = vand.u32 %v2978, 4294901760
    %2980 = vmatpush1.msra.mxu0 %v2979
    %2981 = vmatprep.subr.mxu0 0.0
    %v2982 = vand.u32 %v48, 4294901760
    %v2983 = vsub.f32 %v48, %v2982
    %v2984 = vand.u32 %v2983, 4294901760
    %2985 = vmatpush1.msra.mxu0 %v2984
    %2986 = vmatprep.subr.mxu0 0.0
    %v2987 = vand.u32 %v49, 4294901760
    %v2988 = vsub.f32 %v49, %v2987
    %v2989 = vand.u32 %v2988, 4294901760
    %2990 = vmatpush1.msra.mxu0 %v2989
    %2991 = vmatprep.subr.mxu0 0.0
    %v2992 = vand.u32 %v50, 4294901760
    %v2993 = vsub.f32 %v50, %v2992
    %v2994 = vand.u32 %v2993, 4294901760
    %2995 = vmatpush1.msra.mxu0 %v2994
    %2996 = vmatprep.subr.mxu0 0.0
    %v2997 = vand.u32 %v51, 4294901760
    %v2998 = vsub.f32 %v51, %v2997
    %v2999 = vand.u32 %v2998, 4294901760
    %3000 = vmatpush1.msra.mxu0 %v2999
    %3001 = vmatprep.subr.mxu0 0.0
    %3002 = vmatpush1.msra.mxu0 0.0
    %3003 = vmatprep.subr.mxu0 0.0
    %3004 = vmatpush1.msra.mxu0 0.0
    %3005 = vmatprep.subr.mxu0 0.0
    %3006 = vmatpush1.msra.mxu0 0.0
    %3007 = vmatprep.subr.mxu0 0.0
    %3008 = vmatpush1.msra.mxu0 0.0
    %3009 = vmatprep.subr.mxu0 0.0
    %3010 = vmatpush1.msra.mxu0 0.0
    %3011 = vmatprep.subr.mxu0 0.0
    %3012 = vmatpush1.msra.mxu0 0.0
    %3013 = vmatprep.subr.mxu0 0.0
    %3014 = vmatpush1.msra.mxu0 0.0
    %3015 = vmatprep.subr.mxu0 0.0
    %3016 = vmatpush1.msra.mxu0 0.0
    %3017 = vmatprep.subr.mxu0 0.0
    %3018 = vmatpush1.msra.mxu0 0.0
    %3019 = vmatprep.subr.mxu0 0.0
    %3020 = vmatpush1.msra.mxu0 0.0
    %3021 = vmatprep.subr.mxu0 0.0
    %3022 = vmatpush1.msra.mxu0 0.0
    %3023 = vmatprep.subr.mxu0 0.0
    %3024 = vmatpush1.msra.mxu0 0.0
    %3025 = vmatprep.subr.mxu0 0.0
    %3026 = vmatpush1.msra.mxu0 0.0
    %3027 = vmatprep.subr.mxu0 0.0
    %3028 = vmatpush1.msra.mxu0 0.0
    %3029 = vmatprep.subr.mxu0 0.0
    %3030 = vmatpush1.msra.mxu0 0.0
    %3031 = vmatprep.subr.mxu0 0.0
    %3032 = vmatpush1.msra.mxu0 0.0
    %3033 = vmatprep.mubr.f32.mxu0 0.0
    %v3034 = vand.u32 %v1076, 4294901760
    %3035 = vmatmul.mubr.f32.gmra.mrb[0].mxu0 %v3034
    %v3036 = vpop.f32.mrb[0].mxu0
    %v3037 = vadd.f32 %v2910, %v3036
    %v3038 = vpop.f32.mrb[0].mxu0
    %3039 = vmatprep.mubr.f32.mxu0 0.0
    %v3040 = vand.u32 %v1082, 4294901760
    %3041 = vmatmul.mubr.f32.gmra.mrb[0].mxu0 %v3040
    %v3042 = vpop.f32.mrb[0].mxu0
    %v3043 = vadd.f32 %v2918, %v3042
    %v3044 = vpop.f32.mrb[0].mxu0
    %3045 = vdwg.mxu0
    %3046 = vmatprep.subr.mxu0 0.0
    %v3047 = vand.u32 %v36, 4294901760
    %3048 = vmatpush1.msra.mxu0 %v3047
    %3049 = vmatprep.subr.mxu0 0.0
    %v3050 = vand.u32 %v37, 4294901760
    %3051 = vmatpush1.msra.mxu0 %v3050
    %3052 = vmatprep.subr.mxu0 0.0
    %v3053 = vand.u32 %v38, 4294901760
    %3054 = vmatpush1.msra.mxu0 %v3053
    %3055 = vmatprep.subr.mxu0 0.0
    %v3056 = vand.u32 %v39, 4294901760
    %3057 = vmatpush1.msra.mxu0 %v3056
    %3058 = vmatprep.subr.mxu0 0.0
    %v3059 = vand.u32 %v40, 4294901760
    %3060 = vmatpush1.msra.mxu0 %v3059
    %3061 = vmatprep.subr.mxu0 0.0
    %v3062 = vand.u32 %v41, 4294901760
    %3063 = vmatpush1.msra.mxu0 %v3062
    %3064 = vmatprep.subr.mxu0 0.0
    %v3065 = vand.u32 %v42, 4294901760
    %3066 = vmatpush1.msra.mxu0 %v3065
    %3067 = vmatprep.subr.mxu0 0.0
    %v3068 = vand.u32 %v43, 4294901760
    %3069 = vmatpush1.msra.mxu0 %v3068
    %3070 = vmatprep.subr.mxu0 0.0
    %v3071 = vand.u32 %v44, 4294901760
    %3072 = vmatpush1.msra.mxu0 %v3071
    %3073 = vmatprep.subr.mxu0 0.0
    %v3074 = vand.u32 %v45, 4294901760
    %3075 = vmatpush1.msra.mxu0 %v3074
    %3076 = vmatprep.subr.mxu0 0.0
    %v3077 = vand.u32 %v46, 4294901760
    %3078 = vmatpush1.msra.mxu0 %v3077
    %3079 = vmatprep.subr.mxu0 0.0
    %v3080 = vand.u32 %v47, 4294901760
    %3081 = vmatpush1.msra.mxu0 %v3080
    %3082 = vmatprep.subr.mxu0 0.0
    %v3083 = vand.u32 %v48, 4294901760
    %3084 = vmatpush1.msra.mxu0 %v3083
    %3085 = vmatprep.subr.mxu0 0.0
    %v3086 = vand.u32 %v49, 4294901760
    %3087 = vmatpush1.msra.mxu0 %v3086
    %3088 = vmatprep.subr.mxu0 0.0
    %v3089 = vand.u32 %v50, 4294901760
    %3090 = vmatpush1.msra.mxu0 %v3089
    %3091 = vmatprep.subr.mxu0 0.0
    %v3092 = vand.u32 %v51, 4294901760
    %3093 = vmatpush1.msra.mxu0 %v3092
    %3094 = vmatprep.subr.mxu0 0.0
    %3095 = vmatpush1.msra.mxu0 0.0
    %3096 = vmatprep.subr.mxu0 0.0
    %3097 = vmatpush1.msra.mxu0 0.0
    %3098 = vmatprep.subr.mxu0 0.0
    %3099 = vmatpush1.msra.mxu0 0.0
    %3100 = vmatprep.subr.mxu0 0.0
    %3101 = vmatpush1.msra.mxu0 0.0
    %3102 = vmatprep.subr.mxu0 0.0
    %3103 = vmatpush1.msra.mxu0 0.0
    %3104 = vmatprep.subr.mxu0 0.0
    %3105 = vmatpush1.msra.mxu0 0.0
    %3106 = vmatprep.subr.mxu0 0.0
    %3107 = vmatpush1.msra.mxu0 0.0
    %3108 = vmatprep.subr.mxu0 0.0
    %3109 = vmatpush1.msra.mxu0 0.0
    %3110 = vmatprep.subr.mxu0 0.0
    %3111 = vmatpush1.msra.mxu0 0.0
    %3112 = vmatprep.subr.mxu0 0.0
    %3113 = vmatpush1.msra.mxu0 0.0
    %3114 = vmatprep.subr.mxu0 0.0
    %3115 = vmatpush1.msra.mxu0 0.0
    %3116 = vmatprep.subr.mxu0 0.0
    %3117 = vmatpush1.msra.mxu0 0.0
    %3118 = vmatprep.subr.mxu0 0.0
    %3119 = vmatpush1.msra.mxu0 0.0
    %3120 = vmatprep.subr.mxu0 0.0
    %3121 = vmatpush1.msra.mxu0 0.0
    %3122 = vmatprep.subr.mxu0 0.0
    %3123 = vmatpush1.msra.mxu0 0.0
    %3124 = vmatprep.subr.mxu0 0.0
    %3125 = vmatpush1.msra.mxu0 0.0
    %3126 = vmatprep.mubr.f32.mxu0 0.0
    %v3127 = vand.u32 %v1076, 4294901760
    %3128 = vmatmul.mubr.f32.gmra.mrb[0].mxu0 %v3127
    %v3129 = vpop.f32.mrb[0].mxu0
    %v3130 = vadd.f32 %v3037, %v3129
    %v3131 = vpop.f32.mrb[0].mxu0
    %3132 = vmatprep.mubr.f32.mxu0 0.0
    %v3133 = vand.u32 %v1082, 4294901760
    %3134 = vmatmul.mubr.f32.gmra.mrb[0].mxu0 %v3133
    %v3135 = vpop.f32.mrb[0].mxu0
    %v3136 = vadd.f32 %v3043, %v3135
    %v3137 = vpop.f32.mrb[0].mxu0
    %3138 = vdwg.mxu0
    %3139 = vmatprep.subr.mxu0 0.0
    %v3140 = vand.u32 %v52, 4294901760
    %3141 = vmatpush1.msra.mxu0 %v3140
    %3142 = vmatprep.subr.mxu0 0.0
    %v3143 = vand.u32 %v53, 4294901760
    %3144 = vmatpush1.msra.mxu0 %v3143
    %3145 = vmatprep.subr.mxu0 0.0
    %v3146 = vand.u32 %v54, 4294901760
    %3147 = vmatpush1.msra.mxu0 %v3146
    %3148 = vmatprep.subr.mxu0 0.0
    %v3149 = vand.u32 %v55, 4294901760
    %3150 = vmatpush1.msra.mxu0 %v3149
    %3151 = vmatprep.subr.mxu0 0.0
    %v3152 = vand.u32 %v56, 4294901760
    %3153 = vmatpush1.msra.mxu0 %v3152
    %3154 = vmatprep.subr.mxu0 0.0
    %v3155 = vand.u32 %v57, 4294901760
    %3156 = vmatpush1.msra.mxu0 %v3155
    %3157 = vmatprep.subr.mxu0 0.0
    %v3158 = vand.u32 %v58, 4294901760
    %3159 = vmatpush1.msra.mxu0 %v3158
    %3160 = vmatprep.subr.mxu0 0.0
    %v3161 = vand.u32 %v59, 4294901760
    %3162 = vmatpush1.msra.mxu0 %v3161
    %3163 = vmatprep.subr.mxu0 0.0
    %v3164 = vand.u32 %v60, 4294901760
    %3165 = vmatpush1.msra.mxu0 %v3164
    %3166 = vmatprep.subr.mxu0 0.0
    %v3167 = vand.u32 %v61, 4294901760
    %3168 = vmatpush1.msra.mxu0 %v3167
    %3169 = vmatprep.subr.mxu0 0.0
    %v3170 = vand.u32 %v62, 4294901760
    %3171 = vmatpush1.msra.mxu0 %v3170
    %3172 = vmatprep.subr.mxu0 0.0
    %v3173 = vand.u32 %v63, 4294901760
    %3174 = vmatpush1.msra.mxu0 %v3173
    %3175 = vmatprep.subr.mxu0 0.0
    %v3176 = vand.u32 %v64, 4294901760
    %3177 = vmatpush1.msra.mxu0 %v3176
    %3178 = vmatprep.subr.mxu0 0.0
    %v3179 = vand.u32 %v65, 4294901760
    %3180 = vmatpush1.msra.mxu0 %v3179
    %3181 = vmatprep.subr.mxu0 0.0
    %v3182 = vand.u32 %v66, 4294901760
    %3183 = vmatpush1.msra.mxu0 %v3182
    %3184 = vmatprep.subr.mxu0 0.0
    %v3185 = vand.u32 %v67, 4294901760
    %3186 = vmatpush1.msra.mxu0 %v3185
    %3187 = vmatprep.subr.mxu0 0.0
    %3188 = vmatpush1.msra.mxu0 0.0
    %3189 = vmatprep.subr.mxu0 0.0
    %3190 = vmatpush1.msra.mxu0 0.0
    %3191 = vmatprep.subr.mxu0 0.0
    %3192 = vmatpush1.msra.mxu0 0.0
    %3193 = vmatprep.subr.mxu0 0.0
    %3194 = vmatpush1.msra.mxu0 0.0
    %3195 = vmatprep.subr.mxu0 0.0
    %3196 = vmatpush1.msra.mxu0 0.0
    %3197 = vmatprep.subr.mxu0 0.0
    %3198 = vmatpush1.msra.mxu0 0.0
    %3199 = vmatprep.subr.mxu0 0.0
    %3200 = vmatpush1.msra.mxu0 0.0
    %3201 = vmatprep.subr.mxu0 0.0
    %3202 = vmatpush1.msra.mxu0 0.0
    %3203 = vmatprep.subr.mxu0 0.0
    %3204 = vmatpush1.msra.mxu0 0.0
    %3205 = vmatprep.subr.mxu0 0.0
    %3206 = vmatpush1.msra.mxu0 0.0
    %3207 = vmatprep.subr.mxu0 0.0
    %3208 = vmatpush1.msra.mxu0 0.0
    %3209 = vmatprep.subr.mxu0 0.0
    %3210 = vmatpush1.msra.mxu0 0.0
    %3211 = vmatprep.subr.mxu0 0.0
    %3212 = vmatpush1.msra.mxu0 0.0
    %3213 = vmatprep.subr.mxu0 0.0
    %3214 = vmatpush1.msra.mxu0 0.0
    %3215 = vmatprep.subr.mxu0 0.0
    %3216 = vmatpush1.msra.mxu0 0.0
    %3217 = vmatprep.subr.mxu0 0.0
    %3218 = vmatpush1.msra.mxu0 0.0
    %3219 = vmatprep.mubr.f32.mxu0 0.0
    %v3220 = vand.u32 %v568, 4294901760
    %v3221 = vsub.f32 %v568, %v3220
    %v3222 = vand.u32 %v3221, 4294901760
    %v3223 = vsub.f32 %v3221, %v3222
    %v3224 = vand.u32 %v3223, 4294901760
    %3225 = vmatmul.mubr.f32.gmra.mrb[0].mxu0 %v3224
    %v3226 = vpop.f32.mrb[0].mxu0
    %v3227 = vadd.f32 %v3130, %v3226
    %v3228 = vpop.f32.mrb[0].mxu0
    %3229 = vmatprep.mubr.f32.mxu0 0.0
    %v3230 = vand.u32 %v574, 4294901760
    %v3231 = vsub.f32 %v574, %v3230
    %v3232 = vand.u32 %v3231, 4294901760
    %v3233 = vsub.f32 %v3231, %v3232
    %v3234 = vand.u32 %v3233, 4294901760
    %3235 = vmatmul.mubr.f32.gmra.mrb[0].mxu0 %v3234
    %v3236 = vpop.f32.mrb[0].mxu0
    %v3237 = vadd.f32 %v3136, %v3236
    %v3238 = vpop.f32.mrb[0].mxu0
    %3239 = vdwg.mxu0
    %3240 = vmatprep.subr.mxu0 0.0
    %v3241 = vand.u32 %v52, 4294901760
    %v3242 = vsub.f32 %v52, %v3241
    %v3243 = vand.u32 %v3242, 4294901760
    %v3244 = vsub.f32 %v3242, %v3243
    %v3245 = vand.u32 %v3244, 4294901760
    %3246 = vmatpush1.msra.mxu0 %v3245
    %3247 = vmatprep.subr.mxu0 0.0
    %v3248 = vand.u32 %v53, 4294901760
    %v3249 = vsub.f32 %v53, %v3248
    %v3250 = vand.u32 %v3249, 4294901760
    %v3251 = vsub.f32 %v3249, %v3250
    %v3252 = vand.u32 %v3251, 4294901760
    %3253 = vmatpush1.msra.mxu0 %v3252
    %3254 = vmatprep.subr.mxu0 0.0
    %v3255 = vand.u32 %v54, 4294901760
    %v3256 = vsub.f32 %v54, %v3255
    %v3257 = vand.u32 %v3256, 4294901760
    %v3258 = vsub.f32 %v3256, %v3257
    %v3259 = vand.u32 %v3258, 4294901760
    %3260 = vmatpush1.msra.mxu0 %v3259
    %3261 = vmatprep.subr.mxu0 0.0
    %v3262 = vand.u32 %v55, 4294901760
    %v3263 = vsub.f32 %v55, %v3262
    %v3264 = vand.u32 %v3263, 4294901760
    %v3265 = vsub.f32 %v3263, %v3264
    %v3266 = vand.u32 %v3265, 4294901760
    %3267 = vmatpush1.msra.mxu0 %v3266
    %3268 = vmatprep.subr.mxu0 0.0
    %v3269 = vand.u32 %v56, 4294901760
    %v3270 = vsub.f32 %v56, %v3269
    %v3271 = vand.u32 %v3270, 4294901760
    %v3272 = vsub.f32 %v3270, %v3271
    %v3273 = vand.u32 %v3272, 4294901760
    %3274 = vmatpush1.msra.mxu0 %v3273
    %3275 = vmatprep.subr.mxu0 0.0
    %v3276 = vand.u32 %v57, 4294901760
    %v3277 = vsub.f32 %v57, %v3276
    %v3278 = vand.u32 %v3277, 4294901760
    %v3279 = vsub.f32 %v3277, %v3278
    %v3280 = vand.u32 %v3279, 4294901760
    %3281 = vmatpush1.msra.mxu0 %v3280
    %3282 = vmatprep.subr.mxu0 0.0
    %v3283 = vand.u32 %v58, 4294901760
    %v3284 = vsub.f32 %v58, %v3283
    %v3285 = vand.u32 %v3284, 4294901760
    %v3286 = vsub.f32 %v3284, %v3285
    %v3287 = vand.u32 %v3286, 4294901760
    %3288 = vmatpush1.msra.mxu0 %v3287
    %3289 = vmatprep.subr.mxu0 0.0
    %v3290 = vand.u32 %v59, 4294901760
    %v3291 = vsub.f32 %v59, %v3290
    %v3292 = vand.u32 %v3291, 4294901760
    %v3293 = vsub.f32 %v3291, %v3292
    %v3294 = vand.u32 %v3293, 4294901760
    %3295 = vmatpush1.msra.mxu0 %v3294
    %3296 = vmatprep.subr.mxu0 0.0
    %v3297 = vand.u32 %v60, 4294901760
    %v3298 = vsub.f32 %v60, %v3297
    %v3299 = vand.u32 %v3298, 4294901760
    %v3300 = vsub.f32 %v3298, %v3299
    %v3301 = vand.u32 %v3300, 4294901760
    %3302 = vmatpush1.msra.mxu0 %v3301
    %3303 = vmatprep.subr.mxu0 0.0
    %v3304 = vand.u32 %v61, 4294901760
    %v3305 = vsub.f32 %v61, %v3304
    %v3306 = vand.u32 %v3305, 4294901760
    %v3307 = vsub.f32 %v3305, %v3306
    %v3308 = vand.u32 %v3307, 4294901760
    %3309 = vmatpush1.msra.mxu0 %v3308
    %3310 = vmatprep.subr.mxu0 0.0
    %v3311 = vand.u32 %v62, 4294901760
    %v3312 = vsub.f32 %v62, %v3311
    %v3313 = vand.u32 %v3312, 4294901760
    %v3314 = vsub.f32 %v3312, %v3313
    %v3315 = vand.u32 %v3314, 4294901760
    %3316 = vmatpush1.msra.mxu0 %v3315
    %3317 = vmatprep.subr.mxu0 0.0
    %v3318 = vand.u32 %v63, 4294901760
    %v3319 = vsub.f32 %v63, %v3318
    %v3320 = vand.u32 %v3319, 4294901760
    %v3321 = vsub.f32 %v3319, %v3320
    %v3322 = vand.u32 %v3321, 4294901760
    %3323 = vmatpush1.msra.mxu0 %v3322
    %3324 = vmatprep.subr.mxu0 0.0
    %v3325 = vand.u32 %v64, 4294901760
    %v3326 = vsub.f32 %v64, %v3325
    %v3327 = vand.u32 %v3326, 4294901760
    %v3328 = vsub.f32 %v3326, %v3327
    %v3329 = vand.u32 %v3328, 4294901760
    %3330 = vmatpush1.msra.mxu0 %v3329
    %3331 = vmatprep.subr.mxu0 0.0
    %v3332 = vand.u32 %v65, 4294901760
    %v3333 = vsub.f32 %v65, %v3332
    %v3334 = vand.u32 %v3333, 4294901760
    %v3335 = vsub.f32 %v3333, %v3334
    %v3336 = vand.u32 %v3335, 4294901760
    %3337 = vmatpush1.msra.mxu0 %v3336
    %3338 = vmatprep.subr.mxu0 0.0
    %v3339 = vand.u32 %v66, 4294901760
    %v3340 = vsub.f32 %v66, %v3339
    %v3341 = vand.u32 %v3340, 4294901760
    %v3342 = vsub.f32 %v3340, %v3341
    %v3343 = vand.u32 %v3342, 4294901760
    %3344 = vmatpush1.msra.mxu0 %v3343
    %3345 = vmatprep.subr.mxu0 0.0
    %v3346 = vand.u32 %v67, 4294901760
    %v3347 = vsub.f32 %v67, %v3346
    %v3348 = vand.u32 %v3347, 4294901760
    %v3349 = vsub.f32 %v3347, %v3348
    %v3350 = vand.u32 %v3349, 4294901760
    %3351 = vmatpush1.msra.mxu0 %v3350
    %3352 = vmatprep.subr.mxu0 0.0
    %3353 = vmatpush1.msra.mxu0 0.0
    %3354 = vmatprep.subr.mxu0 0.0
    %3355 = vmatpush1.msra.mxu0 0.0
    %3356 = vmatprep.subr.mxu0 0.0
    %3357 = vmatpush1.msra.mxu0 0.0
    %3358 = vmatprep.subr.mxu0 0.0
    %3359 = vmatpush1.msra.mxu0 0.0
    %3360 = vmatprep.subr.mxu0 0.0
    %3361 = vmatpush1.msra.mxu0 0.0
    %3362 = vmatprep.subr.mxu0 0.0
    %3363 = vmatpush1.msra.mxu0 0.0
    %3364 = vmatprep.subr.mxu0 0.0
    %3365 = vmatpush1.msra.mxu0 0.0
    %3366 = vmatprep.subr.mxu0 0.0
    %3367 = vmatpush1.msra.mxu0 0.0
    %3368 = vmatprep.subr.mxu0 0.0
    %3369 = vmatpush1.msra.mxu0 0.0
    %3370 = vmatprep.subr.mxu0 0.0
    %3371 = vmatpush1.msra.mxu0 0.0
    %3372 = vmatprep.subr.mxu0 0.0
    %3373 = vmatpush1.msra.mxu0 0.0
    %3374 = vmatprep.subr.mxu0 0.0
    %3375 = vmatpush1.msra.mxu0 0.0
    %3376 = vmatprep.subr.mxu0 0.0
    %3377 = vmatpush1.msra.mxu0 0.0
    %3378 = vmatprep.subr.mxu0 0.0
    %3379 = vmatpush1.msra.mxu0 0.0
    %3380 = vmatprep.subr.mxu0 0.0
    %3381 = vmatpush1.msra.mxu0 0.0
    %3382 = vmatprep.subr.mxu0 0.0
    %3383 = vmatpush1.msra.mxu0 0.0
    %3384 = vmatprep.mubr.f32.mxu0 0.0
    %v3385 = vand.u32 %v568, 4294901760
    %3386 = vmatmul.mubr.f32.gmra.mrb[0].mxu0 %v3385
    %v3387 = vpop.f32.mrb[0].mxu0
    %v3388 = vadd.f32 %v3227, %v3387
    %v3389 = vpop.f32.mrb[0].mxu0
    %3390 = vmatprep.mubr.f32.mxu0 0.0
    %v3391 = vand.u32 %v574, 4294901760
    %3392 = vmatmul.mubr.f32.gmra.mrb[0].mxu0 %v3391
    %v3393 = vpop.f32.mrb[0].mxu0
    %v3394 = vadd.f32 %v3237, %v3393
    %v3395 = vpop.f32.mrb[0].mxu0
    %3396 = vdwg.mxu0
    %3397 = vmatprep.subr.mxu0 0.0
    %v3398 = vand.u32 %v52, 4294901760
    %v3399 = vsub.f32 %v52, %v3398
    %3400 = vmatpush1.msra.mxu0 %v3399
    %3401 = vmatprep.subr.mxu0 0.0
    %v3402 = vand.u32 %v53, 4294901760
    %v3403 = vsub.f32 %v53, %v3402
    %3404 = vmatpush1.msra.mxu0 %v3403
    %3405 = vmatprep.subr.mxu0 0.0
    %v3406 = vand.u32 %v54, 4294901760
    %v3407 = vsub.f32 %v54, %v3406
    %3408 = vmatpush1.msra.mxu0 %v3407
    %3409 = vmatprep.subr.mxu0 0.0
    %v3410 = vand.u32 %v55, 4294901760
    %v3411 = vsub.f32 %v55, %v3410
    %3412 = vmatpush1.msra.mxu0 %v3411
    %3413 = vmatprep.subr.mxu0 0.0
    %v3414 = vand.u32 %v56, 4294901760
    %v3415 = vsub.f32 %v56, %v3414
    %3416 = vmatpush1.msra.mxu0 %v3415
    %3417 = vmatprep.subr.mxu0 0.0
    %v3418 = vand.u32 %v57, 4294901760
    %v3419 = vsub.f32 %v57, %v3418
    %3420 = vmatpush1.msra.mxu0 %v3419
    %3421 = vmatprep.subr.mxu0 0.0
    %v3422 = vand.u32 %v58, 4294901760
    %v3423 = vsub.f32 %v58, %v3422
    %3424 = vmatpush1.msra.mxu0 %v3423
    %3425 = vmatprep.subr.mxu0 0.0
    %v3426 = vand.u32 %v59, 4294901760
    %v3427 = vsub.f32 %v59, %v3426
    %3428 = vmatpush1.msra.mxu0 %v3427
    %3429 = vmatprep.subr.mxu0 0.0
    %v3430 = vand.u32 %v60, 4294901760
    %v3431 = vsub.f32 %v60, %v3430
    %3432 = vmatpush1.msra.mxu0 %v3431
    %3433 = vmatprep.subr.mxu0 0.0
    %v3434 = vand.u32 %v61, 4294901760
    %v3435 = vsub.f32 %v61, %v3434
    %3436 = vmatpush1.msra.mxu0 %v3435
    %3437 = vmatprep.subr.mxu0 0.0
    %v3438 = vand.u32 %v62, 4294901760
    %v3439 = vsub.f32 %v62, %v3438
    %3440 = vmatpush1.msra.mxu0 %v3439
    %3441 = vmatprep.subr.mxu0 0.0
    %v3442 = vand.u32 %v63, 4294901760
    %v3443 = vsub.f32 %v63, %v3442
    %3444 = vmatpush1.msra.mxu0 %v3443
    %3445 = vmatprep.subr.mxu0 0.0
    %v3446 = vand.u32 %v64, 4294901760
    %v3447 = vsub.f32 %v64, %v3446
    %3448 = vmatpush1.msra.mxu0 %v3447
    %3449 = vmatprep.subr.mxu0 0.0
    %v3450 = vand.u32 %v65, 4294901760
    %v3451 = vsub.f32 %v65, %v3450
    %3452 = vmatpush1.msra.mxu0 %v3451
    %3453 = vmatprep.subr.mxu0 0.0
    %v3454 = vand.u32 %v66, 4294901760
    %v3455 = vsub.f32 %v66, %v3454
    %3456 = vmatpush1.msra.mxu0 %v3455
    %3457 = vmatprep.subr.mxu0 0.0
    %v3458 = vand.u32 %v67, 4294901760
    %v3459 = vsub.f32 %v67, %v3458
    %3460 = vmatpush1.msra.mxu0 %v3459
    %3461 = vmatprep.subr.mxu0 0.0
    %3462 = vmatpush1.msra.mxu0 0.0
    %3463 = vmatprep.subr.mxu0 0.0
    %3464 = vmatpush1.msra.mxu0 0.0
    %3465 = vmatprep.subr.mxu0 0.0
    %3466 = vmatpush1.msra.mxu0 0.0
    %3467 = vmatprep.subr.mxu0 0.0
    %3468 = vmatpush1.msra.mxu0 0.0
    %3469 = vmatprep.subr.mxu0 0.0
    %3470 = vmatpush1.msra.mxu0 0.0
    %3471 = vmatprep.subr.mxu0 0.0
    %3472 = vmatpush1.msra.mxu0 0.0
    %3473 = vmatprep.subr.mxu0 0.0
    %3474 = vmatpush1.msra.mxu0 0.0
    %3475 = vmatprep.subr.mxu0 0.0
    %3476 = vmatpush1.msra.mxu0 0.0
    %3477 = vmatprep.subr.mxu0 0.0
    %3478 = vmatpush1.msra.mxu0 0.0
    %3479 = vmatprep.subr.mxu0 0.0
    %3480 = vmatpush1.msra.mxu0 0.0
    %3481 = vmatprep.subr.mxu0 0.0
    %3482 = vmatpush1.msra.mxu0 0.0
    %3483 = vmatprep.subr.mxu0 0.0
    %3484 = vmatpush1.msra.mxu0 0.0
    %3485 = vmatprep.subr.mxu0 0.0
    %3486 = vmatpush1.msra.mxu0 0.0
    %3487 = vmatprep.subr.mxu0 0.0
    %3488 = vmatpush1.msra.mxu0 0.0
    %3489 = vmatprep.subr.mxu0 0.0
    %3490 = vmatpush1.msra.mxu0 0.0
    %3491 = vmatprep.subr.mxu0 0.0
    %3492 = vmatpush1.msra.mxu0 0.0
    %3493 = vmatprep.mubr.f32.mxu0 0.0
    %v3494 = vand.u32 %v568, 4294901760
    %v3495 = vsub.f32 %v568, %v3494
    %3496 = vmatmul.mubr.f32.gmra.mrb[0].mxu0 %v3495
    %v3497 = vpop.f32.mrb[0].mxu0
    %v3498 = vadd.f32 %v3388, %v3497
    %v3499 = vpop.f32.mrb[0].mxu0
    %3500 = vmatprep.mubr.f32.mxu0 0.0
    %v3501 = vand.u32 %v574, 4294901760
    %v3502 = vsub.f32 %v574, %v3501
    %3503 = vmatmul.mubr.f32.gmra.mrb[0].mxu0 %v3502
    %v3504 = vpop.f32.mrb[0].mxu0
    %v3505 = vadd.f32 %v3394, %v3504
    %v3506 = vpop.f32.mrb[0].mxu0
    %3507 = vdwg.mxu0
    %3508 = vmatprep.subr.mxu0 0.0
    %v3509 = vand.u32 %v52, 4294901760
    %3510 = vmatpush1.msra.mxu0 %v3509
    %3511 = vmatprep.subr.mxu0 0.0
    %v3512 = vand.u32 %v53, 4294901760
    %3513 = vmatpush1.msra.mxu0 %v3512
    %3514 = vmatprep.subr.mxu0 0.0
    %v3515 = vand.u32 %v54, 4294901760
    %3516 = vmatpush1.msra.mxu0 %v3515
    %3517 = vmatprep.subr.mxu0 0.0
    %v3518 = vand.u32 %v55, 4294901760
    %3519 = vmatpush1.msra.mxu0 %v3518
    %3520 = vmatprep.subr.mxu0 0.0
    %v3521 = vand.u32 %v56, 4294901760
    %3522 = vmatpush1.msra.mxu0 %v3521
    %3523 = vmatprep.subr.mxu0 0.0
    %v3524 = vand.u32 %v57, 4294901760
    %3525 = vmatpush1.msra.mxu0 %v3524
    %3526 = vmatprep.subr.mxu0 0.0
    %v3527 = vand.u32 %v58, 4294901760
    %3528 = vmatpush1.msra.mxu0 %v3527
    %3529 = vmatprep.subr.mxu0 0.0
    %v3530 = vand.u32 %v59, 4294901760
    %3531 = vmatpush1.msra.mxu0 %v3530
    %3532 = vmatprep.subr.mxu0 0.0
    %v3533 = vand.u32 %v60, 4294901760
    %3534 = vmatpush1.msra.mxu0 %v3533
    %3535 = vmatprep.subr.mxu0 0.0
    %v3536 = vand.u32 %v61, 4294901760
    %3537 = vmatpush1.msra.mxu0 %v3536
    %3538 = vmatprep.subr.mxu0 0.0
    %v3539 = vand.u32 %v62, 4294901760
    %3540 = vmatpush1.msra.mxu0 %v3539
    %3541 = vmatprep.subr.mxu0 0.0
    %v3542 = vand.u32 %v63, 4294901760
    %3543 = vmatpush1.msra.mxu0 %v3542
    %3544 = vmatprep.subr.mxu0 0.0
    %v3545 = vand.u32 %v64, 4294901760
    %3546 = vmatpush1.msra.mxu0 %v3545
    %3547 = vmatprep.subr.mxu0 0.0
    %v3548 = vand.u32 %v65, 4294901760
    %3549 = vmatpush1.msra.mxu0 %v3548
    %3550 = vmatprep.subr.mxu0 0.0
    %v3551 = vand.u32 %v66, 4294901760
    %3552 = vmatpush1.msra.mxu0 %v3551
    %3553 = vmatprep.subr.mxu0 0.0
    %v3554 = vand.u32 %v67, 4294901760
    %3555 = vmatpush1.msra.mxu0 %v3554
    %3556 = vmatprep.subr.mxu0 0.0
    %3557 = vmatpush1.msra.mxu0 0.0
    %3558 = vmatprep.subr.mxu0 0.0
    %3559 = vmatpush1.msra.mxu0 0.0
    %3560 = vmatprep.subr.mxu0 0.0
    %3561 = vmatpush1.msra.mxu0 0.0
    %3562 = vmatprep.subr.mxu0 0.0
    %3563 = vmatpush1.msra.mxu0 0.0
    %3564 = vmatprep.subr.mxu0 0.0
    %3565 = vmatpush1.msra.mxu0 0.0
    %3566 = vmatprep.subr.mxu0 0.0
    %3567 = vmatpush1.msra.mxu0 0.0
    %3568 = vmatprep.subr.mxu0 0.0
    %3569 = vmatpush1.msra.mxu0 0.0
    %3570 = vmatprep.subr.mxu0 0.0
    %3571 = vmatpush1.msra.mxu0 0.0
    %3572 = vmatprep.subr.mxu0 0.0
    %3573 = vmatpush1.msra.mxu0 0.0
    %3574 = vmatprep.subr.mxu0 0.0
    %3575 = vmatpush1.msra.mxu0 0.0
    %3576 = vmatprep.subr.mxu0 0.0
    %3577 = vmatpush1.msra.mxu0 0.0
    %3578 = vmatprep.subr.mxu0 0.0
    %3579 = vmatpush1.msra.mxu0 0.0
    %3580 = vmatprep.subr.mxu0 0.0
    %3581 = vmatpush1.msra.mxu0 0.0
    %3582 = vmatprep.subr.mxu0 0.0
    %3583 = vmatpush1.msra.mxu0 0.0
    %3584 = vmatprep.subr.mxu0 0.0
    %3585 = vmatpush1.msra.mxu0 0.0
    %3586 = vmatprep.subr.mxu0 0.0
    %3587 = vmatpush1.msra.mxu0 0.0
    %3588 = vmatprep.mubr.f32.mxu0 0.0
    %v3589 = vand.u32 %v568, 4294901760
    %v3590 = vsub.f32 %v568, %v3589
    %v3591 = vand.u32 %v3590, 4294901760
    %3592 = vmatmul.mubr.f32.gmra.mrb[0].mxu0 %v3591
    %v3593 = vpop.f32.mrb[0].mxu0
    %v3594 = vadd.f32 %v3498, %v3593
    %v3595 = vpop.f32.mrb[0].mxu0
    %3596 = vmatprep.mubr.f32.mxu0 0.0
    %v3597 = vand.u32 %v574, 4294901760
    %v3598 = vsub.f32 %v574, %v3597
    %v3599 = vand.u32 %v3598, 4294901760
    %3600 = vmatmul.mubr.f32.gmra.mrb[0].mxu0 %v3599
    %v3601 = vpop.f32.mrb[0].mxu0
    %v3602 = vadd.f32 %v3505, %v3601
    %v3603 = vpop.f32.mrb[0].mxu0
    %3604 = vdwg.mxu0
    %3605 = vmatprep.subr.mxu0 0.0
    %v3606 = vand.u32 %v52, 4294901760
    %v3607 = vsub.f32 %v52, %v3606
    %v3608 = vand.u32 %v3607, 4294901760
    %3609 = vmatpush1.msra.mxu0 %v3608
    %3610 = vmatprep.subr.mxu0 0.0
    %v3611 = vand.u32 %v53, 4294901760
    %v3612 = vsub.f32 %v53, %v3611
    %v3613 = vand.u32 %v3612, 4294901760
    %3614 = vmatpush1.msra.mxu0 %v3613
    %3615 = vmatprep.subr.mxu0 0.0
    %v3616 = vand.u32 %v54, 4294901760
    %v3617 = vsub.f32 %v54, %v3616
    %v3618 = vand.u32 %v3617, 4294901760
    %3619 = vmatpush1.msra.mxu0 %v3618
    %3620 = vmatprep.subr.mxu0 0.0
    %v3621 = vand.u32 %v55, 4294901760
    %v3622 = vsub.f32 %v55, %v3621
    %v3623 = vand.u32 %v3622, 4294901760
    %3624 = vmatpush1.msra.mxu0 %v3623
    %3625 = vmatprep.subr.mxu0 0.0
    %v3626 = vand.u32 %v56, 4294901760
    %v3627 = vsub.f32 %v56, %v3626
    %v3628 = vand.u32 %v3627, 4294901760
    %3629 = vmatpush1.msra.mxu0 %v3628
    %3630 = vmatprep.subr.mxu0 0.0
    %v3631 = vand.u32 %v57, 4294901760
    %v3632 = vsub.f32 %v57, %v3631
    %v3633 = vand.u32 %v3632, 4294901760
    %3634 = vmatpush1.msra.mxu0 %v3633
    %3635 = vmatprep.subr.mxu0 0.0
    %v3636 = vand.u32 %v58, 4294901760
    %v3637 = vsub.f32 %v58, %v3636
    %v3638 = vand.u32 %v3637, 4294901760
    %3639 = vmatpush1.msra.mxu0 %v3638
    %3640 = vmatprep.subr.mxu0 0.0
    %v3641 = vand.u32 %v59, 4294901760
    %v3642 = vsub.f32 %v59, %v3641
    %v3643 = vand.u32 %v3642, 4294901760
    %3644 = vmatpush1.msra.mxu0 %v3643
    %3645 = vmatprep.subr.mxu0 0.0
    %v3646 = vand.u32 %v60, 4294901760
    %v3647 = vsub.f32 %v60, %v3646
    %v3648 = vand.u32 %v3647, 4294901760
    %3649 = vmatpush1.msra.mxu0 %v3648
    %3650 = vmatprep.subr.mxu0 0.0
    %v3651 = vand.u32 %v61, 4294901760
    %v3652 = vsub.f32 %v61, %v3651
    %v3653 = vand.u32 %v3652, 4294901760
    %3654 = vmatpush1.msra.mxu0 %v3653
    %3655 = vmatprep.subr.mxu0 0.0
    %v3656 = vand.u32 %v62, 4294901760
    %v3657 = vsub.f32 %v62, %v3656
    %v3658 = vand.u32 %v3657, 4294901760
    %3659 = vmatpush1.msra.mxu0 %v3658
    %3660 = vmatprep.subr.mxu0 0.0
    %v3661 = vand.u32 %v63, 4294901760
    %v3662 = vsub.f32 %v63, %v3661
    %v3663 = vand.u32 %v3662, 4294901760
    %3664 = vmatpush1.msra.mxu0 %v3663
    %3665 = vmatprep.subr.mxu0 0.0
    %v3666 = vand.u32 %v64, 4294901760
    %v3667 = vsub.f32 %v64, %v3666
    %v3668 = vand.u32 %v3667, 4294901760
    %3669 = vmatpush1.msra.mxu0 %v3668
    %3670 = vmatprep.subr.mxu0 0.0
    %v3671 = vand.u32 %v65, 4294901760
    %v3672 = vsub.f32 %v65, %v3671
    %v3673 = vand.u32 %v3672, 4294901760
    %3674 = vmatpush1.msra.mxu0 %v3673
    %3675 = vmatprep.subr.mxu0 0.0
    %v3676 = vand.u32 %v66, 4294901760
    %v3677 = vsub.f32 %v66, %v3676
    %v3678 = vand.u32 %v3677, 4294901760
    %3679 = vmatpush1.msra.mxu0 %v3678
    %3680 = vmatprep.subr.mxu0 0.0
    %v3681 = vand.u32 %v67, 4294901760
    %v3682 = vsub.f32 %v67, %v3681
    %v3683 = vand.u32 %v3682, 4294901760
    %3684 = vmatpush1.msra.mxu0 %v3683
    %3685 = vmatprep.subr.mxu0 0.0
    %3686 = vmatpush1.msra.mxu0 0.0
    %3687 = vmatprep.subr.mxu0 0.0
    %3688 = vmatpush1.msra.mxu0 0.0
    %3689 = vmatprep.subr.mxu0 0.0
    %3690 = vmatpush1.msra.mxu0 0.0
    %3691 = vmatprep.subr.mxu0 0.0
    %3692 = vmatpush1.msra.mxu0 0.0
    %3693 = vmatprep.subr.mxu0 0.0
    %3694 = vmatpush1.msra.mxu0 0.0
    %3695 = vmatprep.subr.mxu0 0.0
    %3696 = vmatpush1.msra.mxu0 0.0
    %3697 = vmatprep.subr.mxu0 0.0
    %3698 = vmatpush1.msra.mxu0 0.0
    %3699 = vmatprep.subr.mxu0 0.0
    %3700 = vmatpush1.msra.mxu0 0.0
    %3701 = vmatprep.subr.mxu0 0.0
    %3702 = vmatpush1.msra.mxu0 0.0
    %3703 = vmatprep.subr.mxu0 0.0
    %3704 = vmatpush1.msra.mxu0 0.0
    %3705 = vmatprep.subr.mxu0 0.0
    %3706 = vmatpush1.msra.mxu0 0.0
    %3707 = vmatprep.subr.mxu0 0.0
    %3708 = vmatpush1.msra.mxu0 0.0
    %3709 = vmatprep.subr.mxu0 0.0
    %3710 = vmatpush1.msra.mxu0 0.0
    %3711 = vmatprep.subr.mxu0 0.0
    %3712 = vmatpush1.msra.mxu0 0.0
    %3713 = vmatprep.subr.mxu0 0.0
    %3714 = vmatpush1.msra.mxu0 0.0
    %3715 = vmatprep.subr.mxu0 0.0
    %3716 = vmatpush1.msra.mxu0 0.0
    %3717 = vmatprep.mubr.f32.mxu0 0.0
    %v3718 = vand.u32 %v568, 4294901760
    %3719 = vmatmul.mubr.f32.gmra.mrb[0].mxu0 %v3718
    %v3720 = vpop.f32.mrb[0].mxu0
    %v3721 = vadd.f32 %v3594, %v3720
    %v3722 = vpop.f32.mrb[0].mxu0
    %3723 = vmatprep.mubr.f32.mxu0 0.0
    %v3724 = vand.u32 %v574, 4294901760
    %3725 = vmatmul.mubr.f32.gmra.mrb[0].mxu0 %v3724
    %v3726 = vpop.f32.mrb[0].mxu0
    %v3727 = vadd.f32 %v3602, %v3726
    %v3728 = vpop.f32.mrb[0].mxu0
    %3729 = vdwg.mxu0
    %3730 = vmatprep.subr.mxu0 0.0
    %v3731 = vand.u32 %v52, 4294901760
    %3732 = vmatpush1.msra.mxu0 %v3731
    %3733 = vmatprep.subr.mxu0 0.0
    %v3734 = vand.u32 %v53, 4294901760
    %3735 = vmatpush1.msra.mxu0 %v3734
    %3736 = vmatprep.subr.mxu0 0.0
    %v3737 = vand.u32 %v54, 4294901760
    %3738 = vmatpush1.msra.mxu0 %v3737
    %3739 = vmatprep.subr.mxu0 0.0
    %v3740 = vand.u32 %v55, 4294901760
    %3741 = vmatpush1.msra.mxu0 %v3740
    %3742 = vmatprep.subr.mxu0 0.0
    %v3743 = vand.u32 %v56, 4294901760
    %3744 = vmatpush1.msra.mxu0 %v3743
    %3745 = vmatprep.subr.mxu0 0.0
    %v3746 = vand.u32 %v57, 4294901760
    %3747 = vmatpush1.msra.mxu0 %v3746
    %3748 = vmatprep.subr.mxu0 0.0
    %v3749 = vand.u32 %v58, 4294901760
    %3750 = vmatpush1.msra.mxu0 %v3749
    %3751 = vmatprep.subr.mxu0 0.0
    %v3752 = vand.u32 %v59, 4294901760
    %3753 = vmatpush1.msra.mxu0 %v3752
    %3754 = vmatprep.subr.mxu0 0.0
    %v3755 = vand.u32 %v60, 4294901760
    %3756 = vmatpush1.msra.mxu0 %v3755
    %3757 = vmatprep.subr.mxu0 0.0
    %v3758 = vand.u32 %v61, 4294901760
    %3759 = vmatpush1.msra.mxu0 %v3758
    %3760 = vmatprep.subr.mxu0 0.0
    %v3761 = vand.u32 %v62, 4294901760
    %3762 = vmatpush1.msra.mxu0 %v3761
    %3763 = vmatprep.subr.mxu0 0.0
    %v3764 = vand.u32 %v63, 4294901760
    %3765 = vmatpush1.msra.mxu0 %v3764
    %3766 = vmatprep.subr.mxu0 0.0
    %v3767 = vand.u32 %v64, 4294901760
    %3768 = vmatpush1.msra.mxu0 %v3767
    %3769 = vmatprep.subr.mxu0 0.0
    %v3770 = vand.u32 %v65, 4294901760
    %3771 = vmatpush1.msra.mxu0 %v3770
    %3772 = vmatprep.subr.mxu0 0.0
    %v3773 = vand.u32 %v66, 4294901760
    %3774 = vmatpush1.msra.mxu0 %v3773
    %3775 = vmatprep.subr.mxu0 0.0
    %v3776 = vand.u32 %v67, 4294901760
    %3777 = vmatpush1.msra.mxu0 %v3776
    %3778 = vmatprep.subr.mxu0 0.0
    %3779 = vmatpush1.msra.mxu0 0.0
    %3780 = vmatprep.subr.mxu0 0.0
    %3781 = vmatpush1.msra.mxu0 0.0
    %3782 = vmatprep.subr.mxu0 0.0
    %3783 = vmatpush1.msra.mxu0 0.0
    %3784 = vmatprep.subr.mxu0 0.0
    %3785 = vmatpush1.msra.mxu0 0.0
    %3786 = vmatprep.subr.mxu0 0.0
    %3787 = vmatpush1.msra.mxu0 0.0
    %3788 = vmatprep.subr.mxu0 0.0
    %3789 = vmatpush1.msra.mxu0 0.0
    %3790 = vmatprep.subr.mxu0 0.0
    %3791 = vmatpush1.msra.mxu0 0.0
    %3792 = vmatprep.subr.mxu0 0.0
    %3793 = vmatpush1.msra.mxu0 0.0
    %3794 = vmatprep.subr.mxu0 0.0
    %3795 = vmatpush1.msra.mxu0 0.0
    %3796 = vmatprep.subr.mxu0 0.0
    %3797 = vmatpush1.msra.mxu0 0.0
    %3798 = vmatprep.subr.mxu0 0.0
    %3799 = vmatpush1.msra.mxu0 0.0
    %3800 = vmatprep.subr.mxu0 0.0
    %3801 = vmatpush1.msra.mxu0 0.0
    %3802 = vmatprep.subr.mxu0 0.0
    %3803 = vmatpush1.msra.mxu0 0.0
    %3804 = vmatprep.subr.mxu0 0.0
    %3805 = vmatpush1.msra.mxu0 0.0
    %3806 = vmatprep.subr.mxu0 0.0
    %3807 = vmatpush1.msra.mxu0 0.0
    %3808 = vmatprep.subr.mxu0 0.0
    %3809 = vmatpush1.msra.mxu0 0.0
    %3810 = vmatprep.mubr.f32.mxu0 0.0
    %v3811 = vand.u32 %v568, 4294901760
    %3812 = vmatmul.mubr.f32.gmra.mrb[0].mxu0 %v3811
    %v3813 = vpop.f32.mrb[0].mxu0
    %v3814 = vadd.f32 %v3721, %v3813
    %v3815 = vpop.f32.mrb[0].mxu0
    %3816 = vmatprep.mubr.f32.mxu0 0.0
    %v3817 = vand.u32 %v574, 4294901760
    %3818 = vmatmul.mubr.f32.gmra.mrb[0].mxu0 %v3817
    %v3819 = vpop.f32.mrb[0].mxu0
    %v3820 = vadd.f32 %v3727, %v3819
    %v3821 = vpop.f32.mrb[0].mxu0
    %3822 = vdwg.mxu0
    %3823 = vst [vmem:[%s3] sm:$0xff] %v2453
    %3824 = vst [vmem:[%s3 + $0x8] sm:$0xff] %v2454
    %3825 = vst [vmem:[%s4] sm:$0xff] %v3814
    %3826 = vst [vmem:[%s4 + $0x8] sm:$0xff] %v3820
    // Predicated region
    $region18: #{fwd.2} parent=1 // pred_check
      _
    $region19: #{fwd.2} parent=1 // pred_check_branch
      %3828 = sbr.rel (0) target = $region21
    $region20: #{fwd.2} parent=1 // pred_region
      _
    $region21: #{fwd.2} parent=1 // pred_fallthru
      _
    // Predicated region
    $region22: #{fwd.2} parent=1 // pred_check
      _
    $region23: #{fwd.2} parent=1 // pred_check_branch
      %3830 = sbr.rel (0) target = $region25
    $region24: #{fwd.2} parent=1 // pred_region
      _
    $region25: #{fwd.2} parent=1 // pred_fallthru
      _
    // Predicated region
    $region26: #{fwd.2} parent=1 // pred_check
      _
    $region27: #{fwd.2} parent=1 // pred_check_branch
      %3832 = sbr.rel (0) target = $region29
    $region28: #{fwd.2} parent=1 // pred_region
      _
    $region29: #{fwd.2} parent=1 // pred_fallthru
      _
    // Predicated region
    $region30: #{fwd.2} parent=1 // pred_check
      _
    $region31: #{fwd.2} parent=1 // pred_check_branch
      %3834 = sbr.rel (0) target = $region33
    $region32: #{fwd.2} parent=1 // pred_region
      _
    $region33: #{fwd.2} parent=1 // pred_fallthru
      _
    %3835 = vsyncpa [#allocation3], 1

// kernel: fwd.3
$region0: #{fwd.3}
  #allocation0 [shape = 'u32[]', space=smem, size = 0x4, offset = 0x4, fixed_abs, tag = 'smem constant byte address 0x4 - core index']
  #allocation1 [shape = 'u32[144,128]{1,0:T(1,128)}', space=vmem, size = 0x12000, scoped, tag = 'internal scratch']
  %s0 = inlined_call_operand.vmem [shape: f32[16,128], index: 0, kind: input, shape index: {}]
  %s1 = inlined_call_operand.vmem [shape: f32[16,128], index: 1, kind: input, shape index: {}]
  %s2 = inlined_call_operand.hbm [shape: f32[512,128], index: 2, kind: input, shape index: {}]
  %s3 = inlined_call_operand.hbm [shape: f32[64,128], index: 3, kind: input, shape index: {}]
  %s4 = inlined_call_operand.vmem [shape: f32[16,128], index: 4, kind: input, shape index: {}]
  %s5 = inlined_call_operand.hbm [shape: f32[64,16], index: 5, kind: input, shape index: {}]
  %s6 = inlined_call_operand.vmem [shape: f32[256,256], index: 6, kind: input, shape index: {}]
  %s7 = inlined_call_operand.vmem [shape: f32[32,256], index: 7, kind: output, shape index: {}]
  %s8 = sld [smem:[#allocation0]]
  $region50: #{fwd.3} parent=0
    _
  %s10 = ssub.s32 1, %s8
  %s11 = scalar_select 0, %s10, %s8
  $region1: #{fwd.3} parent=0
    #allocation2 [shape = 'u8[262144]{0}', space=vmem, size = 0x40000, scoped, tag = 'input window, operand 2, single buffered']
    #allocation3 [shape = 's32[1]{0}', space=sflag, size = 0x4, scoped, tag = 'scoped memory for fwd.3']
    #allocation4 [shape = 'u8[32768]{0}', space=vmem, size = 0x8000, scoped, tag = 'input window, operand 3, single buffered']
    #allocation5 [shape = 's32[1]{0}', space=sflag, size = 0x4, scoped, tag = 'scoped memory for fwd.3']
    #allocation6 [shape = 'u8[32768]{0}', space=vmem, size = 0x8000, scoped, tag = 'input window, operand 5, single buffered']
    %12 = vsyncpa [#allocation3], 0
    %13 = vsyncpa [#allocation5], 0
    // Predicated region
    $region2: #{fwd.3} parent=1 // pred_check
      _
    $region3: #{fwd.3} parent=1 // pred_check_branch
      %15 = sbr.rel (0) target = $region5
    $region4: #{fwd.3} parent=1 // pred_region
      _
    $region5: #{fwd.3} parent=1 // pred_fallthru
      _
    // Predicated region
    $region6: #{fwd.3} parent=1 // pred_check
      _
    $region7: #{fwd.3} parent=1 // pred_check_branch
      %17 = sbr.rel (0) target = $region9
    $region8: #{fwd.3} parent=1 // pred_region
      _
    $region9: #{fwd.3} parent=1 // pred_fallthru
      _
    // Predicated region
    $region10: #{fwd.3} parent=1 // pred_check
      _
    $region11: #{fwd.3} parent=1 // pred_check_branch
      %19 = sbr.rel (0) target = $region13
    $region12: #{fwd.3} parent=1 // pred_region
      %s21 = ssub.s32 8192, 8192
      %22 = vsyncadd [#allocation3], %s21
      %s23 = sshll.u32 [#allocation2], 4
      %s24 = int_to_ptr.vmem [resolvable:$true] %s23
      %29 = dma.hbm_to_vmem [thread:$0]  %s2, 8192, %s24, [#allocation3], 128, 128, 8
    $region13: #{fwd.3} parent=1 // pred_fallthru
      _
    // Predicated region
    $region14: #{fwd.3} parent=1 // pred_check
      _
    $region15: #{fwd.3} parent=1 // pred_check_branch
      %31 = sbr.rel (0) target = $region17
    $region16: #{fwd.3} parent=1 // pred_region
      %s33 = ssub.s32 1024, 1024
      %34 = vsyncadd [#allocation5], %s33
      %s35 = sshll.u32 [#allocation4], 4
      %s36 = int_to_ptr.vmem [resolvable:$true] %s35
      %41 = dma.hbm_to_vmem [thread:$0]  %s3, 1024, %s36, [#allocation5], 128, 128, 8
    $region17: #{fwd.3} parent=1 // pred_fallthru
      _
    // Predicated region
    $region18: #{fwd.3} parent=1 // pred_check
      _
    $region19: #{fwd.3} parent=1 // pred_check_branch
      %43 = sbr.rel (0) target = $region21
    $region20: #{fwd.3} parent=1 // pred_region
      _
    $region21: #{fwd.3} parent=1 // pred_fallthru
      _
    // Predicated region
    $region22: #{fwd.3} parent=1 // pred_check
      _
    $region23: #{fwd.3} parent=1 // pred_check_branch
      %45 = sbr.rel (0) target = $region25
    $region24: #{fwd.3} parent=1 // pred_region
      %s47 = ssub.s32 1024, 1024
      %48 = vsyncadd [#allocation5], %s47
      %s49 = sshll.u32 [#allocation6], 4
      %s50 = int_to_ptr.vmem [resolvable:$true] %s49
      %55 = dma.hbm_to_vmem [thread:$0]  %s5, 1024, %s50, [#allocation5], 128, 128, 8
    $region25: #{fwd.3} parent=1 // pred_fallthru
      _
    // Predicated region
    $region26: #{fwd.3} parent=1 // pred_check
      _
    $region27: #{fwd.3} parent=1 // pred_check_branch
      %57 = sbr.rel (0) target = $region29
    $region28: #{fwd.3} parent=1 // pred_region
      _
    $region29: #{fwd.3} parent=1 // pred_fallthru
      _
    // Predicated region
    $region30: #{fwd.3} parent=1 // pred_check
      _
    $region31: #{fwd.3} parent=1 // pred_check_branch
      %59 = sbr.rel (0) target = $region33
    $region32: #{fwd.3} parent=1 // pred_region
      %60 = dma.done [#allocation3], 8192
    $region33: #{fwd.3} parent=1 // pred_fallthru
      _
    // Predicated region
    $region34: #{fwd.3} parent=1 // pred_check
      _
    $region35: #{fwd.3} parent=1 // pred_check_branch
      %62 = sbr.rel (0) target = $region37
    $region36: #{fwd.3} parent=1 // pred_region
      %63 = dma.done [#allocation5], 1024
    $region37: #{fwd.3} parent=1 // pred_fallthru
      _
    // Predicated region
    $region38: #{fwd.3} parent=1 // pred_check
      _
    $region39: #{fwd.3} parent=1 // pred_check_branch
      %65 = sbr.rel (0) target = $region41
    $region40: #{fwd.3} parent=1 // pred_region
      %66 = dma.done [#allocation5], 1024
    $region41: #{fwd.3} parent=1 // pred_fallthru
      _
    %v67 = vld [vmem:[%s0] sm:$0xff]
    %v68 = vld [vmem:[%s0 + $0x8] sm:$0xff]
    %v69 = vld [vmem:[%s1] sm:$0xff]
    %v70 = vld [vmem:[%s1 + $0x8] sm:$0xff]
    %v71 = vld [vmem:[#allocation2] sm:$0xff]
    %v72 = vld [vmem:[#allocation2 + $0x8] sm:$0xff]
    %v73 = vld [vmem:[#allocation2 + $0x10] sm:$0xff]
    %v74 = vld [vmem:[#allocation2 + $0x18] sm:$0xff]
    %v75 = vld [vmem:[#allocation2 + $0x20] sm:$0xff]
    %v76 = vld [vmem:[#allocation2 + $0x28] sm:$0xff]
    %v77 = vld [vmem:[#allocation2 + $0x30] sm:$0xff]
    %v78 = vld [vmem:[#allocation2 + $0x38] sm:$0xff]
    %v79 = vld [vmem:[#allocation2 + $0x40] sm:$0xff]
    %v80 = vld [vmem:[#allocation2 + $0x48] sm:$0xff]
    %v81 = vld [vmem:[#allocation2 + $0x50] sm:$0xff]
    %v82 = vld [vmem:[#allocation2 + $0x58] sm:$0xff]
    %v83 = vld [vmem:[#allocation2 + $0x60] sm:$0xff]
    %v84 = vld [vmem:[#allocation2 + $0x68] sm:$0xff]
    %v85 = vld [vmem:[#allocation2 + $0x70] sm:$0xff]
    %v86 = vld [vmem:[#allocation2 + $0x78] sm:$0xff]
    %v87 = vld [vmem:[#allocation4] sm:$0xff]
    %v88 = vld [vmem:[#allocation4 + $0x8] sm:$0xff]
    %v89 = vld [vmem:[#allocation2 + $0x80] sm:$0xff]
    %v90 = vld [vmem:[#allocation2 + $0x88] sm:$0xff]
    %v91 = vld [vmem:[#allocation2 + $0x90] sm:$0xff]
    %v92 = vld [vmem:[#allocation2 + $0x98] sm:$0xff]
    %v93 = vld [vmem:[#allocation2 + $0xa0] sm:$0xff]
    %v94 = vld [vmem:[#allocation2 + $0xa8] sm:$0xff]
    %v95 = vld [vmem:[#allocation2 + $0xb0] sm:$0xff]
    %v96 = vld [vmem:[#allocation2 + $0xb8] sm:$0xff]
    %v97 = vld [vmem:[#allocation2 + $0xc0] sm:$0xff]
    %v98 = vld [vmem:[#allocation2 + $0xc8] sm:$0xff]
    %v99 = vld [vmem:[#allocation2 + $0xd0] sm:$0xff]
    %v100 = vld [vmem:[#allocation2 + $0xd8] sm:$0xff]
    %v101 = vld [vmem:[#allocation2 + $0xe0] sm:$0xff]
    %v102 = vld [vmem:[#allocation2 + $0xe8] sm:$0xff]
    %v103 = vld [vmem:[#allocation2 + $0xf0] sm:$0xff]
    %v104 = vld [vmem:[#allocation2 + $0xf8] sm:$0xff]
    %v105 = vld [vmem:[#allocation4 + $0x10] sm:$0xff]
    %v106 = vld [vmem:[#allocation4 + $0x18] sm:$0xff]
    %107 = vmatprep.subr.mxu0 0.0
    %108 = vmatpush1.msra.mxu0 %v71
    %109 = vmatprep.subr.mxu0 0.0
    %110 = vmatpush1.msra.mxu0 %v72
    %111 = vmatprep.subr.mxu0 0.0
    %112 = vmatpush1.msra.mxu0 %v73
    %113 = vmatprep.subr.mxu0 0.0
    %114 = vmatpush1.msra.mxu0 %v74
    %115 = vmatprep.subr.mxu0 0.0
    %116 = vmatpush1.msra.mxu0 %v75
    %117 = vmatprep.subr.mxu0 0.0
    %118 = vmatpush1.msra.mxu0 %v76
    %119 = vmatprep.subr.mxu0 0.0
    %120 = vmatpush1.msra.mxu0 %v77
    %121 = vmatprep.subr.mxu0 0.0
    %122 = vmatpush1.msra.mxu0 %v78
    %123 = vmatprep.subr.mxu0 0.0
    %124 = vmatpush1.msra.mxu0 %v79
    %125 = vmatprep.subr.mxu0 0.0
    %126 = vmatpush1.msra.mxu0 %v80
    %127 = vmatprep.subr.mxu0 0.0
    %128 = vmatpush1.msra.mxu0 %v81
    %129 = vmatprep.subr.mxu0 0.0
    %130 = vmatpush1.msra.mxu0 %v82
    %131 = vmatprep.subr.mxu0 0.0
    %132 = vmatpush1.msra.mxu0 %v83
    %133 = vmatprep.subr.mxu0 0.0
    %134 = vmatpush1.msra.mxu0 %v84
    %135 = vmatprep.subr.mxu0 0.0
    %136 = vmatpush1.msra.mxu0 %v85
    %137 = vmatprep.subr.mxu0 0.0
    %138 = vmatpush1.msra.mxu0 %v86
    %139 = vmatprep.subr.mxu0 0.0
    %140 = vmatpush1.msra.mxu0 0.0
    %141 = vmatprep.subr.mxu0 0.0
    %142 = vmatpush1.msra.mxu0 0.0
    %143 = vmatprep.subr.mxu0 0.0
    %144 = vmatpush1.msra.mxu0 0.0
    %145 = vmatprep.subr.mxu0 0.0
    %146 = vmatpush1.msra.mxu0 0.0
    %147 = vmatprep.subr.mxu0 0.0
    %148 = vmatpush1.msra.mxu0 0.0
    %149 = vmatprep.subr.mxu0 0.0
    %150 = vmatpush1.msra.mxu0 0.0
    %151 = vmatprep.subr.mxu0 0.0
    %152 = vmatpush1.msra.mxu0 0.0
    %153 = vmatprep.subr.mxu0 0.0
    %154 = vmatpush1.msra.mxu0 0.0
    %155 = vmatprep.subr.mxu0 0.0
    %156 = vmatpush1.msra.mxu0 0.0
    %157 = vmatprep.subr.mxu0 0.0
    %158 = vmatpush1.msra.mxu0 0.0
    %159 = vmatprep.subr.mxu0 0.0
    %160 = vmatpush1.msra.mxu0 0.0
    %161 = vmatprep.subr.mxu0 0.0
    %162 = vmatpush1.msra.mxu0 0.0
    %163 = vmatprep.subr.mxu0 0.0
    %164 = vmatpush1.msra.mxu0 0.0
    %165 = vmatprep.subr.mxu0 0.0
    %166 = vmatpush1.msra.mxu0 0.0
    %167 = vmatprep.subr.mxu0 0.0
    %168 = vmatpush1.msra.mxu0 0.0
    %169 = vmatprep.subr.mxu0 0.0
    %170 = vmatpush1.msra.mxu0 0.0
    %171 = vmatprep.mubr.f32.mxu0 0.0
    %172 = vmatmul.mubr.f32.gmra.mrb[0].mxu0 %v67
    %v173 = vpop.f32.mrb[0].mxu0
    %v174 = vadd.f32 %v87, %v173
    %v175 = vpop.f32.mrb[0].mxu0
    %176 = vmatprep.mubr.f32.mxu0 0.0
    %177 = vmatmul.mubr.f32.gmra.mrb[0].mxu0 %v68
    %v178 = vpop.f32.mrb[0].mxu0
    %v179 = vadd.f32 %v88, %v178
    %v180 = vpop.f32.mrb[0].mxu0
    %181 = vdwg.mxu0
    %vm182 = vcmp.ge.f32.partialorder %v174, 0.0
    %vm183 = vcmp.ge.f32.partialorder %v179, 0.0
    %v184 = vmul.f32 %v174, 0.1
    %v185 = vmul.f32 %v179, 0.1
    %v186 = vsel %vm182, %v174, %v184
    %v187 = vsel %vm183, %v179, %v185
    %188 = vmatprep.subr.mxu0 0.0
    %189 = vmatpush1.msra.mxu0 %v89
    %190 = vmatprep.subr.mxu0 0.0
    %191 = vmatpush1.msra.mxu0 %v90
    %192 = vmatprep.subr.mxu0 0.0
    %193 = vmatpush1.msra.mxu0 %v91
    %194 = vmatprep.subr.mxu0 0.0
    %195 = vmatpush1.msra.mxu0 %v92
    %196 = vmatprep.subr.mxu0 0.0
    %197 = vmatpush1.msra.mxu0 %v93
    %198 = vmatprep.subr.mxu0 0.0
    %199 = vmatpush1.msra.mxu0 %v94
    %200 = vmatprep.subr.mxu0 0.0
    %201 = vmatpush1.msra.mxu0 %v95
    %202 = vmatprep.subr.mxu0 0.0
    %203 = vmatpush1.msra.mxu0 %v96
    %204 = vmatprep.subr.mxu0 0.0
    %205 = vmatpush1.msra.mxu0 %v97
    %206 = vmatprep.subr.mxu0 0.0
    %207 = vmatpush1.msra.mxu0 %v98
    %208 = vmatprep.subr.mxu0 0.0
    %209 = vmatpush1.msra.mxu0 %v99
    %210 = vmatprep.subr.mxu0 0.0
    %211 = vmatpush1.msra.mxu0 %v100
    %212 = vmatprep.subr.mxu0 0.0
    %213 = vmatpush1.msra.mxu0 %v101
    %214 = vmatprep.subr.mxu0 0.0
    %215 = vmatpush1.msra.mxu0 %v102
    %216 = vmatprep.subr.mxu0 0.0
    %217 = vmatpush1.msra.mxu0 %v103
    %218 = vmatprep.subr.mxu0 0.0
    %219 = vmatpush1.msra.mxu0 %v104
    %220 = vmatprep.subr.mxu0 0.0
    %221 = vmatpush1.msra.mxu0 0.0
    %222 = vmatprep.subr.mxu0 0.0
    %223 = vmatpush1.msra.mxu0 0.0
    %224 = vmatprep.subr.mxu0 0.0
    %225 = vmatpush1.msra.mxu0 0.0
    %226 = vmatprep.subr.mxu0 0.0
    %227 = vmatpush1.msra.mxu0 0.0
    %228 = vmatprep.subr.mxu0 0.0
    %229 = vmatpush1.msra.mxu0 0.0
    %230 = vmatprep.subr.mxu0 0.0
    %231 = vmatpush1.msra.mxu0 0.0
    %232 = vmatprep.subr.mxu0 0.0
    %233 = vmatpush1.msra.mxu0 0.0
    %234 = vmatprep.subr.mxu0 0.0
    %235 = vmatpush1.msra.mxu0 0.0
    %236 = vmatprep.subr.mxu0 0.0
    %237 = vmatpush1.msra.mxu0 0.0
    %238 = vmatprep.subr.mxu0 0.0
    %239 = vmatpush1.msra.mxu0 0.0
    %240 = vmatprep.subr.mxu0 0.0
    %241 = vmatpush1.msra.mxu0 0.0
    %242 = vmatprep.subr.mxu0 0.0
    %243 = vmatpush1.msra.mxu0 0.0
    %244 = vmatprep.subr.mxu0 0.0
    %245 = vmatpush1.msra.mxu0 0.0
    %246 = vmatprep.subr.mxu0 0.0
    %247 = vmatpush1.msra.mxu0 0.0
    %248 = vmatprep.subr.mxu0 0.0
    %249 = vmatpush1.msra.mxu0 0.0
    %250 = vmatprep.subr.mxu0 0.0
    %251 = vmatpush1.msra.mxu0 0.0
    %252 = vmatprep.mubr.f32.mxu0 0.0
    %253 = vmatmul.mubr.f32.gmra.mrb[0].mxu0 %v186
    %v254 = vpop.f32.mrb[0].mxu0
    %v255 = vadd.f32 %v105, %v254
    %v256 = vpop.f32.mrb[0].mxu0
    %257 = vmatprep.mubr.f32.mxu0 0.0
    %258 = vmatmul.mubr.f32.gmra.mrb[0].mxu0 %v187
    %v259 = vpop.f32.mrb[0].mxu0
    %v260 = vadd.f32 %v106, %v259
    %v261 = vpop.f32.mrb[0].mxu0
    %262 = vdwg.mxu0
    %v263 = vld [vmem:[#allocation2 + $0x100] sm:$0xff]
    %v264 = vld [vmem:[#allocation2 + $0x108] sm:$0xff]
    %v265 = vld [vmem:[#allocation2 + $0x110] sm:$0xff]
    %v266 = vld [vmem:[#allocation2 + $0x118] sm:$0xff]
    %v267 = vld [vmem:[#allocation2 + $0x120] sm:$0xff]
    %v268 = vld [vmem:[#allocation2 + $0x128] sm:$0xff]
    %v269 = vld [vmem:[#allocation2 + $0x130] sm:$0xff]
    %v270 = vld [vmem:[#allocation2 + $0x138] sm:$0xff]
    %v271 = vld [vmem:[#allocation2 + $0x140] sm:$0xff]
    %v272 = vld [vmem:[#allocation2 + $0x148] sm:$0xff]
    %v273 = vld [vmem:[#allocation2 + $0x150] sm:$0xff]
    %v274 = vld [vmem:[#allocation2 + $0x158] sm:$0xff]
    %v275 = vld [vmem:[#allocation2 + $0x160] sm:$0xff]
    %v276 = vld [vmem:[#allocation2 + $0x168] sm:$0xff]
    %v277 = vld [vmem:[#allocation2 + $0x170] sm:$0xff]
    %v278 = vld [vmem:[#allocation2 + $0x178] sm:$0xff]
    %v279 = vld [vmem:[#allocation4 + $0x20] sm:$0xff]
    %v280 = vld [vmem:[#allocation4 + $0x28] sm:$0xff]
    %v281 = vld [vmem:[#allocation2 + $0x180] sm:$0xff]
    %v282 = vld [vmem:[#allocation2 + $0x188] sm:$0xff]
    %v283 = vld [vmem:[#allocation2 + $0x190] sm:$0xff]
    %v284 = vld [vmem:[#allocation2 + $0x198] sm:$0xff]
    %v285 = vld [vmem:[#allocation2 + $0x1a0] sm:$0xff]
    %v286 = vld [vmem:[#allocation2 + $0x1a8] sm:$0xff]
    %v287 = vld [vmem:[#allocation2 + $0x1b0] sm:$0xff]
    %v288 = vld [vmem:[#allocation2 + $0x1b8] sm:$0xff]
    %v289 = vld [vmem:[#allocation2 + $0x1c0] sm:$0xff]
    %v290 = vld [vmem:[#allocation2 + $0x1c8] sm:$0xff]
    %v291 = vld [vmem:[#allocation2 + $0x1d0] sm:$0xff]
    %v292 = vld [vmem:[#allocation2 + $0x1d8] sm:$0xff]
    %v293 = vld [vmem:[#allocation2 + $0x1e0] sm:$0xff]
    %v294 = vld [vmem:[#allocation2 + $0x1e8] sm:$0xff]
    %v295 = vld [vmem:[#allocation2 + $0x1f0] sm:$0xff]
    %v296 = vld [vmem:[#allocation2 + $0x1f8] sm:$0xff]
    %v297 = vld [vmem:[#allocation4 + $0x30] sm:$0xff]
    %v298 = vld [vmem:[#allocation4 + $0x38] sm:$0xff]
    %299 = vmatprep.subr.mxu0 0.0
    %300 = vmatpush1.msra.mxu0 %v263
    %301 = vmatprep.subr.mxu0 0.0
    %302 = vmatpush1.msra.mxu0 %v264
    %303 = vmatprep.subr.mxu0 0.0
    %304 = vmatpush1.msra.mxu0 %v265
    %305 = vmatprep.subr.mxu0 0.0
    %306 = vmatpush1.msra.mxu0 %v266
    %307 = vmatprep.subr.mxu0 0.0
    %308 = vmatpush1.msra.mxu0 %v267
    %309 = vmatprep.subr.mxu0 0.0
    %310 = vmatpush1.msra.mxu0 %v268
    %311 = vmatprep.subr.mxu0 0.0
    %312 = vmatpush1.msra.mxu0 %v269
    %313 = vmatprep.subr.mxu0 0.0
    %314 = vmatpush1.msra.mxu0 %v270
    %315 = vmatprep.subr.mxu0 0.0
    %316 = vmatpush1.msra.mxu0 %v271
    %317 = vmatprep.subr.mxu0 0.0
    %318 = vmatpush1.msra.mxu0 %v272
    %319 = vmatprep.subr.mxu0 0.0
    %320 = vmatpush1.msra.mxu0 %v273
    %321 = vmatprep.subr.mxu0 0.0
    %322 = vmatpush1.msra.mxu0 %v274
    %323 = vmatprep.subr.mxu0 0.0
    %324 = vmatpush1.msra.mxu0 %v275
    %325 = vmatprep.subr.mxu0 0.0
    %326 = vmatpush1.msra.mxu0 %v276
    %327 = vmatprep.subr.mxu0 0.0
    %328 = vmatpush1.msra.mxu0 %v277
    %329 = vmatprep.subr.mxu0 0.0
    %330 = vmatpush1.msra.mxu0 %v278
    %331 = vmatprep.subr.mxu0 0.0
    %332 = vmatpush1.msra.mxu0 0.0
    %333 = vmatprep.subr.mxu0 0.0
    %334 = vmatpush1.msra.mxu0 0.0
    %335 = vmatprep.subr.mxu0 0.0
    %336 = vmatpush1.msra.mxu0 0.0
    %337 = vmatprep.subr.mxu0 0.0
    %338 = vmatpush1.msra.mxu0 0.0
    %339 = vmatprep.subr.mxu0 0.0
    %340 = vmatpush1.msra.mxu0 0.0
    %341 = vmatprep.subr.mxu0 0.0
    %342 = vmatpush1.msra.mxu0 0.0
    %343 = vmatprep.subr.mxu0 0.0
    %344 = vmatpush1.msra.mxu0 0.0
    %345 = vmatprep.subr.mxu0 0.0
    %346 = vmatpush1.msra.mxu0 0.0
    %347 = vmatprep.subr.mxu0 0.0
    %348 = vmatpush1.msra.mxu0 0.0
    %349 = vmatprep.subr.mxu0 0.0
    %350 = vmatpush1.msra.mxu0 0.0
    %351 = vmatprep.subr.mxu0 0.0
    %352 = vmatpush1.msra.mxu0 0.0
    %353 = vmatprep.subr.mxu0 0.0
    %354 = vmatpush1.msra.mxu0 0.0
    %355 = vmatprep.subr.mxu0 0.0
    %356 = vmatpush1.msra.mxu0 0.0
    %357 = vmatprep.subr.mxu0 0.0
    %358 = vmatpush1.msra.mxu0 0.0
    %359 = vmatprep.subr.mxu0 0.0
    %360 = vmatpush1.msra.mxu0 0.0
    %361 = vmatprep.subr.mxu0 0.0
    %362 = vmatpush1.msra.mxu0 0.0
    %363 = vmatprep.mubr.f32.mxu0 0.0
    %364 = vmatmul.mubr.f32.gmra.mrb[0].mxu0 %v69
    %v365 = vpop.f32.mrb[0].mxu0
    %v366 = vadd.f32 %v279, %v365
    %v367 = vpop.f32.mrb[0].mxu0
    %368 = vmatprep.mubr.f32.mxu0 0.0
    %369 = vmatmul.mubr.f32.gmra.mrb[0].mxu0 %v70
    %v370 = vpop.f32.mrb[0].mxu0
    %v371 = vadd.f32 %v280, %v370
    %v372 = vpop.f32.mrb[0].mxu0
    %373 = vdwg.mxu0
    %vm374 = vcmp.ge.f32.partialorder %v366, 0.0
    %vm375 = vcmp.ge.f32.partialorder %v371, 0.0
    %v376 = vmul.f32 %v366, 0.1
    %v377 = vmul.f32 %v371, 0.1
    %v378 = vsel %vm374, %v366, %v376
    %v379 = vsel %vm375, %v371, %v377
    %380 = vmatprep.subr.mxu0 0.0
    %381 = vmatpush1.msra.mxu0 %v281
    %382 = vmatprep.subr.mxu0 0.0
    %383 = vmatpush1.msra.mxu0 %v282
    %384 = vmatprep.subr.mxu0 0.0
    %385 = vmatpush1.msra.mxu0 %v283
    %386 = vmatprep.subr.mxu0 0.0
    %387 = vmatpush1.msra.mxu0 %v284
    %388 = vmatprep.subr.mxu0 0.0
    %389 = vmatpush1.msra.mxu0 %v285
    %390 = vmatprep.subr.mxu0 0.0
    %391 = vmatpush1.msra.mxu0 %v286
    %392 = vmatprep.subr.mxu0 0.0
    %393 = vmatpush1.msra.mxu0 %v287
    %394 = vmatprep.subr.mxu0 0.0
    %395 = vmatpush1.msra.mxu0 %v288
    %396 = vmatprep.subr.mxu0 0.0
    %397 = vmatpush1.msra.mxu0 %v289
    %398 = vmatprep.subr.mxu0 0.0
    %399 = vmatpush1.msra.mxu0 %v290
    %400 = vmatprep.subr.mxu0 0.0
    %401 = vmatpush1.msra.mxu0 %v291
    %402 = vmatprep.subr.mxu0 0.0
    %403 = vmatpush1.msra.mxu0 %v292
    %404 = vmatprep.subr.mxu0 0.0
    %405 = vmatpush1.msra.mxu0 %v293
    %406 = vmatprep.subr.mxu0 0.0
    %407 = vmatpush1.msra.mxu0 %v294
    %408 = vmatprep.subr.mxu0 0.0
    %409 = vmatpush1.msra.mxu0 %v295
    %410 = vmatprep.subr.mxu0 0.0
    %411 = vmatpush1.msra.mxu0 %v296
    %412 = vmatprep.subr.mxu0 0.0
    %413 = vmatpush1.msra.mxu0 0.0
    %414 = vmatprep.subr.mxu0 0.0
    %415 = vmatpush1.msra.mxu0 0.0
    %416 = vmatprep.subr.mxu0 0.0
    %417 = vmatpush1.msra.mxu0 0.0
    %418 = vmatprep.subr.mxu0 0.0
    %419 = vmatpush1.msra.mxu0 0.0
    %420 = vmatprep.subr.mxu0 0.0
    %421 = vmatpush1.msra.mxu0 0.0
    %422 = vmatprep.subr.mxu0 0.0
    %423 = vmatpush1.msra.mxu0 0.0
    %424 = vmatprep.subr.mxu0 0.0
    %425 = vmatpush1.msra.mxu0 0.0
    %426 = vmatprep.subr.mxu0 0.0
    %427 = vmatpush1.msra.mxu0 0.0
    %428 = vmatprep.subr.mxu0 0.0
    %429 = vmatpush1.msra.mxu0 0.0
    %430 = vmatprep.subr.mxu0 0.0
    %431 = vmatpush1.msra.mxu0 0.0
    %432 = vmatprep.subr.mxu0 0.0
    %433 = vmatpush1.msra.mxu0 0.0
    %434 = vmatprep.subr.mxu0 0.0
    %435 = vmatpush1.msra.mxu0 0.0
    %436 = vmatprep.subr.mxu0 0.0
    %437 = vmatpush1.msra.mxu0 0.0
    %438 = vmatprep.subr.mxu0 0.0
    %439 = vmatpush1.msra.mxu0 0.0
    %440 = vmatprep.subr.mxu0 0.0
    %441 = vmatpush1.msra.mxu0 0.0
    %442 = vmatprep.subr.mxu0 0.0
    %443 = vmatpush1.msra.mxu0 0.0
    %444 = vmatprep.mubr.f32.mxu0 0.0
    %445 = vmatmul.mubr.f32.gmra.mrb[0].mxu0 %v378
    %v446 = vpop.f32.mrb[0].mxu0
    %v447 = vadd.f32 %v297, %v446
    %v448 = vpop.f32.mrb[0].mxu0
    %449 = vmatprep.mubr.f32.mxu0 0.0
    %450 = vmatmul.mubr.f32.gmra.mrb[0].mxu0 %v379
    %v451 = vpop.f32.mrb[0].mxu0
    %v452 = vadd.f32 %v298, %v451
    %v453 = vpop.f32.mrb[0].mxu0
    %454 = vdwg.mxu0
    %v455 = vld [vmem:[%s4] sm:$0xff]
    %v456 = vld [vmem:[%s4 + $0x8] sm:$0xff]
    %v457 = vmul.f32 %v255, %v455
    %v458 = vmul.f32 %v260, %v456
    %v459 = vmul.f32 %v447, %v455
    %v460 = vmul.f32 %v452, %v456
    %v461 = vand.u32 2147483647, %v459
    %vm462 = vcmp.le.f32.partialorder %v461, 0.7853982
    %vm463 = vcmp.lt.s32.totalorder %v459, 0
    %v464 = vand.u32 %v459, 2139095040
    %v465 = vshrl.u32 %v464, 23
    %v466 = vsub.s32 %v465, 127
    %v467 = vand.u32 2147483647, %v459
    %v468 = vand.u32 %v467, 8388607
    %v469 = vor.u32 %v468, 8388608
    %v470 = vsub.s32 0, %v469
    %v471 = vadd.s32 %v466, 1
    %vm472 = vcmp.gt.s32.totalorder %v471, 0
    %v473 = vsel %vm472, %v471, 0
    %v474 = vshrl.u32 %v473, 5
    %v475 = vand.u32 %v473, 31
    %v476 = vsub.s32 32, %v475
    %v477 = vshrl.u32 683565275, %v476
    %v478 = vshll.u32 683565275, %v475
    %v479 = vshrl.u32 2475754826, %v476
    %v480 = vor.u32 %v478, %v479
    %v481 = vshll.u32 2475754826, %v475
    %v482 = vshrl.u32 2131351028, %v476
    %v483 = vor.u32 %v481, %v482
    %v484 = vshll.u32 2131351028, %v475
    %v485 = vshrl.u32 2102212464, %v476
    %v486 = vor.u32 %v484, %v485
    %v487 = vshll.u32 2102212464, %v475
    %v488 = vshrl.u32 920167782, %v476
    %v489 = vor.u32 %v487, %v488
    %v490 = vshll.u32 920167782, %v475
    %v491 = vshrl.u32 1326507024, %v476
    %v492 = vor.u32 %v490, %v491
    %vm493 = vcmp.lt.s32.totalorder %v474, 1
    %vm494 = vcmp.lt.s32.totalorder %v474, 2
    %vm495 = vcmp.lt.s32.totalorder %v474, 3
    %vm496 = vcmp.lt.s32.totalorder %v474, 4
    %v497 = vsel %vm493, %v477, %v480
    %v498 = vsel %vm496, %v486, 2102212464
    %v499 = vsel %vm495, %v483, %v498
    %v500 = vsel %vm494, %v497, %v499
    %v501 = vsel %vm493, %v480, %v483
    %v502 = vsel %vm496, %v489, 920167782
    %v503 = vsel %vm495, %v486, %v502
    %v504 = vsel %vm494, %v501, %v503
    %v505 = vsel %vm493, %v483, %v486
    %v506 = vsel %vm496, %v492, 1326507024
    %v507 = vsel %vm495, %v489, %v506
    %v508 = vsel %vm494, %v505, %v507
    %v509 = vshll.u32 %v469, 8
    %v510 = vmul.u32.u64.compose %v509, %v508
    %v511 = vextract.low.u32 %v510
    %v512 = vextract.high.u32 %v510
    %v513 = vmul.u32.u64.compose %v509, %v504
    %v514 = vextract.low.u32 %v513
    %v515 = vextract.high.u32 %v513
    %v516 = vmul.u32 %v509, %v500
    %v517 = vadd.s32 %v512, %v514
    %vm518 = vc.u32 %v512, %v514
    %v519 = vadd.s32 %v515, 1
    %v520 = vsel %vm518, %v519, %v515
    %v521 = vadd.s32 %v516, %v520
    %v522 = vadd.s32 %v521, 536870912
    %v523 = vshrl.u32 %v522, 30
    %v524 = vshll.u32 %v523, 30
    %v525 = vsub.s32 %v521, %v524
    %vm526 = vcmp.lt.s32.totalorder %v525, 0
    %v527 = vsub.s32 0, %v525
    %v528 = vsel %vm526, %v527, %v525
    %v529 = vclz %v528
    %v530 = vsub.s32 %v529, 2
    %vm531 = vcmp.gt.s32.totalorder 0, %v530
    %v532 = vsel %vm531, 0, %v530
    %v533 = vsub.s32 32, %v532
    %v534 = vshll.u32 %v525, %v532
    %v535 = vshrl.u32 %v517, %v533
    %v536 = vor.u32 %v534, %v535
    %v537 = vsub.s32 4294967266, %v532
    %v538 = vadd.s32 %v537, 127
    %v539 = vshll.u32 %v538, 23
    %v540 = vor.u32 4788187, %v539
    %v541 = vand.u32 2147483647, %v540
    %v543 = vcvt.s32.f32 %v536
    %v544 = vmul.f32 %v543, %v541
    %v545 = vxor.u32 %v544, 2147483648
    %v546 = vsel %vm463, %v545, %v544
    %v547 = vsub.s32 4, %v523
    %v548 = vsel %vm463, %v547, %v523
    %v549 = vsel %vm462, %v459, %v546
    %v550 = vsel %vm462, 0, %v548
    %v551 = vcosq.f32.pop %v549
    %v552 = vsinq.f32.pop %v549
    %vm553 = vweird.f32 %v459
    %v554 = vand.u32 %v550, 3
    %vm555 = vcmp.lt.s32.totalorder %v554, 2
    %vm556 = vcmp.eq.s32.totalorder %v554, 0
    %v557 = vxor.u32 %v552, 2147483648
    %v558 = vsel %vm556, %v551, %v557
    %vm559 = vcmp.eq.s32.totalorder %v554, 2
    %v560 = vxor.u32 %v551, 2147483648
    %v561 = vsel %vm559, %v560, %v552
    %v562 = vsel %vm555, %v558, %v561
    %v563 = vsel %vm553, nan, %v562
    %v564 = vand.u32 2147483647, %v460
    %vm565 = vcmp.le.f32.partialorder %v564, 0.7853982
    %vm566 = vcmp.lt.s32.totalorder %v460, 0
    %v567 = vand.u32 %v460, 2139095040
    %v568 = vshrl.u32 %v567, 23
    %v569 = vsub.s32 %v568, 127
    %v570 = vand.u32 2147483647, %v460
    %v571 = vand.u32 %v570, 8388607
    %v572 = vor.u32 %v571, 8388608
    %v573 = vsub.s32 0, %v572
    %v574 = vadd.s32 %v569, 1
    %vm575 = vcmp.gt.s32.totalorder %v574, 0
    %v576 = vsel %vm575, %v574, 0
    %v577 = vshrl.u32 %v576, 5
    %v578 = vand.u32 %v576, 31
    %v579 = vsub.s32 32, %v578
    %v580 = vshrl.u32 683565275, %v579
    %v581 = vshll.u32 683565275, %v578
    %v582 = vshrl.u32 2475754826, %v579
    %v583 = vor.u32 %v581, %v582
    %v584 = vshll.u32 2475754826, %v578
    %v585 = vshrl.u32 2131351028, %v579
    %v586 = vor.u32 %v584, %v585
    %v587 = vshll.u32 2131351028, %v578
    %v588 = vshrl.u32 2102212464, %v579
    %v589 = vor.u32 %v587, %v588
    %v590 = vshll.u32 2102212464, %v578
    %v591 = vshrl.u32 920167782, %v579
    %v592 = vor.u32 %v590, %v591
    %v593 = vshll.u32 920167782, %v578
    %v594 = vshrl.u32 1326507024, %v579
    %v595 = vor.u32 %v593, %v594
    %vm596 = vcmp.lt.s32.totalorder %v577, 1
    %vm597 = vcmp.lt.s32.totalorder %v577, 2
    %vm598 = vcmp.lt.s32.totalorder %v577, 3
    %vm599 = vcmp.lt.s32.totalorder %v577, 4
    %v600 = vsel %vm596, %v580, %v583
    %v601 = vsel %vm599, %v589, 2102212464
    %v602 = vsel %vm598, %v586, %v601
    %v603 = vsel %vm597, %v600, %v602
    %v604 = vsel %vm596, %v583, %v586
    %v605 = vsel %vm599, %v592, 920167782
    %v606 = vsel %vm598, %v589, %v605
    %v607 = vsel %vm597, %v604, %v606
    %v608 = vsel %vm596, %v586, %v589
    %v609 = vsel %vm599, %v595, 1326507024
    %v610 = vsel %vm598, %v592, %v609
    %v611 = vsel %vm597, %v608, %v610
    %v612 = vshll.u32 %v572, 8
    %v613 = vmul.u32.u64.compose %v612, %v611
    %v614 = vextract.low.u32 %v613
    %v615 = vextract.high.u32 %v613
    %v616 = vmul.u32.u64.compose %v612, %v607
    %v617 = vextract.low.u32 %v616
    %v618 = vextract.high.u32 %v616
    %v619 = vmul.u32 %v612, %v603
    %v620 = vadd.s32 %v615, %v617
    %vm621 = vc.u32 %v615, %v617
    %v622 = vadd.s32 %v618, 1
    %v623 = vsel %vm621, %v622, %v618
    %v624 = vadd.s32 %v619, %v623
    %v625 = vadd.s32 %v624, 536870912
    %v626 = vshrl.u32 %v625, 30
    %v627 = vshll.u32 %v626, 30
    %v628 = vsub.s32 %v624, %v627
    %vm629 = vcmp.lt.s32.totalorder %v628, 0
    %v630 = vsub.s32 0, %v628
    %v631 = vsel %vm629, %v630, %v628
    %v632 = vclz %v631
    %v633 = vsub.s32 %v632, 2
    %vm634 = vcmp.gt.s32.totalorder 0, %v633
    %v635 = vsel %vm634, 0, %v633
    %v636 = vsub.s32 32, %v635
    %v637 = vshll.u32 %v628, %v635
    %v638 = vshrl.u32 %v620, %v636
    %v639 = vor.u32 %v637, %v638
    %v640 = vsub.s32 4294967266, %v635
    %v641 = vadd.s32 %v640, 127
    %v642 = vshll.u32 %v641, 23
    %v643 = vor.u32 4788187, %v642
    %v644 = vand.u32 2147483647, %v643
    %v646 = vcvt.s32.f32 %v639
    %v647 = vmul.f32 %v646, %v644
    %v648 = vxor.u32 %v647, 2147483648
    %v649 = vsel %vm566, %v648, %v647
    %v650 = vsub.s32 4, %v626
    %v651 = vsel %vm566, %v650, %v626
    %v652 = vsel %vm565, %v460, %v649
    %v653 = vsel %vm565, 0, %v651
    %v654 = vcosq.f32.pop %v652
    %v655 = vsinq.f32.pop %v652
    %vm656 = vweird.f32 %v460
    %v657 = vand.u32 %v653, 3
    %vm658 = vcmp.lt.s32.totalorder %v657, 2
    %vm659 = vcmp.eq.s32.totalorder %v657, 0
    %v660 = vxor.u32 %v655, 2147483648
    %v661 = vsel %vm659, %v654, %v660
    %vm662 = vcmp.eq.s32.totalorder %v657, 2
    %v663 = vxor.u32 %v654, 2147483648
    %v664 = vsel %vm662, %v663, %v655
    %v665 = vsel %vm658, %v661, %v664
    %v666 = vsel %vm656, nan, %v665
    %v667 = vmul.f32 %v457, %v563
    %v668 = vmul.f32 %v458, %v666
    %v669 = vand.u32 2147483647, %v459
    %vm670 = vcmp.le.f32.partialorder %v669, 0.7853982
    %vm671 = vcmp.lt.s32.totalorder %v459, 0
    %v672 = vand.u32 %v459, 2139095040
    %v673 = vshrl.u32 %v672, 23
    %v674 = vsub.s32 %v673, 127
    %v675 = vand.u32 2147483647, %v459
    %v676 = vand.u32 %v675, 8388607
    %v677 = vor.u32 %v676, 8388608
    %v678 = vsub.s32 0, %v677
    %v679 = vadd.s32 %v674, 1
    %vm680 = vcmp.gt.s32.totalorder %v679, 0
    %v681 = vsel %vm680, %v679, 0
    %v682 = vshrl.u32 %v681, 5
    %v683 = vand.u32 %v681, 31
    %v684 = vsub.s32 32, %v683
    %v685 = vshrl.u32 683565275, %v684
    %v686 = vshll.u32 683565275, %v683
    %v687 = vshrl.u32 2475754826, %v684
    %v688 = vor.u32 %v686, %v687
    %v689 = vshll.u32 2475754826, %v683
    %v690 = vshrl.u32 2131351028, %v684
    %v691 = vor.u32 %v689, %v690
    %v692 = vshll.u32 2131351028, %v683
    %v693 = vshrl.u32 2102212464, %v684
    %v694 = vor.u32 %v692, %v693
    %v695 = vshll.u32 2102212464, %v683
    %v696 = vshrl.u32 920167782, %v684
    %v697 = vor.u32 %v695, %v696
    %v698 = vshll.u32 920167782, %v683
    %v699 = vshrl.u32 1326507024, %v684
    %v700 = vor.u32 %v698, %v699
    %vm701 = vcmp.lt.s32.totalorder %v682, 1
    %vm702 = vcmp.lt.s32.totalorder %v682, 2
    %vm703 = vcmp.lt.s32.totalorder %v682, 3
    %vm704 = vcmp.lt.s32.totalorder %v682, 4
    %v705 = vsel %vm701, %v685, %v688
    %v706 = vsel %vm704, %v694, 2102212464
    %v707 = vsel %vm703, %v691, %v706
    %v708 = vsel %vm702, %v705, %v707
    %v709 = vsel %vm701, %v688, %v691
    %v710 = vsel %vm704, %v697, 920167782
    %v711 = vsel %vm703, %v694, %v710
    %v712 = vsel %vm702, %v709, %v711
    %v713 = vsel %vm701, %v691, %v694
    %v714 = vsel %vm704, %v700, 1326507024
    %v715 = vsel %vm703, %v697, %v714
    %v716 = vsel %vm702, %v713, %v715
    %v717 = vshll.u32 %v677, 8
    %v718 = vmul.u32.u64.compose %v717, %v716
    %v719 = vextract.low.u32 %v718
    %v720 = vextract.high.u32 %v718
    %v721 = vmul.u32.u64.compose %v717, %v712
    %v722 = vextract.low.u32 %v721
    %v723 = vextract.high.u32 %v721
    %v724 = vmul.u32 %v717, %v708
    %v725 = vadd.s32 %v720, %v722
    %vm726 = vc.u32 %v720, %v722
    %v727 = vadd.s32 %v723, 1
    %v728 = vsel %vm726, %v727, %v723
    %v729 = vadd.s32 %v724, %v728
    %v730 = vadd.s32 %v729, 536870912
    %v731 = vshrl.u32 %v730, 30
    %v732 = vshll.u32 %v731, 30
    %v733 = vsub.s32 %v729, %v732
    %vm734 = vcmp.lt.s32.totalorder %v733, 0
    %v735 = vsub.s32 0, %v733
    %v736 = vsel %vm734, %v735, %v733
    %v737 = vclz %v736
    %v738 = vsub.s32 %v737, 2
    %vm739 = vcmp.gt.s32.totalorder 0, %v738
    %v740 = vsel %vm739, 0, %v738
    %v741 = vsub.s32 32, %v740
    %v742 = vshll.u32 %v733, %v740
    %v743 = vshrl.u32 %v725, %v741
    %v744 = vor.u32 %v742, %v743
    %v745 = vsub.s32 4294967266, %v740
    %v746 = vadd.s32 %v745, 127
    %v747 = vshll.u32 %v746, 23
    %v748 = vor.u32 4788187, %v747
    %v749 = vand.u32 2147483647, %v748
    %v751 = vcvt.s32.f32 %v744
    %v752 = vmul.f32 %v751, %v749
    %v753 = vxor.u32 %v752, 2147483648
    %v754 = vsel %vm671, %v753, %v752
    %v755 = vsub.s32 4, %v731
    %v756 = vsel %vm671, %v755, %v731
    %v757 = vsel %vm670, %v459, %v754
    %v758 = vsel %vm670, 0, %v756
    %v759 = vcosq.f32.pop %v757
    %v760 = vsinq.f32.pop %v757
    %vm761 = vweird.f32 %v459
    %v762 = vadd.s32 %v758, 3
    %v763 = vand.u32 %v762, 3
    %vm764 = vcmp.lt.s32.totalorder %v763, 2
    %vm765 = vcmp.eq.s32.totalorder %v763, 0
    %v766 = vxor.u32 %v760, 2147483648
    %v767 = vsel %vm765, %v759, %v766
    %vm768 = vcmp.eq.s32.totalorder %v763, 2
    %v769 = vxor.u32 %v759, 2147483648
    %v770 = vsel %vm768, %v769, %v760
    %v771 = vsel %vm764, %v767, %v770
    %v772 = vsel %vm761, nan, %v771
    %v773 = vand.u32 2147483647, %v460
    %vm774 = vcmp.le.f32.partialorder %v773, 0.7853982
    %vm775 = vcmp.lt.s32.totalorder %v460, 0
    %v776 = vand.u32 %v460, 2139095040
    %v777 = vshrl.u32 %v776, 23
    %v778 = vsub.s32 %v777, 127
    %v779 = vand.u32 2147483647, %v460
    %v780 = vand.u32 %v779, 8388607
    %v781 = vor.u32 %v780, 8388608
    %v782 = vsub.s32 0, %v781
    %v783 = vadd.s32 %v778, 1
    %vm784 = vcmp.gt.s32.totalorder %v783, 0
    %v785 = vsel %vm784, %v783, 0
    %v786 = vshrl.u32 %v785, 5
    %v787 = vand.u32 %v785, 31
    %v788 = vsub.s32 32, %v787
    %v789 = vshrl.u32 683565275, %v788
    %v790 = vshll.u32 683565275, %v787
    %v791 = vshrl.u32 2475754826, %v788
    %v792 = vor.u32 %v790, %v791
    %v793 = vshll.u32 2475754826, %v787
    %v794 = vshrl.u32 2131351028, %v788
    %v795 = vor.u32 %v793, %v794
    %v796 = vshll.u32 2131351028, %v787
    %v797 = vshrl.u32 2102212464, %v788
    %v798 = vor.u32 %v796, %v797
    %v799 = vshll.u32 2102212464, %v787
    %v800 = vshrl.u32 920167782, %v788
    %v801 = vor.u32 %v799, %v800
    %v802 = vshll.u32 920167782, %v787
    %v803 = vshrl.u32 1326507024, %v788
    %v804 = vor.u32 %v802, %v803
    %vm805 = vcmp.lt.s32.totalorder %v786, 1
    %vm806 = vcmp.lt.s32.totalorder %v786, 2
    %vm807 = vcmp.lt.s32.totalorder %v786, 3
    %vm808 = vcmp.lt.s32.totalorder %v786, 4
    %v809 = vsel %vm805, %v789, %v792
    %v810 = vsel %vm808, %v798, 2102212464
    %v811 = vsel %vm807, %v795, %v810
    %v812 = vsel %vm806, %v809, %v811
    %v813 = vsel %vm805, %v792, %v795
    %v814 = vsel %vm808, %v801, 920167782
    %v815 = vsel %vm807, %v798, %v814
    %v816 = vsel %vm806, %v813, %v815
    %v817 = vsel %vm805, %v795, %v798
    %v818 = vsel %vm808, %v804, 1326507024
    %v819 = vsel %vm807, %v801, %v818
    %v820 = vsel %vm806, %v817, %v819
    %v821 = vshll.u32 %v781, 8
    %v822 = vmul.u32.u64.compose %v821, %v820
    %v823 = vextract.low.u32 %v822
    %v824 = vextract.high.u32 %v822
    %v825 = vmul.u32.u64.compose %v821, %v816
    %v826 = vextract.low.u32 %v825
    %v827 = vextract.high.u32 %v825
    %v828 = vmul.u32 %v821, %v812
    %v829 = vadd.s32 %v824, %v826
    %vm830 = vc.u32 %v824, %v826
    %v831 = vadd.s32 %v827, 1
    %v832 = vsel %vm830, %v831, %v827
    %v833 = vadd.s32 %v828, %v832
    %v834 = vadd.s32 %v833, 536870912
    %v835 = vshrl.u32 %v834, 30
    %v836 = vshll.u32 %v835, 30
    %v837 = vsub.s32 %v833, %v836
    %vm838 = vcmp.lt.s32.totalorder %v837, 0
    %v839 = vsub.s32 0, %v837
    %v840 = vsel %vm838, %v839, %v837
    %v841 = vclz %v840
    %v842 = vsub.s32 %v841, 2
    %vm843 = vcmp.gt.s32.totalorder 0, %v842
    %v844 = vsel %vm843, 0, %v842
    %v845 = vsub.s32 32, %v844
    %v846 = vshll.u32 %v837, %v844
    %v847 = vshrl.u32 %v829, %v845
    %v848 = vor.u32 %v846, %v847
    %v849 = vsub.s32 4294967266, %v844
    %v850 = vadd.s32 %v849, 127
    %v851 = vshll.u32 %v850, 23
    %v852 = vor.u32 4788187, %v851
    %v853 = vand.u32 2147483647, %v852
    %v855 = vcvt.s32.f32 %v848
    %v856 = vmul.f32 %v855, %v853
    %v857 = vxor.u32 %v856, 2147483648
    %v858 = vsel %vm775, %v857, %v856
    %v859 = vsub.s32 4, %v835
    %v860 = vsel %vm775, %v859, %v835
    %v861 = vsel %vm774, %v460, %v858
    %v862 = vsel %vm774, 0, %v860
    %v863 = vcosq.f32.pop %v861
    %v864 = vsinq.f32.pop %v861
    %vm865 = vweird.f32 %v460
    %v866 = vadd.s32 %v862, 3
    %v867 = vand.u32 %v866, 3
    %vm868 = vcmp.lt.s32.totalorder %v867, 2
    %vm869 = vcmp.eq.s32.totalorder %v867, 0
    %v870 = vxor.u32 %v864, 2147483648
    %v871 = vsel %vm869, %v863, %v870
    %vm872 = vcmp.eq.s32.totalorder %v867, 2
    %v873 = vxor.u32 %v863, 2147483648
    %v874 = vsel %vm872, %v873, %v864
    %v875 = vsel %vm868, %v871, %v874
    %v876 = vsel %vm865, nan, %v875
    %v877 = vmul.f32 %v457, %v772
    %v878 = vmul.f32 %v458, %v876
    %v879 = vld [vmem:[#allocation6] sm:$0xff]
    %v880 = vld [vmem:[#allocation6 + $0x8] sm:$0xff]
    %v881 = vld [vmem:[#allocation6 + $0x10] sm:$0xff]
    %v882 = vld [vmem:[#allocation6 + $0x18] sm:$0xff]
    %v883 = vld [vmem:[#allocation6 + $0x20] sm:$0xff]
    %v884 = vld [vmem:[#allocation6 + $0x28] sm:$0xff]
    %v885 = vld [vmem:[#allocation6 + $0x30] sm:$0xff]
    %v886 = vld [vmem:[#allocation6 + $0x38] sm:$0xff]
    %v887 = vld [vmem:[%s6] sm:$0xff]
    %v888 = vld [vmem:[%s6 + $0x8] sm:$0xff]
    %v889 = vld [vmem:[%s6 + $0x10] sm:$0xff]
    %v890 = vld [vmem:[%s6 + $0x18] sm:$0xff]
    %v891 = vld [vmem:[%s6 + $0x20] sm:$0xff]
    %v892 = vld [vmem:[%s6 + $0x28] sm:$0xff]
    %v893 = vld [vmem:[%s6 + $0x30] sm:$0xff]
    %v894 = vld [vmem:[%s6 + $0x38] sm:$0xff]
    %v895 = vld [vmem:[%s6 + $0x40] sm:$0xff]
    %v896 = vld [vmem:[%s6 + $0x48] sm:$0xff]
    %v897 = vld [vmem:[%s6 + $0x50] sm:$0xff]
    %v898 = vld [vmem:[%s6 + $0x58] sm:$0xff]
    %v899 = vld [vmem:[%s6 + $0x60] sm:$0xff]
    %v900 = vld [vmem:[%s6 + $0x68] sm:$0xff]
    %v901 = vld [vmem:[%s6 + $0x70] sm:$0xff]
    %v902 = vld [vmem:[%s6 + $0x78] sm:$0xff]
    %v903 = vld [vmem:[%s6 + $0x80] sm:$0xff]
    %v904 = vld [vmem:[%s6 + $0x88] sm:$0xff]
    %v905 = vld [vmem:[%s6 + $0x90] sm:$0xff]
    %v906 = vld [vmem:[%s6 + $0x98] sm:$0xff]
    %v907 = vld [vmem:[%s6 + $0xa0] sm:$0xff]
    %v908 = vld [vmem:[%s6 + $0xa8] sm:$0xff]
    %v909 = vld [vmem:[%s6 + $0xb0] sm:$0xff]
    %v910 = vld [vmem:[%s6 + $0xb8] sm:$0xff]
    %v911 = vld [vmem:[%s6 + $0xc0] sm:$0xff]
    %v912 = vld [vmem:[%s6 + $0xc8] sm:$0xff]
    %v913 = vld [vmem:[%s6 + $0xd0] sm:$0xff]
    %v914 = vld [vmem:[%s6 + $0xd8] sm:$0xff]
    %v915 = vld [vmem:[%s6 + $0xe0] sm:$0xff]
    %v916 = vld [vmem:[%s6 + $0xe8] sm:$0xff]
    %v917 = vld [vmem:[%s6 + $0xf0] sm:$0xff]
    %v918 = vld [vmem:[%s6 + $0xf8] sm:$0xff]
    %v919 = vld [vmem:[%s6 + $0x100] sm:$0xff]
    %v920 = vld [vmem:[%s6 + $0x108] sm:$0xff]
    %v921 = vld [vmem:[%s6 + $0x110] sm:$0xff]
    %v922 = vld [vmem:[%s6 + $0x118] sm:$0xff]
    %v923 = vld [vmem:[%s6 + $0x120] sm:$0xff]
    %v924 = vld [vmem:[%s6 + $0x128] sm:$0xff]
    %v925 = vld [vmem:[%s6 + $0x130] sm:$0xff]
    %v926 = vld [vmem:[%s6 + $0x138] sm:$0xff]
    %v927 = vld [vmem:[%s6 + $0x140] sm:$0xff]
    %v928 = vld [vmem:[%s6 + $0x148] sm:$0xff]
    %v929 = vld [vmem:[%s6 + $0x150] sm:$0xff]
    %v930 = vld [vmem:[%s6 + $0x158] sm:$0xff]
    %v931 = vld [vmem:[%s6 + $0x160] sm:$0xff]
    %v932 = vld [vmem:[%s6 + $0x168] sm:$0xff]
    %v933 = vld [vmem:[%s6 + $0x170] sm:$0xff]
    %v934 = vld [vmem:[%s6 + $0x178] sm:$0xff]
    %v935 = vld [vmem:[%s6 + $0x180] sm:$0xff]
    %v936 = vld [vmem:[%s6 + $0x188] sm:$0xff]
    %v937 = vld [vmem:[%s6 + $0x190] sm:$0xff]
    %v938 = vld [vmem:[%s6 + $0x198] sm:$0xff]
    %v939 = vld [vmem:[%s6 + $0x1a0] sm:$0xff]
    %v940 = vld [vmem:[%s6 + $0x1a8] sm:$0xff]
    %v941 = vld [vmem:[%s6 + $0x1b0] sm:$0xff]
    %v942 = vld [vmem:[%s6 + $0x1b8] sm:$0xff]
    %v943 = vld [vmem:[%s6 + $0x1c0] sm:$0xff]
    %v944 = vld [vmem:[%s6 + $0x1c8] sm:$0xff]
    %v945 = vld [vmem:[%s6 + $0x1d0] sm:$0xff]
    %v946 = vld [vmem:[%s6 + $0x1d8] sm:$0xff]
    %v947 = vld [vmem:[%s6 + $0x1e0] sm:$0xff]
    %v948 = vld [vmem:[%s6 + $0x1e8] sm:$0xff]
    %v949 = vld [vmem:[%s6 + $0x1f0] sm:$0xff]
    %v950 = vld [vmem:[%s6 + $0x1f8] sm:$0xff]
    %vm951 = vcmask 130048
    %v953 = vsel %vm951, %v879, 0
    %v956 = vsel %vm951, %v880, 0
    %v959 = vsel %vm951, %v881, 0
    %v962 = vsel %vm951, %v882, 0
    %964 = vmatprep.subr.mxu0 0.0
    %965 = vmatpush1.msra.mxu0 %v667
    %966 = vmatprep.subr.mxu0 0.0
    %967 = vmatpush1.msra.mxu0 %v668
    %968 = vmatprep.subr.mxu0 0.0
    %969 = vmatpush1.msra.mxu0 0.0
    %970 = vmatprep.subr.mxu0 0.0
    %971 = vmatpush1.msra.mxu0 0.0
    %972 = vmatprep.subr.mxu0 0.0
    %973 = vmatpush1.msra.mxu0 0.0
    %974 = vmatprep.subr.mxu0 0.0
    %975 = vmatpush1.msra.mxu0 0.0
    %976 = vmatprep.subr.mxu0 0.0
    %977 = vmatpush1.msra.mxu0 0.0
    %978 = vmatprep.subr.mxu0 0.0
    %979 = vmatpush1.msra.mxu0 0.0
    %980 = vmatprep.subr.mxu0 0.0
    %981 = vmatpush1.msra.mxu0 0.0
    %982 = vmatprep.subr.mxu0 0.0
    %983 = vmatpush1.msra.mxu0 0.0
    %984 = vmatprep.subr.mxu0 0.0
    %985 = vmatpush1.msra.mxu0 0.0
    %986 = vmatprep.subr.mxu0 0.0
    %987 = vmatpush1.msra.mxu0 0.0
    %988 = vmatprep.subr.mxu0 0.0
    %989 = vmatpush1.msra.mxu0 0.0
    %990 = vmatprep.subr.mxu0 0.0
    %991 = vmatpush1.msra.mxu0 0.0
    %992 = vmatprep.subr.mxu0 0.0
    %993 = vmatpush1.msra.mxu0 0.0
    %994 = vmatprep.subr.mxu0 0.0
    %995 = vmatpush1.msra.mxu0 0.0
    %996 = vmatprep.subr.mxu0 0.0
    %997 = vmatpush1.msra.mxu0 0.0
    %998 = vmatprep.subr.mxu0 0.0
    %999 = vmatpush1.msra.mxu0 0.0
    %1000 = vmatprep.subr.mxu0 0.0
    %1001 = vmatpush1.msra.mxu0 0.0
    %1002 = vmatprep.subr.mxu0 0.0
    %1003 = vmatpush1.msra.mxu0 0.0
    %1004 = vmatprep.subr.mxu0 0.0
    %1005 = vmatpush1.msra.mxu0 0.0
    %1006 = vmatprep.subr.mxu0 0.0
    %1007 = vmatpush1.msra.mxu0 0.0
    %1008 = vmatprep.subr.mxu0 0.0
    %1009 = vmatpush1.msra.mxu0 0.0
    %1010 = vmatprep.subr.mxu0 0.0
    %1011 = vmatpush1.msra.mxu0 0.0
    %1012 = vmatprep.subr.mxu0 0.0
    %1013 = vmatpush1.msra.mxu0 0.0
    %1014 = vmatprep.subr.mxu0 0.0
    %1015 = vmatpush1.msra.mxu0 0.0
    %1016 = vmatprep.subr.mxu0 0.0
    %1017 = vmatpush1.msra.mxu0 0.0
    %1018 = vmatprep.subr.mxu0 0.0
    %1019 = vmatpush1.msra.mxu0 0.0
    %1020 = vmatprep.subr.mxu0 0.0
    %1021 = vmatpush1.msra.mxu0 0.0
    %1022 = vmatprep.subr.mxu0 0.0
    %1023 = vmatpush1.msra.mxu0 0.0
    %1024 = vmatprep.subr.mxu0 0.0
    %1025 = vmatpush1.msra.mxu0 0.0
    %1026 = vmatprep.subr.mxu0 0.0
    %1027 = vmatpush1.msra.mxu0 0.0
    %1028 = vmatprep.mubr.f32.mxu0 0.0
    %1029 = vmatmul.mubr.f32.gmra.mrb[0].mxu0 %v953
    %v1030 = vpop.f32.mrb[0].mxu0
    %v1031 = vadd.f32 0.0, %v1030
    %v1032 = vpop.f32.mrb[0].mxu0
    %1033 = vmatprep.mubr.f32.mxu0 0.0
    %1034 = vmatmul.mubr.f32.gmra.mrb[0].mxu0 %v956
    %v1035 = vpop.f32.mrb[0].mxu0
    %v1036 = vadd.f32 0.0, %v1035
    %v1037 = vpop.f32.mrb[0].mxu0
    %1038 = vmatprep.mubr.f32.mxu0 0.0
    %1039 = vmatmul.mubr.f32.gmra.mrb[0].mxu0 %v959
    %v1040 = vpop.f32.mrb[0].mxu0
    %v1041 = vadd.f32 0.0, %v1040
    %v1042 = vpop.f32.mrb[0].mxu0
    %1043 = vmatprep.mubr.f32.mxu0 0.0
    %1044 = vmatmul.mubr.f32.gmra.mrb[0].mxu0 %v962
    %v1045 = vpop.f32.mrb[0].mxu0
    %v1046 = vadd.f32 0.0, %v1045
    %v1047 = vpop.f32.mrb[0].mxu0
    %1048 = vdwg.mxu0
    %v1050 = vsel %vm951, %v883, 0
    %v1053 = vsel %vm951, %v884, 0
    %v1056 = vsel %vm951, %v885, 0
    %v1059 = vsel %vm951, %v886, 0
    %1061 = vmatprep.subr.mxu0 0.0
    %1062 = vmatpush1.msra.mxu0 %v877
    %1063 = vmatprep.subr.mxu0 0.0
    %1064 = vmatpush1.msra.mxu0 %v878
    %1065 = vmatprep.subr.mxu0 0.0
    %1066 = vmatpush1.msra.mxu0 0.0
    %1067 = vmatprep.subr.mxu0 0.0
    %1068 = vmatpush1.msra.mxu0 0.0
    %1069 = vmatprep.subr.mxu0 0.0
    %1070 = vmatpush1.msra.mxu0 0.0
    %1071 = vmatprep.subr.mxu0 0.0
    %1072 = vmatpush1.msra.mxu0 0.0
    %1073 = vmatprep.subr.mxu0 0.0
    %1074 = vmatpush1.msra.mxu0 0.0
    %1075 = vmatprep.subr.mxu0 0.0
    %1076 = vmatpush1.msra.mxu0 0.0
    %1077 = vmatprep.subr.mxu0 0.0
    %1078 = vmatpush1.msra.mxu0 0.0
    %1079 = vmatprep.subr.mxu0 0.0
    %1080 = vmatpush1.msra.mxu0 0.0
    %1081 = vmatprep.subr.mxu0 0.0
    %1082 = vmatpush1.msra.mxu0 0.0
    %1083 = vmatprep.subr.mxu0 0.0
    %1084 = vmatpush1.msra.mxu0 0.0
    %1085 = vmatprep.subr.mxu0 0.0
    %1086 = vmatpush1.msra.mxu0 0.0
    %1087 = vmatprep.subr.mxu0 0.0
    %1088 = vmatpush1.msra.mxu0 0.0
    %1089 = vmatprep.subr.mxu0 0.0
    %1090 = vmatpush1.msra.mxu0 0.0
    %1091 = vmatprep.subr.mxu0 0.0
    %1092 = vmatpush1.msra.mxu0 0.0
    %1093 = vmatprep.subr.mxu0 0.0
    %1094 = vmatpush1.msra.mxu0 0.0
    %1095 = vmatprep.subr.mxu0 0.0
    %1096 = vmatpush1.msra.mxu0 0.0
    %1097 = vmatprep.subr.mxu0 0.0
    %1098 = vmatpush1.msra.mxu0 0.0
    %1099 = vmatprep.subr.mxu0 0.0
    %1100 = vmatpush1.msra.mxu0 0.0
    %1101 = vmatprep.subr.mxu0 0.0
    %1102 = vmatpush1.msra.mxu0 0.0
    %1103 = vmatprep.subr.mxu0 0.0
    %1104 = vmatpush1.msra.mxu0 0.0
    %1105 = vmatprep.subr.mxu0 0.0
    %1106 = vmatpush1.msra.mxu0 0.0
    %1107 = vmatprep.subr.mxu0 0.0
    %1108 = vmatpush1.msra.mxu0 0.0
    %1109 = vmatprep.subr.mxu0 0.0
    %1110 = vmatpush1.msra.mxu0 0.0
    %1111 = vmatprep.subr.mxu0 0.0
    %1112 = vmatpush1.msra.mxu0 0.0
    %1113 = vmatprep.subr.mxu0 0.0
    %1114 = vmatpush1.msra.mxu0 0.0
    %1115 = vmatprep.subr.mxu0 0.0
    %1116 = vmatpush1.msra.mxu0 0.0
    %1117 = vmatprep.subr.mxu0 0.0
    %1118 = vmatpush1.msra.mxu0 0.0
    %1119 = vmatprep.subr.mxu0 0.0
    %1120 = vmatpush1.msra.mxu0 0.0
    %1121 = vmatprep.subr.mxu0 0.0
    %1122 = vmatpush1.msra.mxu0 0.0
    %1123 = vmatprep.subr.mxu0 0.0
    %1124 = vmatpush1.msra.mxu0 0.0
    %1125 = vmatprep.mubr.f32.mxu0 0.0
    %1126 = vmatmul.mubr.f32.gmra.mrb[0].mxu0 %v1050
    %v1127 = vpop.f32.mrb[0].mxu0
    %v1128 = vadd.f32 0.0, %v1127
    %v1129 = vpop.f32.mrb[0].mxu0
    %1130 = vmatprep.mubr.f32.mxu0 0.0
    %1131 = vmatmul.mubr.f32.gmra.mrb[0].mxu0 %v1053
    %v1132 = vpop.f32.mrb[0].mxu0
    %v1133 = vadd.f32 0.0, %v1132
    %v1134 = vpop.f32.mrb[0].mxu0
    %1135 = vmatprep.mubr.f32.mxu0 0.0
    %1136 = vmatmul.mubr.f32.gmra.mrb[0].mxu0 %v1056
    %v1137 = vpop.f32.mrb[0].mxu0
    %v1138 = vadd.f32 0.0, %v1137
    %v1139 = vpop.f32.mrb[0].mxu0
    %1140 = vmatprep.mubr.f32.mxu0 0.0
    %1141 = vmatmul.mubr.f32.gmra.mrb[0].mxu0 %v1059
    %v1142 = vpop.f32.mrb[0].mxu0
    %v1143 = vadd.f32 0.0, %v1142
    %v1144 = vpop.f32.mrb[0].mxu0
    %1145 = vdwg.mxu0
    %v1146 = vsub.f32 %v1031, %v1128
    %v1147 = vsub.f32 %v1036, %v1133
    %v1148 = vsub.f32 %v1041, %v1138
    %v1149 = vsub.f32 %v1046, %v1143
    %1150 = vmatprep.subr.mxu0 0.0
    %1151 = vmatpush1.msra.mxu0 %v667
    %1152 = vmatprep.subr.mxu0 0.0
    %1153 = vmatpush1.msra.mxu0 %v668
    %1154 = vmatprep.subr.mxu0 0.0
    %1155 = vmatpush1.msra.mxu0 0.0
    %1156 = vmatprep.subr.mxu0 0.0
    %1157 = vmatpush1.msra.mxu0 0.0
    %1158 = vmatprep.subr.mxu0 0.0
    %1159 = vmatpush1.msra.mxu0 0.0
    %1160 = vmatprep.subr.mxu0 0.0
    %1161 = vmatpush1.msra.mxu0 0.0
    %1162 = vmatprep.subr.mxu0 0.0
    %1163 = vmatpush1.msra.mxu0 0.0
    %1164 = vmatprep.subr.mxu0 0.0
    %1165 = vmatpush1.msra.mxu0 0.0
    %1166 = vmatprep.subr.mxu0 0.0
    %1167 = vmatpush1.msra.mxu0 0.0
    %1168 = vmatprep.subr.mxu0 0.0
    %1169 = vmatpush1.msra.mxu0 0.0
    %1170 = vmatprep.subr.mxu0 0.0
    %1171 = vmatpush1.msra.mxu0 0.0
    %1172 = vmatprep.subr.mxu0 0.0
    %1173 = vmatpush1.msra.mxu0 0.0
    %1174 = vmatprep.subr.mxu0 0.0
    %1175 = vmatpush1.msra.mxu0 0.0
    %1176 = vmatprep.subr.mxu0 0.0
    %1177 = vmatpush1.msra.mxu0 0.0
    %1178 = vmatprep.subr.mxu0 0.0
    %1179 = vmatpush1.msra.mxu0 0.0
    %1180 = vmatprep.subr.mxu0 0.0
    %1181 = vmatpush1.msra.mxu0 0.0
    %1182 = vmatprep.subr.mxu0 0.0
    %1183 = vmatpush1.msra.mxu0 0.0
    %1184 = vmatprep.subr.mxu0 0.0
    %1185 = vmatpush1.msra.mxu0 0.0
    %1186 = vmatprep.subr.mxu0 0.0
    %1187 = vmatpush1.msra.mxu0 0.0
    %1188 = vmatprep.subr.mxu0 0.0
    %1189 = vmatpush1.msra.mxu0 0.0
    %1190 = vmatprep.subr.mxu0 0.0
    %1191 = vmatpush1.msra.mxu0 0.0
    %1192 = vmatprep.subr.mxu0 0.0
    %1193 = vmatpush1.msra.mxu0 0.0
    %1194 = vmatprep.subr.mxu0 0.0
    %1195 = vmatpush1.msra.mxu0 0.0
    %1196 = vmatprep.subr.mxu0 0.0
    %1197 = vmatpush1.msra.mxu0 0.0
    %1198 = vmatprep.subr.mxu0 0.0
    %1199 = vmatpush1.msra.mxu0 0.0
    %1200 = vmatprep.subr.mxu0 0.0
    %1201 = vmatpush1.msra.mxu0 0.0
    %1202 = vmatprep.subr.mxu0 0.0
    %1203 = vmatpush1.msra.mxu0 0.0
    %1204 = vmatprep.subr.mxu0 0.0
    %1205 = vmatpush1.msra.mxu0 0.0
    %1206 = vmatprep.subr.mxu0 0.0
    %1207 = vmatpush1.msra.mxu0 0.0
    %1208 = vmatprep.subr.mxu0 0.0
    %1209 = vmatpush1.msra.mxu0 0.0
    %1210 = vmatprep.subr.mxu0 0.0
    %1211 = vmatpush1.msra.mxu0 0.0
    %1212 = vmatprep.subr.mxu0 0.0
    %1213 = vmatpush1.msra.mxu0 0.0
    %1214 = vmatprep.mubr.f32.mxu0 0.0
    %1215 = vmatmul.mubr.f32.gmra.mrb[0].mxu0 %v1050
    %v1216 = vpop.f32.mrb[0].mxu0
    %v1217 = vadd.f32 0.0, %v1216
    %v1218 = vpop.f32.mrb[0].mxu0
    %1219 = vmatprep.mubr.f32.mxu0 0.0
    %1220 = vmatmul.mubr.f32.gmra.mrb[0].mxu0 %v1053
    %v1221 = vpop.f32.mrb[0].mxu0
    %v1222 = vadd.f32 0.0, %v1221
    %v1223 = vpop.f32.mrb[0].mxu0
    %1224 = vmatprep.mubr.f32.mxu0 0.0
    %1225 = vmatmul.mubr.f32.gmra.mrb[0].mxu0 %v1056
    %v1226 = vpop.f32.mrb[0].mxu0
    %v1227 = vadd.f32 0.0, %v1226
    %v1228 = vpop.f32.mrb[0].mxu0
    %1229 = vmatprep.mubr.f32.mxu0 0.0
    %1230 = vmatmul.mubr.f32.gmra.mrb[0].mxu0 %v1059
    %v1231 = vpop.f32.mrb[0].mxu0
    %v1232 = vadd.f32 0.0, %v1231
    %v1233 = vpop.f32.mrb[0].mxu0
    %1234 = vdwg.mxu0
    %1235 = vmatprep.subr.mxu0 0.0
    %1236 = vmatpush1.msra.mxu0 %v877
    %1237 = vmatprep.subr.mxu0 0.0
    %1238 = vmatpush1.msra.mxu0 %v878
    %1239 = vmatprep.subr.mxu0 0.0
    %1240 = vmatpush1.msra.mxu0 0.0
    %1241 = vmatprep.subr.mxu0 0.0
    %1242 = vmatpush1.msra.mxu0 0.0
    %1243 = vmatprep.subr.mxu0 0.0
    %1244 = vmatpush1.msra.mxu0 0.0
    %1245 = vmatprep.subr.mxu0 0.0
    %1246 = vmatpush1.msra.mxu0 0.0
    %1247 = vmatprep.subr.mxu0 0.0
    %1248 = vmatpush1.msra.mxu0 0.0
    %1249 = vmatprep.subr.mxu0 0.0
    %1250 = vmatpush1.msra.mxu0 0.0
    %1251 = vmatprep.subr.mxu0 0.0
    %1252 = vmatpush1.msra.mxu0 0.0
    %1253 = vmatprep.subr.mxu0 0.0
    %1254 = vmatpush1.msra.mxu0 0.0
    %1255 = vmatprep.subr.mxu0 0.0
    %1256 = vmatpush1.msra.mxu0 0.0
    %1257 = vmatprep.subr.mxu0 0.0
    %1258 = vmatpush1.msra.mxu0 0.0
    %1259 = vmatprep.subr.mxu0 0.0
    %1260 = vmatpush1.msra.mxu0 0.0
    %1261 = vmatprep.subr.mxu0 0.0
    %1262 = vmatpush1.msra.mxu0 0.0
    %1263 = vmatprep.subr.mxu0 0.0
    %1264 = vmatpush1.msra.mxu0 0.0
    %1265 = vmatprep.subr.mxu0 0.0
    %1266 = vmatpush1.msra.mxu0 0.0
    %1267 = vmatprep.subr.mxu0 0.0
    %1268 = vmatpush1.msra.mxu0 0.0
    %1269 = vmatprep.subr.mxu0 0.0
    %1270 = vmatpush1.msra.mxu0 0.0
    %1271 = vmatprep.subr.mxu0 0.0
    %1272 = vmatpush1.msra.mxu0 0.0
    %1273 = vmatprep.subr.mxu0 0.0
    %1274 = vmatpush1.msra.mxu0 0.0
    %1275 = vmatprep.subr.mxu0 0.0
    %1276 = vmatpush1.msra.mxu0 0.0
    %1277 = vmatprep.subr.mxu0 0.0
    %1278 = vmatpush1.msra.mxu0 0.0
    %1279 = vmatprep.subr.mxu0 0.0
    %1280 = vmatpush1.msra.mxu0 0.0
    %1281 = vmatprep.subr.mxu0 0.0
    %1282 = vmatpush1.msra.mxu0 0.0
    %1283 = vmatprep.subr.mxu0 0.0
    %1284 = vmatpush1.msra.mxu0 0.0
    %1285 = vmatprep.subr.mxu0 0.0
    %1286 = vmatpush1.msra.mxu0 0.0
    %1287 = vmatprep.subr.mxu0 0.0
    %1288 = vmatpush1.msra.mxu0 0.0
    %1289 = vmatprep.subr.mxu0 0.0
    %1290 = vmatpush1.msra.mxu0 0.0
    %1291 = vmatprep.subr.mxu0 0.0
    %1292 = vmatpush1.msra.mxu0 0.0
    %1293 = vmatprep.subr.mxu0 0.0
    %1294 = vmatpush1.msra.mxu0 0.0
    %1295 = vmatprep.subr.mxu0 0.0
    %1296 = vmatpush1.msra.mxu0 0.0
    %1297 = vmatprep.subr.mxu0 0.0
    %1298 = vmatpush1.msra.mxu0 0.0
    %1299 = vmatprep.mubr.f32.mxu0 0.0
    %1300 = vmatmul.mubr.f32.gmra.mrb[0].mxu0 %v953
    %v1301 = vpop.f32.mrb[0].mxu0
    %v1302 = vadd.f32 %v1217, %v1301
    %v1303 = vpop.f32.mrb[0].mxu0
    %1304 = vmatprep.mubr.f32.mxu0 0.0
    %1305 = vmatmul.mubr.f32.gmra.mrb[0].mxu0 %v956
    %v1306 = vpop.f32.mrb[0].mxu0
    %v1307 = vadd.f32 %v1222, %v1306
    %v1308 = vpop.f32.mrb[0].mxu0
    %1309 = vmatprep.mubr.f32.mxu0 0.0
    %1310 = vmatmul.mubr.f32.gmra.mrb[0].mxu0 %v959
    %v1311 = vpop.f32.mrb[0].mxu0
    %v1312 = vadd.f32 %v1227, %v1311
    %v1313 = vpop.f32.mrb[0].mxu0
    %1314 = vmatprep.mubr.f32.mxu0 0.0
    %1315 = vmatmul.mubr.f32.gmra.mrb[0].mxu0 %v962
    %v1316 = vpop.f32.mrb[0].mxu0
    %v1317 = vadd.f32 %v1232, %v1316
    %v1318 = vpop.f32.mrb[0].mxu0
    %1319 = vdwg.mxu0
    %1320 = vmatprep.subr.mxu0 %v888
    %1321 = vmatpush1.msra.mxu0 %v887
    %1322 = vmatprep.subr.mxu0 %v890
    %1323 = vmatpush1.msra.mxu0 %v889
    %1324 = vmatprep.subr.mxu0 %v892
    %1325 = vmatpush1.msra.mxu0 %v891
    %1326 = vmatprep.subr.mxu0 %v894
    %1327 = vmatpush1.msra.mxu0 %v893
    %1328 = vmatprep.subr.mxu0 %v896
    %1329 = vmatpush1.msra.mxu0 %v895
    %1330 = vmatprep.subr.mxu0 %v898
    %1331 = vmatpush1.msra.mxu0 %v897
    %1332 = vmatprep.subr.mxu0 %v900
    %1333 = vmatpush1.msra.mxu0 %v899
    %1334 = vmatprep.subr.mxu0 %v902
    %1335 = vmatpush1.msra.mxu0 %v901
    %1336 = vmatprep.subr.mxu0 %v904
    %1337 = vmatpush1.msra.mxu0 %v903
    %1338 = vmatprep.subr.mxu0 %v906
    %1339 = vmatpush1.msra.mxu0 %v905
    %1340 = vmatprep.subr.mxu0 %v908
    %1341 = vmatpush1.msra.mxu0 %v907
    %1342 = vmatprep.subr.mxu0 %v910
    %1343 = vmatpush1.msra.mxu0 %v909
    %1344 = vmatprep.subr.mxu0 %v912
    %1345 = vmatpush1.msra.mxu0 %v911
    %1346 = vmatprep.subr.mxu0 %v914
    %1347 = vmatpush1.msra.mxu0 %v913
    %1348 = vmatprep.subr.mxu0 %v916
    %1349 = vmatpush1.msra.mxu0 %v915
    %1350 = vmatprep.subr.mxu0 %v918
    %1351 = vmatpush1.msra.mxu0 %v917
    %1352 = vmatprep.subr.mxu0 0.0
    %1353 = vmatpush1.msra.mxu0 0.0
    %1354 = vmatprep.subr.mxu0 0.0
    %1355 = vmatpush1.msra.mxu0 0.0
    %1356 = vmatprep.subr.mxu0 0.0
    %1357 = vmatpush1.msra.mxu0 0.0
    %1358 = vmatprep.subr.mxu0 0.0
    %1359 = vmatpush1.msra.mxu0 0.0
    %1360 = vmatprep.subr.mxu0 0.0
    %1361 = vmatpush1.msra.mxu0 0.0
    %1362 = vmatprep.subr.mxu0 0.0
    %1363 = vmatpush1.msra.mxu0 0.0
    %1364 = vmatprep.subr.mxu0 0.0
    %1365 = vmatpush1.msra.mxu0 0.0
    %1366 = vmatprep.subr.mxu0 0.0
    %1367 = vmatpush1.msra.mxu0 0.0
    %1368 = vmatprep.subr.mxu0 0.0
    %1369 = vmatpush1.msra.mxu0 0.0
    %1370 = vmatprep.subr.mxu0 0.0
    %1371 = vmatpush1.msra.mxu0 0.0
    %1372 = vmatprep.subr.mxu0 0.0
    %1373 = vmatpush1.msra.mxu0 0.0
    %1374 = vmatprep.subr.mxu0 0.0
    %1375 = vmatpush1.msra.mxu0 0.0
    %1376 = vmatprep.subr.mxu0 0.0
    %1377 = vmatpush1.msra.mxu0 0.0
    %1378 = vmatprep.subr.mxu0 0.0
    %1379 = vmatpush1.msra.mxu0 0.0
    %1380 = vmatprep.subr.mxu0 0.0
    %1381 = vmatpush1.msra.mxu0 0.0
    %1382 = vmatprep.subr.mxu0 0.0
    %1383 = vmatpush1.msra.mxu0 0.0
    %1384 = vmatprep.mubr.f32.mxu0 0.0
    %1385 = vmatmul.mubr.f32.gmra.mrb[0].mxu0 %v1146
    %v1386 = vpop.f32.mrb[0].mxu0
    %v1387 = vadd.f32 0.0, %v1386
    %v1388 = vpop.f32.mrb[0].mxu0
    %v1389 = vadd.f32 0.0, %v1388
    %1390 = vmatprep.mubr.f32.mxu0 0.0
    %1391 = vmatmul.mubr.f32.gmra.mrb[0].mxu0 %v1147
    %v1392 = vpop.f32.mrb[0].mxu0
    %v1393 = vadd.f32 0.0, %v1392
    %v1394 = vpop.f32.mrb[0].mxu0
    %v1395 = vadd.f32 0.0, %v1394
    %1396 = vmatprep.mubr.f32.mxu0 0.0
    %1397 = vmatmul.mubr.f32.gmra.mrb[0].mxu0 %v1148
    %v1398 = vpop.f32.mrb[0].mxu0
    %v1399 = vadd.f32 0.0, %v1398
    %v1400 = vpop.f32.mrb[0].mxu0
    %v1401 = vadd.f32 0.0, %v1400
    %1402 = vmatprep.mubr.f32.mxu0 0.0
    %1403 = vmatmul.mubr.f32.gmra.mrb[0].mxu0 %v1149
    %v1404 = vpop.f32.mrb[0].mxu0
    %v1405 = vadd.f32 0.0, %v1404
    %v1406 = vpop.f32.mrb[0].mxu0
    %v1407 = vadd.f32 0.0, %v1406
    %1408 = vdwg.mxu0
    %1409 = vmatprep.subr.mxu0 %v920
    %1410 = vmatpush1.msra.mxu0 %v919
    %1411 = vmatprep.subr.mxu0 %v922
    %1412 = vmatpush1.msra.mxu0 %v921
    %1413 = vmatprep.subr.mxu0 %v924
    %1414 = vmatpush1.msra.mxu0 %v923
    %1415 = vmatprep.subr.mxu0 %v926
    %1416 = vmatpush1.msra.mxu0 %v925
    %1417 = vmatprep.subr.mxu0 %v928
    %1418 = vmatpush1.msra.mxu0 %v927
    %1419 = vmatprep.subr.mxu0 %v930
    %1420 = vmatpush1.msra.mxu0 %v929
    %1421 = vmatprep.subr.mxu0 %v932
    %1422 = vmatpush1.msra.mxu0 %v931
    %1423 = vmatprep.subr.mxu0 %v934
    %1424 = vmatpush1.msra.mxu0 %v933
    %1425 = vmatprep.subr.mxu0 %v936
    %1426 = vmatpush1.msra.mxu0 %v935
    %1427 = vmatprep.subr.mxu0 %v938
    %1428 = vmatpush1.msra.mxu0 %v937
    %1429 = vmatprep.subr.mxu0 %v940
    %1430 = vmatpush1.msra.mxu0 %v939
    %1431 = vmatprep.subr.mxu0 %v942
    %1432 = vmatpush1.msra.mxu0 %v941
    %1433 = vmatprep.subr.mxu0 %v944
    %1434 = vmatpush1.msra.mxu0 %v943
    %1435 = vmatprep.subr.mxu0 %v946
    %1436 = vmatpush1.msra.mxu0 %v945
    %1437 = vmatprep.subr.mxu0 %v948
    %1438 = vmatpush1.msra.mxu0 %v947
    %1439 = vmatprep.subr.mxu0 %v950
    %1440 = vmatpush1.msra.mxu0 %v949
    %1441 = vmatprep.subr.mxu0 0.0
    %1442 = vmatpush1.msra.mxu0 0.0
    %1443 = vmatprep.subr.mxu0 0.0
    %1444 = vmatpush1.msra.mxu0 0.0
    %1445 = vmatprep.subr.mxu0 0.0
    %1446 = vmatpush1.msra.mxu0 0.0
    %1447 = vmatprep.subr.mxu0 0.0
    %1448 = vmatpush1.msra.mxu0 0.0
    %1449 = vmatprep.subr.mxu0 0.0
    %1450 = vmatpush1.msra.mxu0 0.0
    %1451 = vmatprep.subr.mxu0 0.0
    %1452 = vmatpush1.msra.mxu0 0.0
    %1453 = vmatprep.subr.mxu0 0.0
    %1454 = vmatpush1.msra.mxu0 0.0
    %1455 = vmatprep.subr.mxu0 0.0
    %1456 = vmatpush1.msra.mxu0 0.0
    %1457 = vmatprep.subr.mxu0 0.0
    %1458 = vmatpush1.msra.mxu0 0.0
    %1459 = vmatprep.subr.mxu0 0.0
    %1460 = vmatpush1.msra.mxu0 0.0
    %1461 = vmatprep.subr.mxu0 0.0
    %1462 = vmatpush1.msra.mxu0 0.0
    %1463 = vmatprep.subr.mxu0 0.0
    %1464 = vmatpush1.msra.mxu0 0.0
    %1465 = vmatprep.subr.mxu0 0.0
    %1466 = vmatpush1.msra.mxu0 0.0
    %1467 = vmatprep.subr.mxu0 0.0
    %1468 = vmatpush1.msra.mxu0 0.0
    %1469 = vmatprep.subr.mxu0 0.0
    %1470 = vmatpush1.msra.mxu0 0.0
    %1471 = vmatprep.subr.mxu0 0.0
    %1472 = vmatpush1.msra.mxu0 0.0
    %1473 = vmatprep.mubr.f32.mxu0 0.0
    %1474 = vmatmul.mubr.f32.gmra.mrb[0].mxu0 %v1302
    %v1475 = vpop.f32.mrb[0].mxu0
    %v1476 = vadd.f32 0.0, %v1475
    %v1477 = vpop.f32.mrb[0].mxu0
    %v1478 = vadd.f32 0.0, %v1477
    %1479 = vmatprep.mubr.f32.mxu0 0.0
    %1480 = vmatmul.mubr.f32.gmra.mrb[0].mxu0 %v1307
    %v1481 = vpop.f32.mrb[0].mxu0
    %v1482 = vadd.f32 0.0, %v1481
    %v1483 = vpop.f32.mrb[0].mxu0
    %v1484 = vadd.f32 0.0, %v1483
    %1485 = vmatprep.mubr.f32.mxu0 0.0
    %1486 = vmatmul.mubr.f32.gmra.mrb[0].mxu0 %v1312
    %v1487 = vpop.f32.mrb[0].mxu0
    %v1488 = vadd.f32 0.0, %v1487
    %v1489 = vpop.f32.mrb[0].mxu0
    %v1490 = vadd.f32 0.0, %v1489
    %1491 = vmatprep.mubr.f32.mxu0 0.0
    %1492 = vmatmul.mubr.f32.gmra.mrb[0].mxu0 %v1317
    %v1493 = vpop.f32.mrb[0].mxu0
    %v1494 = vadd.f32 0.0, %v1493
    %v1495 = vpop.f32.mrb[0].mxu0
    %v1496 = vadd.f32 0.0, %v1495
    %1497 = vdwg.mxu0
    %v1498 = vsub.f32 %v1387, %v1476
    %v1499 = vsub.f32 %v1389, %v1478
    %v1500 = vsub.f32 %v1393, %v1482
    %v1501 = vsub.f32 %v1395, %v1484
    %v1502 = vsub.f32 %v1399, %v1488
    %v1503 = vsub.f32 %v1401, %v1490
    %v1504 = vsub.f32 %v1405, %v1494
    %v1505 = vsub.f32 %v1407, %v1496
    %1506 = vmatprep.subr.mxu0 %v888
    %1507 = vmatpush1.msra.mxu0 %v887
    %1508 = vmatprep.subr.mxu0 %v890
    %1509 = vmatpush1.msra.mxu0 %v889
    %1510 = vmatprep.subr.mxu0 %v892
    %1511 = vmatpush1.msra.mxu0 %v891
    %1512 = vmatprep.subr.mxu0 %v894
    %1513 = vmatpush1.msra.mxu0 %v893
    %1514 = vmatprep.subr.mxu0 %v896
    %1515 = vmatpush1.msra.mxu0 %v895
    %1516 = vmatprep.subr.mxu0 %v898
    %1517 = vmatpush1.msra.mxu0 %v897
    %1518 = vmatprep.subr.mxu0 %v900
    %1519 = vmatpush1.msra.mxu0 %v899
    %1520 = vmatprep.subr.mxu0 %v902
    %1521 = vmatpush1.msra.mxu0 %v901
    %1522 = vmatprep.subr.mxu0 %v904
    %1523 = vmatpush1.msra.mxu0 %v903
    %1524 = vmatprep.subr.mxu0 %v906
    %1525 = vmatpush1.msra.mxu0 %v905
    %1526 = vmatprep.subr.mxu0 %v908
    %1527 = vmatpush1.msra.mxu0 %v907
    %1528 = vmatprep.subr.mxu0 %v910
    %1529 = vmatpush1.msra.mxu0 %v909
    %1530 = vmatprep.subr.mxu0 %v912
    %1531 = vmatpush1.msra.mxu0 %v911
    %1532 = vmatprep.subr.mxu0 %v914
    %1533 = vmatpush1.msra.mxu0 %v913
    %1534 = vmatprep.subr.mxu0 %v916
    %1535 = vmatpush1.msra.mxu0 %v915
    %1536 = vmatprep.subr.mxu0 %v918
    %1537 = vmatpush1.msra.mxu0 %v917
    %1538 = vmatprep.subr.mxu0 0.0
    %1539 = vmatpush1.msra.mxu0 0.0
    %1540 = vmatprep.subr.mxu0 0.0
    %1541 = vmatpush1.msra.mxu0 0.0
    %1542 = vmatprep.subr.mxu0 0.0
    %1543 = vmatpush1.msra.mxu0 0.0
    %1544 = vmatprep.subr.mxu0 0.0
    %1545 = vmatpush1.msra.mxu0 0.0
    %1546 = vmatprep.subr.mxu0 0.0
    %1547 = vmatpush1.msra.mxu0 0.0
    %1548 = vmatprep.subr.mxu0 0.0
    %1549 = vmatpush1.msra.mxu0 0.0
    %1550 = vmatprep.subr.mxu0 0.0
    %1551 = vmatpush1.msra.mxu0 0.0
    %1552 = vmatprep.subr.mxu0 0.0
    %1553 = vmatpush1.msra.mxu0 0.0
    %1554 = vmatprep.subr.mxu0 0.0
    %1555 = vmatpush1.msra.mxu0 0.0
    %1556 = vmatprep.subr.mxu0 0.0
    %1557 = vmatpush1.msra.mxu0 0.0
    %1558 = vmatprep.subr.mxu0 0.0
    %1559 = vmatpush1.msra.mxu0 0.0
    %1560 = vmatprep.subr.mxu0 0.0
    %1561 = vmatpush1.msra.mxu0 0.0
    %1562 = vmatprep.subr.mxu0 0.0
    %1563 = vmatpush1.msra.mxu0 0.0
    %1564 = vmatprep.subr.mxu0 0.0
    %1565 = vmatpush1.msra.mxu0 0.0
    %1566 = vmatprep.subr.mxu0 0.0
    %1567 = vmatpush1.msra.mxu0 0.0
    %1568 = vmatprep.subr.mxu0 0.0
    %1569 = vmatpush1.msra.mxu0 0.0
    %1570 = vmatprep.mubr.f32.mxu0 0.0
    %1571 = vmatmul.mubr.f32.gmra.mrb[0].mxu0 %v1302
    %v1572 = vpop.f32.mrb[0].mxu0
    %v1573 = vadd.f32 0.0, %v1572
    %v1574 = vpop.f32.mrb[0].mxu0
    %v1575 = vadd.f32 0.0, %v1574
    %1576 = vmatprep.mubr.f32.mxu0 0.0
    %1577 = vmatmul.mubr.f32.gmra.mrb[0].mxu0 %v1307
    %v1578 = vpop.f32.mrb[0].mxu0
    %v1579 = vadd.f32 0.0, %v1578
    %v1580 = vpop.f32.mrb[0].mxu0
    %v1581 = vadd.f32 0.0, %v1580
    %1582 = vmatprep.mubr.f32.mxu0 0.0
    %1583 = vmatmul.mubr.f32.gmra.mrb[0].mxu0 %v1312
    %v1584 = vpop.f32.mrb[0].mxu0
    %v1585 = vadd.f32 0.0, %v1584
    %v1586 = vpop.f32.mrb[0].mxu0
    %v1587 = vadd.f32 0.0, %v1586
    %1588 = vmatprep.mubr.f32.mxu0 0.0
    %1589 = vmatmul.mubr.f32.gmra.mrb[0].mxu0 %v1317
    %v1590 = vpop.f32.mrb[0].mxu0
    %v1591 = vadd.f32 0.0, %v1590
    %v1592 = vpop.f32.mrb[0].mxu0
    %v1593 = vadd.f32 0.0, %v1592
    %1594 = vdwg.mxu0
    %1595 = vmatprep.subr.mxu0 %v920
    %1596 = vmatpush1.msra.mxu0 %v919
    %1597 = vmatprep.subr.mxu0 %v922
    %1598 = vmatpush1.msra.mxu0 %v921
    %1599 = vmatprep.subr.mxu0 %v924
    %1600 = vmatpush1.msra.mxu0 %v923
    %1601 = vmatprep.subr.mxu0 %v926
    %1602 = vmatpush1.msra.mxu0 %v925
    %1603 = vmatprep.subr.mxu0 %v928
    %1604 = vmatpush1.msra.mxu0 %v927
    %1605 = vmatprep.subr.mxu0 %v930
    %1606 = vmatpush1.msra.mxu0 %v929
    %1607 = vmatprep.subr.mxu0 %v932
    %1608 = vmatpush1.msra.mxu0 %v931
    %1609 = vmatprep.subr.mxu0 %v934
    %1610 = vmatpush1.msra.mxu0 %v933
    %1611 = vmatprep.subr.mxu0 %v936
    %1612 = vmatpush1.msra.mxu0 %v935
    %1613 = vmatprep.subr.mxu0 %v938
    %1614 = vmatpush1.msra.mxu0 %v937
    %1615 = vmatprep.subr.mxu0 %v940
    %1616 = vmatpush1.msra.mxu0 %v939
    %1617 = vmatprep.subr.mxu0 %v942
    %1618 = vmatpush1.msra.mxu0 %v941
    %1619 = vmatprep.subr.mxu0 %v944
    %1620 = vmatpush1.msra.mxu0 %v943
    %1621 = vmatprep.subr.mxu0 %v946
    %1622 = vmatpush1.msra.mxu0 %v945
    %1623 = vmatprep.subr.mxu0 %v948
    %1624 = vmatpush1.msra.mxu0 %v947
    %1625 = vmatprep.subr.mxu0 %v950
    %1626 = vmatpush1.msra.mxu0 %v949
    %1627 = vmatprep.subr.mxu0 0.0
    %1628 = vmatpush1.msra.mxu0 0.0
    %1629 = vmatprep.subr.mxu0 0.0
    %1630 = vmatpush1.msra.mxu0 0.0
    %1631 = vmatprep.subr.mxu0 0.0
    %1632 = vmatpush1.msra.mxu0 0.0
    %1633 = vmatprep.subr.mxu0 0.0
    %1634 = vmatpush1.msra.mxu0 0.0
    %1635 = vmatprep.subr.mxu0 0.0
    %1636 = vmatpush1.msra.mxu0 0.0
    %1637 = vmatprep.subr.mxu0 0.0
    %1638 = vmatpush1.msra.mxu0 0.0
    %1639 = vmatprep.subr.mxu0 0.0
    %1640 = vmatpush1.msra.mxu0 0.0
    %1641 = vmatprep.subr.mxu0 0.0
    %1642 = vmatpush1.msra.mxu0 0.0
    %1643 = vmatprep.subr.mxu0 0.0
    %1644 = vmatpush1.msra.mxu0 0.0
    %1645 = vmatprep.subr.mxu0 0.0
    %1646 = vmatpush1.msra.mxu0 0.0
    %1647 = vmatprep.subr.mxu0 0.0
    %1648 = vmatpush1.msra.mxu0 0.0
    %1649 = vmatprep.subr.mxu0 0.0
    %1650 = vmatpush1.msra.mxu0 0.0
    %1651 = vmatprep.subr.mxu0 0.0
    %1652 = vmatpush1.msra.mxu0 0.0
    %1653 = vmatprep.subr.mxu0 0.0
    %1654 = vmatpush1.msra.mxu0 0.0
    %1655 = vmatprep.subr.mxu0 0.0
    %1656 = vmatpush1.msra.mxu0 0.0
    %1657 = vmatprep.subr.mxu0 0.0
    %1658 = vmatpush1.msra.mxu0 0.0
    %1659 = vmatprep.mubr.f32.mxu0 0.0
    %1660 = vmatmul.mubr.f32.gmra.mrb[0].mxu0 %v1146
    %v1661 = vpop.f32.mrb[0].mxu0
    %v1662 = vadd.f32 %v1573, %v1661
    %v1663 = vpop.f32.mrb[0].mxu0
    %v1664 = vadd.f32 %v1575, %v1663
    %1665 = vmatprep.mubr.f32.mxu0 0.0
    %1666 = vmatmul.mubr.f32.gmra.mrb[0].mxu0 %v1147
    %v1667 = vpop.f32.mrb[0].mxu0
    %v1668 = vadd.f32 %v1579, %v1667
    %v1669 = vpop.f32.mrb[0].mxu0
    %v1670 = vadd.f32 %v1581, %v1669
    %1671 = vmatprep.mubr.f32.mxu0 0.0
    %1672 = vmatmul.mubr.f32.gmra.mrb[0].mxu0 %v1148
    %v1673 = vpop.f32.mrb[0].mxu0
    %v1674 = vadd.f32 %v1585, %v1673
    %v1675 = vpop.f32.mrb[0].mxu0
    %v1676 = vadd.f32 %v1587, %v1675
    %1677 = vmatprep.mubr.f32.mxu0 0.0
    %1678 = vmatmul.mubr.f32.gmra.mrb[0].mxu0 %v1149
    %v1679 = vpop.f32.mrb[0].mxu0
    %v1680 = vadd.f32 %v1591, %v1679
    %v1681 = vpop.f32.mrb[0].mxu0
    %v1682 = vadd.f32 %v1593, %v1681
    %1683 = vdwg.mxu0
    %v1684 = vmul.f32 %v1498, %v1498
    %v1685 = vmul.f32 %v1499, %v1499
    %v1686 = vmul.f32 %v1500, %v1500
    %v1687 = vmul.f32 %v1501, %v1501
    %v1688 = vmul.f32 %v1502, %v1502
    %v1689 = vmul.f32 %v1503, %v1503
    %v1690 = vmul.f32 %v1504, %v1504
    %v1691 = vmul.f32 %v1505, %v1505
    %v1692 = vmul.f32 %v1662, %v1662
    %v1693 = vmul.f32 %v1664, %v1664
    %v1694 = vmul.f32 %v1668, %v1668
    %v1695 = vmul.f32 %v1670, %v1670
    %v1696 = vmul.f32 %v1674, %v1674
    %v1697 = vmul.f32 %v1676, %v1676
    %v1698 = vmul.f32 %v1680, %v1680
    %v1699 = vmul.f32 %v1682, %v1682
    %v1700 = vadd.f32 %v1684, %v1692
    %v1701 = vadd.f32 %v1685, %v1693
    %v1702 = vadd.f32 %v1686, %v1694
    %v1703 = vadd.f32 %v1687, %v1695
    %v1704 = vadd.f32 %v1688, %v1696
    %v1705 = vadd.f32 %v1689, %v1697
    %v1706 = vadd.f32 %v1690, %v1698
    %v1707 = vadd.f32 %v1691, %v1699
    %v1708 = vrsqrt.pop %v1700
    %v1709 = vmul.f32 %v1700, %v1708
    %vm1710 = vcmp.eq.f32.partialorder %v1700, inf
    %v1711 = vsel %vm1710, %v1700, %v1709
    %vm1712 = vcmp.eq.f32.partialorder %v1700, 0.0
    %v1713 = vand.u32 %v1700, 2147483648
    %v1714 = vsel %vm1712, %v1713, %v1711
    %v1715 = vrsqrt.pop %v1701
    %v1716 = vmul.f32 %v1701, %v1715
    %vm1717 = vcmp.eq.f32.partialorder %v1701, inf
    %v1718 = vsel %vm1717, %v1701, %v1716
    %vm1719 = vcmp.eq.f32.partialorder %v1701, 0.0
    %v1720 = vand.u32 %v1701, 2147483648
    %v1721 = vsel %vm1719, %v1720, %v1718
    %v1722 = vrsqrt.pop %v1702
    %v1723 = vmul.f32 %v1702, %v1722
    %vm1724 = vcmp.eq.f32.partialorder %v1702, inf
    %v1725 = vsel %vm1724, %v1702, %v1723
    %vm1726 = vcmp.eq.f32.partialorder %v1702, 0.0
    %v1727 = vand.u32 %v1702, 2147483648
    %v1728 = vsel %vm1726, %v1727, %v1725
    %v1729 = vrsqrt.pop %v1703
    %v1730 = vmul.f32 %v1703, %v1729
    %vm1731 = vcmp.eq.f32.partialorder %v1703, inf
    %v1732 = vsel %vm1731, %v1703, %v1730
    %vm1733 = vcmp.eq.f32.partialorder %v1703, 0.0
    %v1734 = vand.u32 %v1703, 2147483648
    %v1735 = vsel %vm1733, %v1734, %v1732
    %v1736 = vrsqrt.pop %v1704
    %v1737 = vmul.f32 %v1704, %v1736
    %vm1738 = vcmp.eq.f32.partialorder %v1704, inf
    %v1739 = vsel %vm1738, %v1704, %v1737
    %vm1740 = vcmp.eq.f32.partialorder %v1704, 0.0
    %v1741 = vand.u32 %v1704, 2147483648
    %v1742 = vsel %vm1740, %v1741, %v1739
    %v1743 = vrsqrt.pop %v1705
    %v1744 = vmul.f32 %v1705, %v1743
    %vm1745 = vcmp.eq.f32.partialorder %v1705, inf
    %v1746 = vsel %vm1745, %v1705, %v1744
    %vm1747 = vcmp.eq.f32.partialorder %v1705, 0.0
    %v1748 = vand.u32 %v1705, 2147483648
    %v1749 = vsel %vm1747, %v1748, %v1746
    %v1750 = vrsqrt.pop %v1706
    %v1751 = vmul.f32 %v1706, %v1750
    %vm1752 = vcmp.eq.f32.partialorder %v1706, inf
    %v1753 = vsel %vm1752, %v1706, %v1751
    %vm1754 = vcmp.eq.f32.partialorder %v1706, 0.0
    %v1755 = vand.u32 %v1706, 2147483648
    %v1756 = vsel %vm1754, %v1755, %v1753
    %v1757 = vrsqrt.pop %v1707
    %v1758 = vmul.f32 %v1707, %v1757
    %vm1759 = vcmp.eq.f32.partialorder %v1707, inf
    %v1760 = vsel %vm1759, %v1707, %v1758
    %vm1761 = vcmp.eq.f32.partialorder %v1707, 0.0
    %v1762 = vand.u32 %v1707, 2147483648
    %v1763 = vsel %vm1761, %v1762, %v1760
    %1764 = vst [vmem:[%s7] sm:$0xff] %v1714
    %1765 = vst [vmem:[%s7 + $0x8] sm:$0xff] %v1721
    %1766 = vst [vmem:[%s7 + $0x10] sm:$0xff] %v1728
    %1767 = vst [vmem:[%s7 + $0x18] sm:$0xff] %v1735
    %1768 = vst [vmem:[%s7 + $0x20] sm:$0xff] %v1742
    %1769 = vst [vmem:[%s7 + $0x28] sm:$0xff] %v1749
    %1770 = vst [vmem:[%s7 + $0x30] sm:$0xff] %v1756
    %1771 = vst [vmem:[%s7 + $0x38] sm:$0xff] %v1763
    // Predicated region
    $region42: #{fwd.3} parent=1 // pred_check
      _
    $region43: #{fwd.3} parent=1 // pred_check_branch
      %1773 = sbr.rel (0) target = $region45
    $region44: #{fwd.3} parent=1 // pred_region
      _
    $region45: #{fwd.3} parent=1 // pred_fallthru
      _
    // Predicated region
    $region46: #{fwd.3} parent=1 // pred_check
      _
    $region47: #{fwd.3} parent=1 // pred_check_branch
      %1775 = sbr.rel (0) target = $region49
    $region48: #{fwd.3} parent=1 // pred_region
      _
    $region49: #{fwd.3} parent=1 // pred_fallthru
      _
    %1776 = vsyncpa [#allocation3], 1
    %1777 = vsyncpa [#allocation5], 1

</llo_original>
